<compile_context>
chip_gen: v6e
topology: v6e:2x2x1
jax: 0.10.0
libtpu: 0.0.40
codegen_flags: <defaults>
</compile_context>

<pallas_src>
import functools

import numpy as np
import jax
import jax.numpy as jnp
from jax import lax
from jax.experimental import pallas as pl
from jax.experimental.pallas import tpu as pltpu

F32 = jnp.float32
BF16 = jnp.bfloat16


# --------------------------------------------------------------------------- #
# Kernel: one block of Bblk images.  Everything is 2-D matmuls (bf16 in, f32
# accumulate) + elementwise max/relu on contiguous static slices.
# Row ordering per block:
#   conv1/pool1 stage : row = parity*14*Bblk + p*Bblk + b      (h1 = 2p + parity)
#   conv2/pool2 stage : row = h2*Bblk + b                      (h-major)
#   fc stage          : row = b
# Column ordering is always (w, channel) -> lane-dense (168 / 84 / 160 / 80 / 120 / 128).
# --------------------------------------------------------------------------- #
def lenet_kernel(l1_ref, r1_ref, b1_ref, r2_ref, b2_ref,
                 fw1_ref, fb1_ref, fw2_ref, fb2_ref,
                 cw1_ref, cw2_ref, out_ref, *, bblk):
    def mm(a, b):
        return jnp.dot(a, b, preferred_element_type=jnp.float32)

    # ---- conv1 (pad=2, 3->6): ONE matmul on row-im2col patches ----
    # (28*Bblk, 480) @ (480, 168) ; cols = w*6 + cout
    a1 = jnp.maximum(mm(l1_ref[...], r1_ref[...]) + b1_ref[...], 0.0).astype(BF16)

    # ---- maxpool1 2x2 ----
    # W direction: exact 0/1 even/odd column selectors (Bblk-independent matmuls).
    a1w = jnp.maximum(mm(a1, cw1_ref[0]), mm(a1, cw1_ref[1]))           # (28*Bblk, 84)
    # H direction: rows are parity-major -> max of the two contiguous halves (VPU).
    p1 = jnp.maximum(a1w[:14 * bblk, :], a1w[14 * bblk:, :]).astype(BF16)  # (14*Bblk, 84), rows (p, b)

    # ---- conv2 (valid 5x5, 6->16): kh row shift = contiguous static slice ----
    acc2 = mm(p1[0:10 * bblk, :], r2_ref[0])                            # (10*Bblk, 160)
    for kh in range(1, 5):
        acc2 = acc2 + mm(p1[kh * bblk:(kh + 10) * bblk, :], r2_ref[kh])
    a2 = jnp.maximum(acc2 + b2_ref[...], 0.0).astype(BF16)              # rows (h2, b), cols = w*16 + cout

    # ---- maxpool2 2x2, W direction ----
    a2w = jnp.maximum(mm(a2, cw2_ref[0]), mm(a2, cw2_ref[1]))           # (10*Bblk, 80)

    # ---- maxpool2 H direction fused with fc1 (400 -> 120) ----
    # per output row q: max of the two adjacent Bblk-row slabs, then an
    # accumulating (Bblk, 80) @ (80, 120) dot against the matching fc1 weight slice.
    h1 = None
    for q in range(5):
        pq = jnp.maximum(a2w[2 * q * bblk:(2 * q + 1) * bblk, :],
                         a2w[(2 * q + 1) * bblk:(2 * q + 2) * bblk, :]).astype(BF16)
        t = mm(pq, fw1_ref[q])
        h1 = t if h1 is None else h1 + t
    h1 = jnp.maximum(h1 + fb1_ref[...], 0.0).astype(BF16)               # (Bblk, 120)

    # ---- fc2 (120 -> 1), padded to 128 output lanes (lane-dense store) ----
    out_ref[...] = mm(h1, fw2_ref[...]) + fb2_ref[...]                  # (Bblk, 128)


# --------------------------------------------------------------------------- #
# Constant-matrix builders (numpy, trace-time only).
# --------------------------------------------------------------------------- #
def _toeplitz_T(K, WP, WO):
    # T[kw, wp, w] = 1 if wp == w + kw
    T = np.zeros((K, WP, WO), np.float32)
    for kw in range(K):
        for w in range(WO):
            T[kw, w + kw, w] = 1.0
    return T


def _wpool_sel(W, C):
    # even/odd column selectors: cols (w, c) -> (q, c); exact 0/1 (exact in bf16)
    S = np.zeros((2, W * C, (W // 2) * C), np.float32)
    for q in range(W // 2):
        for c in range(C):
            S[0, (2 * q) * C + c, q * C + c] = 1.0
            S[1, (2 * q + 1) * C + c, q * C + c] = 1.0
    return S


def _full_spec(a):
    nd = a.ndim
    return pl.BlockSpec(a.shape, lambda i, nd=nd: (0,) * nd)


def _round_up(n, m):
    return -(-n // m) * m


# --------------------------------------------------------------------------- #
# Wrapper: layout / im2col / block-Toeplitz weight prep in plain JAX + pallas_call.
# --------------------------------------------------------------------------- #
def lenet_forward_pallas(x_nchw, params, block_b=32):
    (w1, b1, w2, b2, fw1, fb1, fw2, fb2) = params
    assert block_b % 16 == 0
    B = x_nchw.shape[0]

    # Batch block: multiple of 16 (bf16 sublane tile) so every in-kernel slice is
    # tile aligned; >= 2 grid blocks when the batch is big enough (v7x megacore).
    if B <= 16:
        Bblk = 16
    else:
        Bblk = min(block_b, _round_up(-(-B // 2), 16))
    Bpad = _round_up(B, Bblk)
    n_blk = Bpad // Bblk

    # ---- data: pad batch+spatial, build conv1 row-im2col patches ----
    x_hwc = jnp.transpose(x_nchw, (0, 2, 3, 1)).astype(F32)               # (B,28,28,3)
    if Bpad > B:
        x_hwc = jnp.pad(x_hwc, ((0, Bpad - B), (0, 0), (0, 0), (0, 0)))
    xpad = jnp.pad(x_hwc, ((0, 0), (2, 2), (2, 2), (0, 0)))               # (Bpad,32,32,3)
    slabs = [xpad[:, kh:kh + 28, :, :].reshape(Bpad, 28, 96) for kh in range(5)]
    patches = jnp.concatenate(slabs, axis=-1)                             # (Bpad,28,480), cols=(kh,wp,cin)
    # Row order inside a block: parity-major then p then b  (h1 = 2p + parity).
    patches = jnp.concatenate([patches[:, 0::2, :], patches[:, 1::2, :]], axis=1)
    l1 = (patches.reshape(n_blk, Bblk, 28, 480)
                 .transpose(0, 2, 1, 3)
                 .reshape(n_blk * 28 * Bblk, 480)
                 .astype(BF16))

    # ---- weights: block-Toeplitz / permuted layouts, bf16 for the MXU ----
    T1 = _toeplitz_T(5, 32, 28)                                           # (5,32,28)
    r1 = jnp.einsum('oihk,kpw->hpiwo', w1.astype(F32), T1).reshape(480, 168).astype(BF16)
    T2 = _toeplitz_T(5, 14, 10)                                           # (5,14,10)
    r2 = jnp.einsum('oihk,kpw->hpiwo', w2.astype(F32), T2).reshape(5, 84, 160).astype(BF16)
    b1row = jnp.tile(b1.astype(F32), 28).reshape(1, 168)
    b2row = jnp.tile(b2.astype(F32), 10).reshape(1, 160)
    fw1k = jnp.transpose(fw1.astype(F32).reshape(120, 16, 5, 5),
                         (2, 3, 1, 0)).reshape(5, 80, 120).astype(BF16)   # [q][(w,c),n]
    fb1k = fb1.astype(F32).reshape(1, 120)
    fw2k = jnp.zeros((120, 128), F32).at[:, 0:1].set(jnp.transpose(fw2.astype(F32)))
    fw2k = fw2k.astype(BF16)                                              # lane-dense fc2
    fb2k = jnp.zeros((1, 128), F32).at[0, 0].set(fb2.astype(F32)[0])

    # ---- W-direction 2x2-pool column selectors (exact 0/1, Bblk-independent) ----
    cw1 = jnp.asarray(_wpool_sel(28, 6), BF16)    # (2,168,84)
    cw2 = jnp.asarray(_wpool_sel(10, 16), BF16)   # (2,160,80)

    grid_spec = pltpu.PrefetchScalarGridSpec(
        num_scalar_prefetch=0,
        grid=(n_blk,),
        in_specs=[
            pl.BlockSpec((28 * Bblk, 480), lambda i: (i, 0)),   # conv1 patches (per block)
            _full_spec(r1), _full_spec(b1row),
            _full_spec(r2), _full_spec(b2row),
            _full_spec(fw1k), _full_spec(fb1k),
            _full_spec(fw2k), _full_spec(fb2k),
            _full_spec(cw1), _full_spec(cw2),
        ],
        out_specs=pl.BlockSpec((Bblk, 128), lambda i: (i, 0)),  # lane-dense output block
    )

    out = pl.pallas_call(
        functools.partial(lenet_kernel, bblk=Bblk),
        out_shape=jax.ShapeDtypeStruct((Bpad, 128), F32),
        grid_spec=grid_spec,
        compiler_params=pltpu.CompilerParams(
            dimension_semantics=("parallel",),       # shard batch blocks across TCs (v7x)
            vmem_limit_bytes=32 * 1024 * 1024,       # plenty of headroom on v5e/v6e/v7x
        ),
    )(l1, r1, b1row, r2, b2row, fw1k, fb1k, fw2k, fb2k, cw1, cw2)
    return out[:B, :1]


# ---------------- plain-JAX reference (mirrors the PyTorch module) ---------------- #
def _maxpool2x2_nchw(x):
    B, C, H, W = x.shape
    return x.reshape(B, C, H // 2, 2, W // 2, 2).max(axis=(3, 5))


def lenet_forward_ref(x, params):
    (w1, b1, w2, b2, fw1, fb1, fw2, fb2) = params
    dn = ('NCHW', 'OIHW', 'NCHW')
    y = lax.conv_general_dilated(x, w1, (1, 1), ((2, 2), (2, 2)), dimension_numbers=dn)
    y = _maxpool2x2_nchw(jnp.maximum(y + b1[None, :, None, None], 0.0))
    y = lax.conv_general_dilated(y, w2, (1, 1), 'VALID', dimension_numbers=dn)
    y = _maxpool2x2_nchw(jnp.maximum(y + b2[None, :, None, None], 0.0))
    y = y.reshape(y.shape[0], 16 * 5 * 5)
    y = jnp.maximum(jnp.dot(y, fw1.T) + fb1, 0.0)
    return jnp.dot(y, fw2.T) + fb2


if __name__ == "__main__":
    key = jax.random.PRNGKey(0)
    ks = jax.random.split(key, 9)

    def uinit(k, shape, fan_in):
        bound = 1.0 / float(np.sqrt(fan_in))
        return jax.random.uniform(k, shape, F32, -bound, bound)

    params = (
        uinit(ks[0], (6, 3, 5, 5), 3 * 25),  uinit(ks[1], (6,), 3 * 25),    # conv1
        uinit(ks[2], (16, 6, 5, 5), 6 * 25), uinit(ks[3], (16,), 6 * 25),   # conv2
        uinit(ks[4], (120, 400), 400),       uinit(ks[5], (120,), 400),     # fc1
        uinit(ks[6], (1, 120), 120),         uinit(ks[7], (1,), 120),       # fc2
    )
    # NCHW input, spatial 28x28 so the 16*5*5 flatten in forward() holds.
    x = jax.random.normal(ks[8], (2, 3, 28, 28), F32)

    fwd = jax.jit(lenet_forward_pallas)
    out = jax.block_until_ready(fwd(x, params))
    ref = jax.block_until_ready(jax.jit(lenet_forward_ref)(x, params))

    assert out.shape == (2, 1), out.shape
    if not np.allclose(np.asarray(out), np.asarray(ref), rtol=2e-2, atol=2e-2):
        raise AssertionError(f"Pallas/reference mismatch:\n{out}\nvs\n{ref}")
    print("KERNEL_OK")
</pallas_src>

<mosaic_0001>
module attributes {stable_mosaic.version = 11 : i64} {
  func.func @lenet_kernel(%arg0: i32, %arg1: memref<448x480xbf16, #tpu.memory_space<vmem>>, %arg2: memref<480x168xbf16, #tpu.memory_space<vmem>>, %arg3: memref<1x168xf32, #tpu.memory_space<vmem>>, %arg4: memref<5x84x160xbf16, #tpu.memory_space<vmem>>, %arg5: memref<1x160xf32, #tpu.memory_space<vmem>>, %arg6: memref<5x80x120xbf16, #tpu.memory_space<vmem>>, %arg7: memref<1x120xf32, #tpu.memory_space<vmem>>, %arg8: memref<120x128xbf16, #tpu.memory_space<vmem>>, %arg9: memref<1x128xf32, #tpu.memory_space<vmem>>, %arg10: memref<2x168x84xbf16, #tpu.memory_space<vmem>>, %arg11: memref<2x160x80xbf16, #tpu.memory_space<vmem>>, %arg12: memref<16x128xf32, #tpu.memory_space<vmem>>) attributes {dimension_semantics = [#tpu.dimension_semantics<parallel>], iteration_bounds = array<i64: 1>, scalar_prefetch = 0 : i64, scratch_operands = 0 : i64, tpu.core_type = #tpu.core_type<tc>, window_params = [{transform_indices = @transform_0, window_bounds = array<i64: 448, 480>}, {pipeline_mode = #tpu.pipeline_mode<synchronous>, transform_indices = @transform_1, window_bounds = array<i64: 480, 168>}, {pipeline_mode = #tpu.pipeline_mode<synchronous>, transform_indices = @transform_2, window_bounds = array<i64: 1, 168>}, {pipeline_mode = #tpu.pipeline_mode<synchronous>, transform_indices = @transform_3, window_bounds = array<i64: 5, 84, 160>}, {pipeline_mode = #tpu.pipeline_mode<synchronous>, transform_indices = @transform_4, window_bounds = array<i64: 1, 160>}, {pipeline_mode = #tpu.pipeline_mode<synchronous>, transform_indices = @transform_5, window_bounds = array<i64: 5, 80, 120>}, {pipeline_mode = #tpu.pipeline_mode<synchronous>, transform_indices = @transform_6, window_bounds = array<i64: 1, 120>}, {pipeline_mode = #tpu.pipeline_mode<synchronous>, transform_indices = @transform_7, window_bounds = array<i64: 120, 128>}, {pipeline_mode = #tpu.pipeline_mode<synchronous>, transform_indices = @transform_8, window_bounds = array<i64: 1, 128>}, {pipeline_mode = #tpu.pipeline_mode<synchronous>, transform_indices = @transform_9, window_bounds = array<i64: 2, 168, 84>}, {pipeline_mode = #tpu.pipeline_mode<synchronous>, transform_indices = @transform_10, window_bounds = array<i64: 2, 160, 80>}, {transform_indices = @transform_11, window_bounds = array<i64: 16, 128>}]} {
    %c0 = arith.constant 0 : index
    %c0_0 = arith.constant 0 : index
    %0 = vector.load %arg1[%c0, %c0_0] : memref<448x480xbf16, #tpu.memory_space<vmem>>, vector<448x480xbf16>
    %c0_1 = arith.constant 0 : index
    %c0_2 = arith.constant 0 : index
    %1 = vector.load %arg2[%c0_1, %c0_2] : memref<480x168xbf16, #tpu.memory_space<vmem>>, vector<480x168xbf16>
    %cst = arith.constant dense<0.000000e+00> : vector<448x168xf32>
    %2 = tpu.matmul %0, %1, %cst {dimension_numbers = #tpu.dot_dimension_numbers<[1], [0], [0], [1], [0, 0, 1, 1], [], []>} : vector<448x480xbf16>, vector<480x168xbf16>, vector<448x168xf32> -> vector<448x168xf32>
    %c0_3 = arith.constant 0 : index
    %c0_4 = arith.constant 0 : index
    %3 = vector.load %arg3[%c0_3, %c0_4] : memref<1x168xf32, #tpu.memory_space<vmem>>, vector<1x168xf32>
    %4 = vector.broadcast %3 : vector<1x168xf32> to vector<448x168xf32>
    %5 = arith.addf %2, %4 : vector<448x168xf32>
    %cst_5 = arith.constant 0.000000e+00 : f32
    %6 = vector.broadcast %cst_5 : f32 to vector<448x168xf32>
    %7 = arith.maximumf %5, %6 : vector<448x168xf32>
    %8 = arith.truncf %7 : vector<448x168xf32> to vector<448x168xbf16>
    %c0_6 = arith.constant 0 : index
    %c0_7 = arith.constant 0 : index
    %c0_8 = arith.constant 0 : index
    %9 = vector.load %arg10[%c0_6, %c0_7, %c0_8] : memref<2x168x84xbf16, #tpu.memory_space<vmem>>, vector<1x168x84xbf16>
    %10 = vector.shape_cast %9 : vector<1x168x84xbf16> to vector<168x84xbf16>
    %cst_9 = arith.constant dense<0.000000e+00> : vector<448x84xf32>
    %11 = tpu.matmul %8, %10, %cst_9 {dimension_numbers = #tpu.dot_dimension_numbers<[1], [0], [0], [1], [0, 0, 1, 1], [], []>} : vector<448x168xbf16>, vector<168x84xbf16>, vector<448x84xf32> -> vector<448x84xf32>
    %c1 = arith.constant 1 : index
    %c0_10 = arith.constant 0 : index
    %c0_11 = arith.constant 0 : index
    %12 = vector.load %arg10[%c1, %c0_10, %c0_11] : memref<2x168x84xbf16, #tpu.memory_space<vmem>>, vector<1x168x84xbf16>
    %13 = vector.shape_cast %12 : vector<1x168x84xbf16> to vector<168x84xbf16>
    %cst_12 = arith.constant dense<0.000000e+00> : vector<448x84xf32>
    %14 = tpu.matmul %8, %13, %cst_12 {dimension_numbers = #tpu.dot_dimension_numbers<[1], [0], [0], [1], [0, 0, 1, 1], [], []>} : vector<448x168xbf16>, vector<168x84xbf16>, vector<448x84xf32> -> vector<448x84xf32>
    %15 = arith.maximumf %11, %14 : vector<448x84xf32>
    %16 = vector.extract_strided_slice %15 {offsets = [0, 0], sizes = [224, 84], strides = [1, 1]} : vector<448x84xf32> to vector<224x84xf32>
    %17 = vector.extract_strided_slice %15 {offsets = [224, 0], sizes = [224, 84], strides = [1, 1]} : vector<448x84xf32> to vector<224x84xf32>
    %18 = arith.maximumf %16, %17 : vector<224x84xf32>
    %19 = arith.truncf %18 : vector<224x84xf32> to vector<224x84xbf16>
    %20 = vector.extract_strided_slice %19 {offsets = [0, 0], sizes = [160, 84], strides = [1, 1]} : vector<224x84xbf16> to vector<160x84xbf16>
    %c0_13 = arith.constant 0 : index
    %c0_14 = arith.constant 0 : index
    %c0_15 = arith.constant 0 : index
    %21 = vector.load %arg4[%c0_13, %c0_14, %c0_15] : memref<5x84x160xbf16, #tpu.memory_space<vmem>>, vector<1x84x160xbf16>
    %22 = vector.shape_cast %21 : vector<1x84x160xbf16> to vector<84x160xbf16>
    %cst_16 = arith.constant dense<0.000000e+00> : vector<160x160xf32>
    %23 = tpu.matmul %20, %22, %cst_16 {dimension_numbers = #tpu.dot_dimension_numbers<[1], [0], [0], [1], [0, 0, 1, 1], [], []>} : vector<160x84xbf16>, vector<84x160xbf16>, vector<160x160xf32> -> vector<160x160xf32>
    %24 = vector.extract_strided_slice %19 {offsets = [16, 0], sizes = [160, 84], strides = [1, 1]} : vector<224x84xbf16> to vector<160x84xbf16>
    %c1_17 = arith.constant 1 : index
    %c0_18 = arith.constant 0 : index
    %c0_19 = arith.constant 0 : index
    %25 = vector.load %arg4[%c1_17, %c0_18, %c0_19] : memref<5x84x160xbf16, #tpu.memory_space<vmem>>, vector<1x84x160xbf16>
    %26 = vector.shape_cast %25 : vector<1x84x160xbf16> to vector<84x160xbf16>
    %cst_20 = arith.constant dense<0.000000e+00> : vector<160x160xf32>
    %27 = tpu.matmul %24, %26, %cst_20 {dimension_numbers = #tpu.dot_dimension_numbers<[1], [0], [0], [1], [0, 0, 1, 1], [], []>} : vector<160x84xbf16>, vector<84x160xbf16>, vector<160x160xf32> -> vector<160x160xf32>
    %28 = arith.addf %23, %27 : vector<160x160xf32>
    %29 = vector.extract_strided_slice %19 {offsets = [32, 0], sizes = [160, 84], strides = [1, 1]} : vector<224x84xbf16> to vector<160x84xbf16>
    %c2 = arith.constant 2 : index
    %c0_21 = arith.constant 0 : index
    %c0_22 = arith.constant 0 : index
    %30 = vector.load %arg4[%c2, %c0_21, %c0_22] : memref<5x84x160xbf16, #tpu.memory_space<vmem>>, vector<1x84x160xbf16>
    %31 = vector.shape_cast %30 : vector<1x84x160xbf16> to vector<84x160xbf16>
    %cst_23 = arith.constant dense<0.000000e+00> : vector<160x160xf32>
    %32 = tpu.matmul %29, %31, %cst_23 {dimension_numbers = #tpu.dot_dimension_numbers<[1], [0], [0], [1], [0, 0, 1, 1], [], []>} : vector<160x84xbf16>, vector<84x160xbf16>, vector<160x160xf32> -> vector<160x160xf32>
    %33 = arith.addf %28, %32 : vector<160x160xf32>
    %34 = vector.extract_strided_slice %19 {offsets = [48, 0], sizes = [160, 84], strides = [1, 1]} : vector<224x84xbf16> to vector<160x84xbf16>
    %c3 = arith.constant 3 : index
    %c0_24 = arith.constant 0 : index
    %c0_25 = arith.constant 0 : index
    %35 = vector.load %arg4[%c3, %c0_24, %c0_25] : memref<5x84x160xbf16, #tpu.memory_space<vmem>>, vector<1x84x160xbf16>
    %36 = vector.shape_cast %35 : vector<1x84x160xbf16> to vector<84x160xbf16>
    %cst_26 = arith.constant dense<0.000000e+00> : vector<160x160xf32>
    %37 = tpu.matmul %34, %36, %cst_26 {dimension_numbers = #tpu.dot_dimension_numbers<[1], [0], [0], [1], [0, 0, 1, 1], [], []>} : vector<160x84xbf16>, vector<84x160xbf16>, vector<160x160xf32> -> vector<160x160xf32>
    %38 = arith.addf %33, %37 : vector<160x160xf32>
    %39 = vector.extract_strided_slice %19 {offsets = [64, 0], sizes = [160, 84], strides = [1, 1]} : vector<224x84xbf16> to vector<160x84xbf16>
    %c4 = arith.constant 4 : index
    %c0_27 = arith.constant 0 : index
    %c0_28 = arith.constant 0 : index
    %40 = vector.load %arg4[%c4, %c0_27, %c0_28] : memref<5x84x160xbf16, #tpu.memory_space<vmem>>, vector<1x84x160xbf16>
    %41 = vector.shape_cast %40 : vector<1x84x160xbf16> to vector<84x160xbf16>
    %cst_29 = arith.constant dense<0.000000e+00> : vector<160x160xf32>
    %42 = tpu.matmul %39, %41, %cst_29 {dimension_numbers = #tpu.dot_dimension_numbers<[1], [0], [0], [1], [0, 0, 1, 1], [], []>} : vector<160x84xbf16>, vector<84x160xbf16>, vector<160x160xf32> -> vector<160x160xf32>
    %43 = arith.addf %38, %42 : vector<160x160xf32>
    %c0_30 = arith.constant 0 : index
    %c0_31 = arith.constant 0 : index
    %44 = vector.load %arg5[%c0_30, %c0_31] : memref<1x160xf32, #tpu.memory_space<vmem>>, vector<1x160xf32>
    %45 = vector.broadcast %44 : vector<1x160xf32> to vector<160x160xf32>
    %46 = arith.addf %43, %45 : vector<160x160xf32>
    %cst_32 = arith.constant 0.000000e+00 : f32
    %47 = vector.broadcast %cst_32 : f32 to vector<160x160xf32>
    %48 = arith.maximumf %46, %47 : vector<160x160xf32>
    %49 = arith.truncf %48 : vector<160x160xf32> to vector<160x160xbf16>
    %c0_33 = arith.constant 0 : index
    %c0_34 = arith.constant 0 : index
    %c0_35 = arith.constant 0 : index
    %50 = vector.load %arg11[%c0_33, %c0_34, %c0_35] : memref<2x160x80xbf16, #tpu.memory_space<vmem>>, vector<1x160x80xbf16>
    %51 = vector.shape_cast %50 : vector<1x160x80xbf16> to vector<160x80xbf16>
    %cst_36 = arith.constant dense<0.000000e+00> : vector<160x80xf32>
    %52 = tpu.matmul %49, %51, %cst_36 {dimension_numbers = #tpu.dot_dimension_numbers<[1], [0], [0], [1], [0, 0, 1, 1], [], []>} : vector<160x160xbf16>, vector<160x80xbf16>, vector<160x80xf32> -> vector<160x80xf32>
    %c1_37 = arith.constant 1 : index
    %c0_38 = arith.constant 0 : index
    %c0_39 = arith.constant 0 : index
    %53 = vector.load %arg11[%c1_37, %c0_38, %c0_39] : memref<2x160x80xbf16, #tpu.memory_space<vmem>>, vector<1x160x80xbf16>
    %54 = vector.shape_cast %53 : vector<1x160x80xbf16> to vector<160x80xbf16>
    %cst_40 = arith.constant dense<0.000000e+00> : vector<160x80xf32>
    %55 = tpu.matmul %49, %54, %cst_40 {dimension_numbers = #tpu.dot_dimension_numbers<[1], [0], [0], [1], [0, 0, 1, 1], [], []>} : vector<160x160xbf16>, vector<160x80xbf16>, vector<160x80xf32> -> vector<160x80xf32>
    %56 = arith.maximumf %52, %55 : vector<160x80xf32>
    %57 = vector.extract_strided_slice %56 {offsets = [0, 0], sizes = [16, 80], strides = [1, 1]} : vector<160x80xf32> to vector<16x80xf32>
    %58 = vector.extract_strided_slice %56 {offsets = [16, 0], sizes = [16, 80], strides = [1, 1]} : vector<160x80xf32> to vector<16x80xf32>
    %59 = arith.maximumf %57, %58 : vector<16x80xf32>
    %60 = arith.truncf %59 : vector<16x80xf32> to vector<16x80xbf16>
    %c0_41 = arith.constant 0 : index
    %c0_42 = arith.constant 0 : index
    %c0_43 = arith.constant 0 : index
    %61 = vector.load %arg6[%c0_41, %c0_42, %c0_43] : memref<5x80x120xbf16, #tpu.memory_space<vmem>>, vector<1x80x120xbf16>
    %62 = vector.shape_cast %61 : vector<1x80x120xbf16> to vector<80x120xbf16>
    %cst_44 = arith.constant dense<0.000000e+00> : vector<16x120xf32>
    %63 = tpu.matmul %60, %62, %cst_44 {dimension_numbers = #tpu.dot_dimension_numbers<[1], [0], [0], [1], [0, 0, 1, 1], [], []>} : vector<16x80xbf16>, vector<80x120xbf16>, vector<16x120xf32> -> vector<16x120xf32>
    %64 = vector.extract_strided_slice %56 {offsets = [32, 0], sizes = [16, 80], strides = [1, 1]} : vector<160x80xf32> to vector<16x80xf32>
    %65 = vector.extract_strided_slice %56 {offsets = [48, 0], sizes = [16, 80], strides = [1, 1]} : vector<160x80xf32> to vector<16x80xf32>
    %66 = arith.maximumf %64, %65 : vector<16x80xf32>
    %67 = arith.truncf %66 : vector<16x80xf32> to vector<16x80xbf16>
    %c1_45 = arith.constant 1 : index
    %c0_46 = arith.constant 0 : index
    %c0_47 = arith.constant 0 : index
    %68 = vector.load %arg6[%c1_45, %c0_46, %c0_47] : memref<5x80x120xbf16, #tpu.memory_space<vmem>>, vector<1x80x120xbf16>
    %69 = vector.shape_cast %68 : vector<1x80x120xbf16> to vector<80x120xbf16>
    %cst_48 = arith.constant dense<0.000000e+00> : vector<16x120xf32>
    %70 = tpu.matmul %67, %69, %cst_48 {dimension_numbers = #tpu.dot_dimension_numbers<[1], [0], [0], [1], [0, 0, 1, 1], [], []>} : vector<16x80xbf16>, vector<80x120xbf16>, vector<16x120xf32> -> vector<16x120xf32>
    %71 = arith.addf %63, %70 : vector<16x120xf32>
    %72 = vector.extract_strided_slice %56 {offsets = [64, 0], sizes = [16, 80], strides = [1, 1]} : vector<160x80xf32> to vector<16x80xf32>
    %73 = vector.extract_strided_slice %56 {offsets = [80, 0], sizes = [16, 80], strides = [1, 1]} : vector<160x80xf32> to vector<16x80xf32>
    %74 = arith.maximumf %72, %73 : vector<16x80xf32>
    %75 = arith.truncf %74 : vector<16x80xf32> to vector<16x80xbf16>
    %c2_49 = arith.constant 2 : index
    %c0_50 = arith.constant 0 : index
    %c0_51 = arith.constant 0 : index
    %76 = vector.load %arg6[%c2_49, %c0_50, %c0_51] : memref<5x80x120xbf16, #tpu.memory_space<vmem>>, vector<1x80x120xbf16>
    %77 = vector.shape_cast %76 : vector<1x80x120xbf16> to vector<80x120xbf16>
    %cst_52 = arith.constant dense<0.000000e+00> : vector<16x120xf32>
    %78 = tpu.matmul %75, %77, %cst_52 {dimension_numbers = #tpu.dot_dimension_numbers<[1], [0], [0], [1], [0, 0, 1, 1], [], []>} : vector<16x80xbf16>, vector<80x120xbf16>, vector<16x120xf32> -> vector<16x120xf32>
    %79 = arith.addf %71, %78 : vector<16x120xf32>
    %80 = vector.extract_strided_slice %56 {offsets = [96, 0], sizes = [16, 80], strides = [1, 1]} : vector<160x80xf32> to vector<16x80xf32>
    %81 = vector.extract_strided_slice %56 {offsets = [112, 0], sizes = [16, 80], strides = [1, 1]} : vector<160x80xf32> to vector<16x80xf32>
    %82 = arith.maximumf %80, %81 : vector<16x80xf32>
    %83 = arith.truncf %82 : vector<16x80xf32> to vector<16x80xbf16>
    %c3_53 = arith.constant 3 : index
    %c0_54 = arith.constant 0 : index
    %c0_55 = arith.constant 0 : index
    %84 = vector.load %arg6[%c3_53, %c0_54, %c0_55] : memref<5x80x120xbf16, #tpu.memory_space<vmem>>, vector<1x80x120xbf16>
    %85 = vector.shape_cast %84 : vector<1x80x120xbf16> to vector<80x120xbf16>
    %cst_56 = arith.constant dense<0.000000e+00> : vector<16x120xf32>
    %86 = tpu.matmul %83, %85, %cst_56 {dimension_numbers = #tpu.dot_dimension_numbers<[1], [0], [0], [1], [0, 0, 1, 1], [], []>} : vector<16x80xbf16>, vector<80x120xbf16>, vector<16x120xf32> -> vector<16x120xf32>
    %87 = arith.addf %79, %86 : vector<16x120xf32>
    %88 = vector.extract_strided_slice %56 {offsets = [128, 0], sizes = [16, 80], strides = [1, 1]} : vector<160x80xf32> to vector<16x80xf32>
    %89 = vector.extract_strided_slice %56 {offsets = [144, 0], sizes = [16, 80], strides = [1, 1]} : vector<160x80xf32> to vector<16x80xf32>
    %90 = arith.maximumf %88, %89 : vector<16x80xf32>
    %91 = arith.truncf %90 : vector<16x80xf32> to vector<16x80xbf16>
    %c4_57 = arith.constant 4 : index
    %c0_58 = arith.constant 0 : index
    %c0_59 = arith.constant 0 : index
    %92 = vector.load %arg6[%c4_57, %c0_58, %c0_59] : memref<5x80x120xbf16, #tpu.memory_space<vmem>>, vector<1x80x120xbf16>
    %93 = vector.shape_cast %92 : vector<1x80x120xbf16> to vector<80x120xbf16>
    %cst_60 = arith.constant dense<0.000000e+00> : vector<16x120xf32>
    %94 = tpu.matmul %91, %93, %cst_60 {dimension_numbers = #tpu.dot_dimension_numbers<[1], [0], [0], [1], [0, 0, 1, 1], [], []>} : vector<16x80xbf16>, vector<80x120xbf16>, vector<16x120xf32> -> vector<16x120xf32>
    %95 = arith.addf %87, %94 : vector<16x120xf32>
    %c0_61 = arith.constant 0 : index
    %c0_62 = arith.constant 0 : index
    %96 = vector.load %arg7[%c0_61, %c0_62] : memref<1x120xf32, #tpu.memory_space<vmem>>, vector<1x120xf32>
    %97 = vector.broadcast %96 : vector<1x120xf32> to vector<16x120xf32>
    %98 = arith.addf %95, %97 : vector<16x120xf32>
    %cst_63 = arith.constant 0.000000e+00 : f32
    %99 = vector.broadcast %cst_63 : f32 to vector<16x120xf32>
    %100 = arith.maximumf %98, %99 : vector<16x120xf32>
    %101 = arith.truncf %100 : vector<16x120xf32> to vector<16x120xbf16>
    %c0_64 = arith.constant 0 : index
    %c0_65 = arith.constant 0 : index
    %102 = vector.load %arg8[%c0_64, %c0_65] : memref<120x128xbf16, #tpu.memory_space<vmem>>, vector<120x128xbf16>
    %cst_66 = arith.constant dense<0.000000e+00> : vector<16x128xf32>
    %103 = tpu.matmul %101, %102, %cst_66 {dimension_numbers = #tpu.dot_dimension_numbers<[1], [0], [0], [1], [0, 0, 1, 1], [], []>} : vector<16x120xbf16>, vector<120x128xbf16>, vector<16x128xf32> -> vector<16x128xf32>
    %c0_67 = arith.constant 0 : index
    %c0_68 = arith.constant 0 : index
    %104 = vector.load %arg9[%c0_67, %c0_68] : memref<1x128xf32, #tpu.memory_space<vmem>>, vector<1x128xf32>
    %105 = vector.broadcast %104 : vector<1x128xf32> to vector<16x128xf32>
    %106 = arith.addf %103, %105 : vector<16x128xf32>
    %c0_69 = arith.constant 0 : index
    %c0_70 = arith.constant 0 : index
    %107 = vector.load %arg12[%c0_69, %c0_70] : memref<16x128xf32, #tpu.memory_space<vmem>>, vector<16x128xf32>
    tpu.vector_store %arg12[%c0_69, %c0_70], %106 {strides = array<i32>} : memref<16x128xf32, #tpu.memory_space<vmem>>, vector<16x128xf32>,
    return
  }
  func.func @transform_0(%arg0: i32) -> (i32, i32) {
    %c0_i32 = arith.constant 0 : i32
    %c0_i32_0 = arith.constant 0 : i32
    return %arg0, %c0_i32 : i32, i32
  }
  func.func @transform_1(%arg0: i32) -> (i32, i32) {
    %c0_i32 = arith.constant 0 : i32
    %c0_i32_0 = arith.constant 0 : i32
    %c0_i32_1 = arith.constant 0 : i32
    return %c0_i32, %c0_i32_0 : i32, i32
  }
  func.func @transform_2(%arg0: i32) -> (i32, i32) {
    %c0_i32 = arith.constant 0 : i32
    %c0_i32_0 = arith.constant 0 : i32
    %c0_i32_1 = arith.constant 0 : i32
    return %c0_i32, %c0_i32_0 : i32, i32
  }
  func.func @transform_3(%arg0: i32) -> (i32, i32, i32) {
    %c0_i32 = arith.constant 0 : i32
    %c0_i32_0 = arith.constant 0 : i32
    %c0_i32_1 = arith.constant 0 : i32
    %c0_i32_2 = arith.constant 0 : i32
    return %c0_i32, %c0_i32_0, %c0_i32_1 : i32, i32, i32
  }
  func.func @transform_4(%arg0: i32) -> (i32, i32) {
    %c0_i32 = arith.constant 0 : i32
    %c0_i32_0 = arith.constant 0 : i32
    %c0_i32_1 = arith.constant 0 : i32
    return %c0_i32, %c0_i32_0 : i32, i32
  }
  func.func @transform_5(%arg0: i32) -> (i32, i32, i32) {
    %c0_i32 = arith.constant 0 : i32
    %c0_i32_0 = arith.constant 0 : i32
    %c0_i32_1 = arith.constant 0 : i32
    %c0_i32_2 = arith.constant 0 : i32
    return %c0_i32, %c0_i32_0, %c0_i32_1 : i32, i32, i32
  }
  func.func @transform_6(%arg0: i32) -> (i32, i32) {
    %c0_i32 = arith.constant 0 : i32
    %c0_i32_0 = arith.constant 0 : i32
    %c0_i32_1 = arith.constant 0 : i32
    return %c0_i32, %c0_i32_0 : i32, i32
  }
  func.func @transform_7(%arg0: i32) -> (i32, i32) {
    %c0_i32 = arith.constant 0 : i32
    %c0_i32_0 = arith.constant 0 : i32
    %c0_i32_1 = arith.constant 0 : i32
    return %c0_i32, %c0_i32_0 : i32, i32
  }
  func.func @transform_8(%arg0: i32) -> (i32, i32) {
    %c0_i32 = arith.constant 0 : i32
    %c0_i32_0 = arith.constant 0 : i32
    %c0_i32_1 = arith.constant 0 : i32
    return %c0_i32, %c0_i32_0 : i32, i32
  }
  func.func @transform_9(%arg0: i32) -> (i32, i32, i32) {
    %c0_i32 = arith.constant 0 : i32
    %c0_i32_0 = arith.constant 0 : i32
    %c0_i32_1 = arith.constant 0 : i32
    %c0_i32_2 = arith.constant 0 : i32
    return %c0_i32, %c0_i32_0, %c0_i32_1 : i32, i32, i32
  }
  func.func @transform_10(%arg0: i32) -> (i32, i32, i32) {
    %c0_i32 = arith.constant 0 : i32
    %c0_i32_0 = arith.constant 0 : i32
    %c0_i32_1 = arith.constant 0 : i32
    %c0_i32_2 = arith.constant 0 : i32
    return %c0_i32, %c0_i32_0, %c0_i32_1 : i32, i32, i32
  }
  func.func @transform_11(%arg0: i32) -> (i32, i32) {
    %c0_i32 = arith.constant 0 : i32
    %c0_i32_0 = arith.constant 0 : i32
    return %arg0, %c0_i32 : i32, i32
  }
}

</mosaic_0001>

<llo_original>
// kernel: tile.13
$region0: #{tile.13}
  #allocation0 [shape = 's32[1]{0}', space=sflag, size = 0x4, scoped, tag = 'scoped memory for tile.13']
  %s0 = inlined_call_operand.vmem [shape: f32[6], index: 0, kind: input, shape index: {}]
  %s1 = inlined_call_operand.vmem [shape: f32[28,6], index: 1, kind: output, shape index: {}]
  // Predicated region
  $region2: #{tile.13} parent=0 // pred_check
    _
  $region3: #{tile.13} parent=0 // pred_check_branch
    %3 = sbr.rel (0) target = $region5
  $region4: #{tile.13} parent=0 // pred_region
    _
  $region5: #{tile.13} parent=0 // pred_fallthru
    _
  %v4 = vld [vmem:[%s0] ss:$0 sm:$0xff]
  %5 = vst [vmem:[%s1] sm:$0xff] %v4
  %s6 = scalar_lea.vmem %s1, 8
  %7 = vst [vmem:[%s6] sm:$0xff] %v4
  %s8 = scalar_lea.vmem %s1, 16
  %9 = vst [vmem:[%s8] sm:$0xff] %v4
  %s10 = scalar_lea.vmem %s1, 24
  %11 = vst [vmem:[%s10] sm:$0xff] %v4

// kernel: tile.14
$region0: #{tile.14}
  %s0 = inlined_call_operand.vmem [shape: f32[28,6], index: 0, kind: input, shape index: {}]
  %s1 = inlined_call_operand.vmem [shape: f32[1,168], index: 1, kind: output, shape index: {}]
  $region1: #{tile.14} parent=0
    #allocation0 [shape = 'u8[8192]{0}', space=vmem, size = 0x2000, scoped, tag = 'scoped mem for output reshape']
    %v2 = vld [vmem:[%s0] sm:$0x1]
    %vm3 = vcmask 48128
    %4 = vst.msk [vmem:[#allocation0] sm:$0x1] %vm3, %v2
    %s5 = scalar_lea.vmem %s0, 21
    %v6 = vld [vmem:[%s5] sm:$0x1]
    %s7 = scalar_lea.vmem %s0, 21
    %v8 = vld [vmem:[%s7] sm:$0x1]
    %vm9 = vcmask 15360
    %v10 = vsel %vm9, %v8, %v6
    %11 = vrot.lane.b32.xlu0 %v10, 126
    %v12 = vpop.permute.xlu0 %11
    %vm13 = vcmask 31744
    %s14 = scalar_lea.vmem [#allocation0], 8
    %15 = vst.msk [vmem:[%s14] sm:$0x1] %vm13, %v12
    %vm16 = vcmask 1048560
    %17 = vst.msk [vmem:[#allocation0] sm:$0x1] %vm16, %v12
    %s18 = scalar_lea.vmem %s0, 20
    %v19 = vld [vmem:[%s18] sm:$0x1]
    %20 = vrot.lane.b32.xlu0 %v19, 120
    %v21 = vpop.permute.xlu0 %20
    %vm22 = vcmask 1032128
    %23 = vst.msk [vmem:[#allocation0] sm:$0x1] %vm22, %v21
    %s24 = scalar_lea.vmem %s0, 19
    %v25 = vld [vmem:[%s24] sm:$0x1]
    %26 = vrot.lane.b32.xlu0 %v25, 114
    %v27 = vpop.permute.xlu0 %26
    %vm28 = vcmask 982928
    %29 = vst.msk [vmem:[#allocation0] sm:$0x1] %vm28, %v27
    %s30 = scalar_lea.vmem %s0, 18
    %v31 = vld [vmem:[%s30] sm:$0x1]
    %32 = vrot.lane.b32.xlu0 %v31, 108
    %v33 = vpop.permute.xlu0 %32
    %vm34 = vcmask 933728
    %35 = vst.msk [vmem:[#allocation0] sm:$0x1] %vm34, %v33
    %s36 = scalar_lea.vmem %s0, 17
    %v37 = vld [vmem:[%s36] sm:$0x1]
    %38 = vrot.lane.b32.xlu0 %v37, 102
    %v39 = vpop.permute.xlu0 %38
    %vm40 = vcmask 884528
    %41 = vst.msk [vmem:[#allocation0] sm:$0x1] %vm40, %v39
    %s42 = scalar_lea.vmem %s0, 16
    %v43 = vld [vmem:[%s42] sm:$0x1]
    %44 = vrot.lane.b32.xlu0 %v43, 96
    %v45 = vpop.permute.xlu0 %44
    %vm46 = vcmask 835328
    %47 = vst.msk [vmem:[#allocation0] sm:$0x1] %vm46, %v45
    %s48 = scalar_lea.vmem %s0, 15
    %v49 = vld [vmem:[%s48] sm:$0x1]
    %50 = vrot.lane.b32.xlu0 %v49, 90
    %v51 = vpop.permute.xlu0 %50
    %vm52 = vcmask 786128
    %53 = vst.msk [vmem:[#allocation0] sm:$0x1] %vm52, %v51
    %s54 = scalar_lea.vmem %s0, 14
    %v55 = vld [vmem:[%s54] sm:$0x1]
    %56 = vrot.lane.b32.xlu0 %v55, 84
    %v57 = vpop.permute.xlu0 %56
    %vm58 = vcmask 736928
    %59 = vst.msk [vmem:[#allocation0] sm:$0x1] %vm58, %v57
    %s60 = scalar_lea.vmem %s0, 13
    %v61 = vld [vmem:[%s60] sm:$0x1]
    %62 = vrot.lane.b32.xlu0 %v61, 78
    %v63 = vpop.permute.xlu0 %62
    %vm64 = vcmask 687728
    %65 = vst.msk [vmem:[#allocation0] sm:$0x1] %vm64, %v63
    %s66 = scalar_lea.vmem %s0, 12
    %v67 = vld [vmem:[%s66] sm:$0x1]
    %68 = vrot.lane.b32.xlu0 %v67, 72
    %v69 = vpop.permute.xlu0 %68
    %vm70 = vcmask 638528
    %71 = vst.msk [vmem:[#allocation0] sm:$0x1] %vm70, %v69
    %s72 = scalar_lea.vmem %s0, 11
    %v73 = vld [vmem:[%s72] sm:$0x1]
    %74 = vrot.lane.b32.xlu0 %v73, 66
    %v75 = vpop.permute.xlu0 %74
    %vm76 = vcmask 589328
    %77 = vst.msk [vmem:[#allocation0] sm:$0x1] %vm76, %v75
    %s78 = scalar_lea.vmem %s0, 10
    %v79 = vld [vmem:[%s78] sm:$0x1]
    %80 = vrot.lane.b32.xlu0 %v79, 60
    %v81 = vpop.permute.xlu0 %80
    %vm82 = vcmask 540128
    %83 = vst.msk [vmem:[#allocation0] sm:$0x1] %vm82, %v81
    %s84 = scalar_lea.vmem %s0, 9
    %v85 = vld [vmem:[%s84] sm:$0x1]
    %86 = vrot.lane.b32.xlu0 %v85, 54
    %v87 = vpop.permute.xlu0 %86
    %vm88 = vcmask 490928
    %89 = vst.msk [vmem:[#allocation0] sm:$0x1] %vm88, %v87
    %s90 = scalar_lea.vmem %s0, 8
    %v91 = vld [vmem:[%s90] sm:$0x1]
    %92 = vrot.lane.b32.xlu0 %v91, 48
    %v93 = vpop.permute.xlu0 %92
    %vm94 = vcmask 441728
    %95 = vst.msk [vmem:[#allocation0] sm:$0x1] %vm94, %v93
    %s96 = scalar_lea.vmem %s0, 7
    %v97 = vld [vmem:[%s96] sm:$0x1]
    %98 = vrot.lane.b32.xlu0 %v97, 42
    %v99 = vpop.permute.xlu0 %98
    %vm100 = vcmask 392528
    %101 = vst.msk [vmem:[#allocation0] sm:$0x1] %vm100, %v99
    %s102 = scalar_lea.vmem %s0, 6
    %v103 = vld [vmem:[%s102] sm:$0x1]
    %104 = vrot.lane.b32.xlu0 %v103, 36
    %v105 = vpop.permute.xlu0 %104
    %vm106 = vcmask 343328
    %107 = vst.msk [vmem:[#allocation0] sm:$0x1] %vm106, %v105
    %s108 = scalar_lea.vmem %s0, 27
    %v109 = vld [vmem:[%s108] sm:$0x1]
    %110 = vrot.lane.b32.xlu0 %v109, 34
    %v111 = vpop.permute.xlu0 %110
    %vm112 = vcmask 326928
    %s113 = scalar_lea.vmem [#allocation0], 8
    %114 = vst.msk [vmem:[%s113] sm:$0x1] %vm112, %v111
    %s115 = scalar_lea.vmem %s0, 5
    %v116 = vld [vmem:[%s115] sm:$0x1]
    %117 = vrot.lane.b32.xlu0 %v116, 30
    %v118 = vpop.permute.xlu0 %117
    %vm119 = vcmask 294128
    %120 = vst.msk [vmem:[#allocation0] sm:$0x1] %vm119, %v118
    %s121 = scalar_lea.vmem %s0, 26
    %v122 = vld [vmem:[%s121] sm:$0x1]
    %123 = vrot.lane.b32.xlu0 %v122, 28
    %v124 = vpop.permute.xlu0 %123
    %vm125 = vcmask 277728
    %s126 = scalar_lea.vmem [#allocation0], 8
    %127 = vst.msk [vmem:[%s126] sm:$0x1] %vm125, %v124
    %s128 = scalar_lea.vmem %s0, 4
    %v129 = vld [vmem:[%s128] sm:$0x1]
    %130 = vrot.lane.b32.xlu0 %v129, 24
    %v131 = vpop.permute.xlu0 %130
    %vm132 = vcmask 244928
    %133 = vst.msk [vmem:[#allocation0] sm:$0x1] %vm132, %v131
    %s134 = scalar_lea.vmem %s0, 25
    %v135 = vld [vmem:[%s134] sm:$0x1]
    %136 = vrot.lane.b32.xlu0 %v135, 22
    %v137 = vpop.permute.xlu0 %136
    %vm138 = vcmask 228528
    %s139 = scalar_lea.vmem [#allocation0], 8
    %140 = vst.msk [vmem:[%s139] sm:$0x1] %vm138, %v137
    %s141 = scalar_lea.vmem %s0, 3
    %v142 = vld [vmem:[%s141] sm:$0x1]
    %143 = vrot.lane.b32.xlu0 %v142, 18
    %v144 = vpop.permute.xlu0 %143
    %vm145 = vcmask 195728
    %146 = vst.msk [vmem:[#allocation0] sm:$0x1] %vm145, %v144
    %s147 = scalar_lea.vmem %s0, 24
    %v148 = vld [vmem:[%s147] sm:$0x1]
    %149 = vrot.lane.b32.xlu0 %v148, 16
    %v150 = vpop.permute.xlu0 %149
    %vm151 = vcmask 179328
    %s152 = scalar_lea.vmem [#allocation0], 8
    %153 = vst.msk [vmem:[%s152] sm:$0x1] %vm151, %v150
    %s154 = scalar_lea.vmem %s0, 2
    %v155 = vld [vmem:[%s154] sm:$0x1]
    %156 = vrot.lane.b32.xlu0 %v155, 12
    %v157 = vpop.permute.xlu0 %156
    %vm158 = vcmask 146528
    %159 = vst.msk [vmem:[#allocation0] sm:$0x1] %vm158, %v157
    %s160 = scalar_lea.vmem %s0, 23
    %v161 = vld [vmem:[%s160] sm:$0x1]
    %162 = vrot.lane.b32.xlu0 %v161, 10
    %v163 = vpop.permute.xlu0 %162
    %vm164 = vcmask 130128
    %s165 = scalar_lea.vmem [#allocation0], 8
    %166 = vst.msk [vmem:[%s165] sm:$0x1] %vm164, %v163
    %s167 = scalar_lea.vmem %s0, 1
    %v168 = vld [vmem:[%s167] sm:$0x1]
    %169 = vrot.lane.b32.xlu0 %v168, 6
    %v170 = vpop.permute.xlu0 %169
    %vm171 = vcmask 97328
    %172 = vst.msk [vmem:[#allocation0] sm:$0x1] %vm171, %v170
    %s173 = scalar_lea.vmem %s0, 22
    %v174 = vld [vmem:[%s173] sm:$0x1]
    %175 = vrot.lane.b32.xlu0 %v174, 4
    %v176 = vpop.permute.xlu0 %175
    %vm177 = vcmask 80928
    %s178 = scalar_lea.vmem [#allocation0], 8
    %179 = vst.msk [vmem:[%s178] sm:$0x1] %vm177, %v176
    %s181 = sshll.u32 1, 1
    %s182 = ssub.s32 %s181, 1
    %v184 = vld [vmem:[#allocation0] sm:%s182]
    %s185 = sshll.u32 1, 1
    %s186 = ssub.s32 %s185, 1
    %187 = vst [vmem:[%s1] sm:%s186] %v184
    %s188 = scalar_lea.vmem [#allocation0], 8
    %v189 = vld [vmem:[%s188] sm:%s182]
    %s190 = sshll.u32 1, 1
    %s191 = ssub.s32 %s190, 1
    %s192 = scalar_lea.vmem %s1, 1
    %193 = vst [vmem:[%s192] sm:%s191] %v189

// kernel: tile.18
$region0: #{tile.18}
  #allocation0 [shape = 's32[1]{0}', space=sflag, size = 0x4, scoped, tag = 'scoped memory for tile.18']
  %s0 = inlined_call_operand.vmem [shape: f32[16], index: 0, kind: input, shape index: {}]
  %s1 = inlined_call_operand.vmem [shape: f32[10,16], index: 1, kind: output, shape index: {}]
  // Predicated region
  $region2: #{tile.18} parent=0 // pred_check
    _
  $region3: #{tile.18} parent=0 // pred_check_branch
    %3 = sbr.rel (0) target = $region5
  $region4: #{tile.18} parent=0 // pred_region
    _
  $region5: #{tile.18} parent=0 // pred_fallthru
    _
  %v4 = vld [vmem:[%s0] ss:$0 sm:$0xff]
  %5 = vst [vmem:[%s1] sm:$0xff] %v4
  %s6 = scalar_lea.vmem %s1, 8
  %7 = vst [vmem:[%s6] sm:$0xff] %v4

// kernel: tile.19
$region0: #{tile.19}
  %s0 = inlined_call_operand.vmem [shape: f32[10,16], index: 0, kind: input, shape index: {}]
  %s1 = inlined_call_operand.vmem [shape: f32[1,160], index: 1, kind: output, shape index: {}]
  $region1: #{tile.19} parent=0
    #allocation0 [shape = 'u8[8192]{0}', space=vmem, size = 0x2000, scoped, tag = 'scoped mem for output reshape']
    %s2 = smov 3
    %v3 = vld [vmem:[%s0] ss:$8 sm:%s2]
    %vm4 = vcmask 130048
    %5 = vst.msk [vmem:[#allocation0] ss:$8 sm:$0x3] %vm4, %v3
    %s6 = scalar_lea.vmem %s0, 7
    %v7 = vld [vmem:[%s6] sm:$0x1]
    %8 = vrot.lane.b32.xlu0 %v7, 112
    %v9 = vpop.permute.xlu0 %8
    %vm10 = vcmask 1048448
    %11 = vst.msk [vmem:[#allocation0] sm:$0x1] %vm10, %v9
    %s12 = scalar_lea.vmem %s0, 6
    %v13 = vld [vmem:[%s12] sm:$0x1]
    %14 = vrot.lane.b32.xlu0 %v13, 96
    %v15 = vpop.permute.xlu0 %14
    %vm16 = vcmask 917248
    %17 = vst.msk [vmem:[#allocation0] sm:$0x1] %vm16, %v15
    %s18 = scalar_lea.vmem %s0, 5
    %v19 = vld [vmem:[%s18] sm:$0x1]
    %20 = vrot.lane.b32.xlu0 %v19, 80
    %v21 = vpop.permute.xlu0 %20
    %vm22 = vcmask 786048
    %23 = vst.msk [vmem:[#allocation0] sm:$0x1] %vm22, %v21
    %s24 = scalar_lea.vmem %s0, 4
    %v25 = vld [vmem:[%s24] sm:$0x1]
    %26 = vrot.lane.b32.xlu0 %v25, 64
    %v27 = vpop.permute.xlu0 %26
    %vm28 = vcmask 654848
    %29 = vst.msk [vmem:[#allocation0] sm:$0x1] %vm28, %v27
    %s30 = scalar_lea.vmem %s0, 3
    %v31 = vld [vmem:[%s30] sm:$0x1]
    %32 = vrot.lane.b32.xlu0 %v31, 48
    %v33 = vpop.permute.xlu0 %32
    %vm34 = vcmask 523648
    %35 = vst.msk [vmem:[#allocation0] sm:$0x1] %vm34, %v33
    %s36 = scalar_lea.vmem %s0, 2
    %v37 = vld [vmem:[%s36] sm:$0x1]
    %38 = vrot.lane.b32.xlu0 %v37, 32
    %v39 = vpop.permute.xlu0 %38
    %vm40 = vcmask 392448
    %41 = vst.msk [vmem:[#allocation0] sm:$0x1] %vm40, %v39
    %s42 = scalar_lea.vmem %s0, 1
    %s43 = smov 3
    %v44 = vld [vmem:[%s42] ss:$8 sm:%s43]
    %45 = vrot.lane.b32.xlu0 %v44, 16
    %v46 = vpop.permute.xlu0 %45
    %vm47 = vcmask 261248
    %48 = vst.msk [vmem:[#allocation0] ss:$8 sm:$0x3] %vm47, %v46
    %s50 = sshll.u32 1, 1
    %s51 = ssub.s32 %s50, 1
    %v53 = vld [vmem:[#allocation0] sm:%s51]
    %s54 = sshll.u32 1, 1
    %s55 = ssub.s32 %s54, 1
    %56 = vst [vmem:[%s1] sm:%s55] %v53
    %s57 = scalar_lea.vmem [#allocation0], 8
    %v58 = vld [vmem:[%s57] sm:%s51]
    %s59 = sshll.u32 1, 1
    %s60 = ssub.s32 %s59, 1
    %s61 = scalar_lea.vmem %s1, 1
    %62 = vst [vmem:[%s61] sm:%s60] %v58

// kernel: lenet_forward_pallas.1
$region0: #{lenet_forward_pallas.1}
  #allocation0 [shape = 'u32[]', space=smem, size = 0x4, offset = 0x4, fixed_abs, tag = 'smem constant byte address 0x4 - core index']
  #allocation1 [shape = 'u32[144,128]{1,0:T(1,128)}', space=vmem, size = 0x12000, scoped, tag = 'internal scratch']
  %s0 = inlined_call_operand.vmem [shape: bf16[448,480], index: 0, kind: input, shape index: {}]
  %s1 = inlined_call_operand.vmem [shape: bf16[480,168], index: 1, kind: input, shape index: {}]
  %s2 = inlined_call_operand.vmem [shape: f32[1,168], index: 2, kind: input, shape index: {}]
  %s3 = inlined_call_operand.vmem [shape: bf16[5,84,160], index: 3, kind: input, shape index: {}]
  %s4 = inlined_call_operand.vmem [shape: f32[1,160], index: 4, kind: input, shape index: {}]
  %s5 = inlined_call_operand.vmem [shape: bf16[5,80,120], index: 5, kind: input, shape index: {}]
  %s6 = inlined_call_operand.vmem [shape: f32[1,120], index: 6, kind: input, shape index: {}]
  %s7 = inlined_call_operand.vmem [shape: bf16[120,128], index: 7, kind: input, shape index: {}]
  %s8 = inlined_call_operand.vmem [shape: f32[1,128], index: 8, kind: input, shape index: {}]
  %s9 = inlined_call_operand.vmem [shape: bf16[2,168,84], index: 9, kind: input, shape index: {}]
  %s10 = inlined_call_operand.vmem [shape: bf16[2,160,80], index: 10, kind: input, shape index: {}]
  %s11 = inlined_call_operand.vmem [shape: f32[16,128], index: 11, kind: output, shape index: {}]
  %s12 = sld [smem:[#allocation0]]
  $region54: #{lenet_forward_pallas.1} parent=0
    _
  %s14 = ssub.s32 1, %s12
  %s15 = scalar_select 0, %s14, %s12
  // Predicated region
  $region2: #{lenet_forward_pallas.1} parent=0 // pred_check
    _
  $region3: #{lenet_forward_pallas.1} parent=0 // pred_check_branch
    %17 = sbr.rel (0) target = $region5
  $region4: #{lenet_forward_pallas.1} parent=0 // pred_region
    _
  $region5: #{lenet_forward_pallas.1} parent=0 // pred_fallthru
    _
  // Predicated region
  $region6: #{lenet_forward_pallas.1} parent=0 // pred_check
    _
  $region7: #{lenet_forward_pallas.1} parent=0 // pred_check_branch
    %19 = sbr.rel (0) target = $region9
  $region8: #{lenet_forward_pallas.1} parent=0 // pred_region
    _
  $region9: #{lenet_forward_pallas.1} parent=0 // pred_fallthru
    _
  // Predicated region
  $region10: #{lenet_forward_pallas.1} parent=0 // pred_check
    _
  $region11: #{lenet_forward_pallas.1} parent=0 // pred_check_branch
    %21 = sbr.rel (0) target = $region13
  $region12: #{lenet_forward_pallas.1} parent=0 // pred_region
    _
  $region13: #{lenet_forward_pallas.1} parent=0 // pred_fallthru
    _
  // Predicated region
  $region14: #{lenet_forward_pallas.1} parent=0 // pred_check
    _
  $region15: #{lenet_forward_pallas.1} parent=0 // pred_check_branch
    %23 = sbr.rel (0) target = $region17
  $region16: #{lenet_forward_pallas.1} parent=0 // pred_region
    _
  $region17: #{lenet_forward_pallas.1} parent=0 // pred_fallthru
    _
  // Predicated region
  $region18: #{lenet_forward_pallas.1} parent=0 // pred_check
    _
  $region19: #{lenet_forward_pallas.1} parent=0 // pred_check_branch
    %25 = sbr.rel (0) target = $region21
  $region20: #{lenet_forward_pallas.1} parent=0 // pred_region
    _
  $region21: #{lenet_forward_pallas.1} parent=0 // pred_fallthru
    _
  // Predicated region
  $region22: #{lenet_forward_pallas.1} parent=0 // pred_check
    _
  $region23: #{lenet_forward_pallas.1} parent=0 // pred_check_branch
    %27 = sbr.rel (0) target = $region25
  $region24: #{lenet_forward_pallas.1} parent=0 // pred_region
    _
  $region25: #{lenet_forward_pallas.1} parent=0 // pred_fallthru
    _
  // Predicated region
  $region26: #{lenet_forward_pallas.1} parent=0 // pred_check
    _
  $region27: #{lenet_forward_pallas.1} parent=0 // pred_check_branch
    %29 = sbr.rel (0) target = $region29
  $region28: #{lenet_forward_pallas.1} parent=0 // pred_region
    _
  $region29: #{lenet_forward_pallas.1} parent=0 // pred_fallthru
    _
  // Predicated region
  $region30: #{lenet_forward_pallas.1} parent=0 // pred_check
    _
  $region31: #{lenet_forward_pallas.1} parent=0 // pred_check_branch
    %31 = sbr.rel (0) target = $region33
  $region32: #{lenet_forward_pallas.1} parent=0 // pred_region
    _
  $region33: #{lenet_forward_pallas.1} parent=0 // pred_fallthru
    _
  // Predicated region
  $region34: #{lenet_forward_pallas.1} parent=0 // pred_check
    _
  $region35: #{lenet_forward_pallas.1} parent=0 // pred_check_branch
    %33 = sbr.rel (0) target = $region37
  $region36: #{lenet_forward_pallas.1} parent=0 // pred_region
    _
  $region37: #{lenet_forward_pallas.1} parent=0 // pred_fallthru
    _
  // Predicated region
  $region38: #{lenet_forward_pallas.1} parent=0 // pred_check
    _
  $region39: #{lenet_forward_pallas.1} parent=0 // pred_check_branch
    %35 = sbr.rel (0) target = $region41
  $region40: #{lenet_forward_pallas.1} parent=0 // pred_region
    _
  $region41: #{lenet_forward_pallas.1} parent=0 // pred_fallthru
    _
  // Predicated region
  $region42: #{lenet_forward_pallas.1} parent=0 // pred_check
    _
  $region43: #{lenet_forward_pallas.1} parent=0 // pred_check_branch
    %37 = sbr.rel (0) target = $region45
  $region44: #{lenet_forward_pallas.1} parent=0 // pred_region
    _
  $region45: #{lenet_forward_pallas.1} parent=0 // pred_fallthru
    _
  %v39 = vld [vmem:[%s0] sm:$0xff]
  %v40 = vld [vmem:[%s0 + $0x8] sm:$0xff]
  %v41 = vld [vmem:[%s0 + $0x10] sm:$0xff]
  %v42 = vld [vmem:[%s0 + $0x18] sm:$0xff]
  %v43 = vld [vmem:[%s0 + $0x20] sm:$0xff]
  %v44 = vld [vmem:[%s0 + $0x28] sm:$0xff]
  %v45 = vld [vmem:[%s0 + $0x30] sm:$0xff]
  %v46 = vld [vmem:[%s0 + $0x38] sm:$0xff]
  %v47 = vld [vmem:[%s0 + $0x40] sm:$0xff]
  %v48 = vld [vmem:[%s0 + $0x48] sm:$0xff]
  %v49 = vld [vmem:[%s0 + $0x50] sm:$0xff]
  %v50 = vld [vmem:[%s0 + $0x58] sm:$0xff]
  %v51 = vld [vmem:[%s0 + $0x60] sm:$0xff]
  %v52 = vld [vmem:[%s0 + $0x68] sm:$0xff]
  %v53 = vld [vmem:[%s0 + $0x70] sm:$0xff]
  %v54 = vld [vmem:[%s0 + $0x78] sm:$0xff]
  %v55 = vld [vmem:[%s0 + $0x80] sm:$0xff]
  %v56 = vld [vmem:[%s0 + $0x88] sm:$0xff]
  %v57 = vld [vmem:[%s0 + $0x90] sm:$0xff]
  %v58 = vld [vmem:[%s0 + $0x98] sm:$0xff]
  %v59 = vld [vmem:[%s0 + $0xa0] sm:$0xff]
  %v60 = vld [vmem:[%s0 + $0xa8] sm:$0xff]
  %v61 = vld [vmem:[%s0 + $0xb0] sm:$0xff]
  %v62 = vld [vmem:[%s0 + $0xb8] sm:$0xff]
  %v63 = vld [vmem:[%s0 + $0xc0] sm:$0xff]
  %v64 = vld [vmem:[%s0 + $0xc8] sm:$0xff]
  %v65 = vld [vmem:[%s0 + $0xd0] sm:$0xff]
  %v66 = vld [vmem:[%s0 + $0xd8] sm:$0xff]
  %v67 = vld [vmem:[%s0 + $0xe0] sm:$0xff]
  %v68 = vld [vmem:[%s0 + $0xe8] sm:$0xff]
  %v69 = vld [vmem:[%s0 + $0xf0] sm:$0xff]
  %v70 = vld [vmem:[%s0 + $0xf8] sm:$0xff]
  %v71 = vld [vmem:[%s0 + $0x100] sm:$0xff]
  %v72 = vld [vmem:[%s0 + $0x108] sm:$0xff]
  %v73 = vld [vmem:[%s0 + $0x110] sm:$0xff]
  %v74 = vld [vmem:[%s0 + $0x118] sm:$0xff]
  %v75 = vld [vmem:[%s0 + $0x120] sm:$0xff]
  %v76 = vld [vmem:[%s0 + $0x128] sm:$0xff]
  %v77 = vld [vmem:[%s0 + $0x130] sm:$0xff]
  %v78 = vld [vmem:[%s0 + $0x138] sm:$0xff]
  %v79 = vld [vmem:[%s0 + $0x140] sm:$0xff]
  %v80 = vld [vmem:[%s0 + $0x148] sm:$0xff]
  %v81 = vld [vmem:[%s0 + $0x150] sm:$0xff]
  %v82 = vld [vmem:[%s0 + $0x158] sm:$0xff]
  %v83 = vld [vmem:[%s0 + $0x160] sm:$0xff]
  %v84 = vld [vmem:[%s0 + $0x168] sm:$0xff]
  %v85 = vld [vmem:[%s0 + $0x170] sm:$0xff]
  %v86 = vld [vmem:[%s0 + $0x178] sm:$0xff]
  %v87 = vld [vmem:[%s0 + $0x180] sm:$0xff]
  %v88 = vld [vmem:[%s0 + $0x188] sm:$0xff]
  %v89 = vld [vmem:[%s0 + $0x190] sm:$0xff]
  %v90 = vld [vmem:[%s0 + $0x198] sm:$0xff]
  %v91 = vld [vmem:[%s0 + $0x1a0] sm:$0xff]
  %v92 = vld [vmem:[%s0 + $0x1a8] sm:$0xff]
  %v93 = vld [vmem:[%s0 + $0x1b0] sm:$0xff]
  %v94 = vld [vmem:[%s0 + $0x1b8] sm:$0xff]
  %v95 = vld [vmem:[%s0 + $0x1c0] sm:$0xff]
  %v96 = vld [vmem:[%s0 + $0x1c8] sm:$0xff]
  %v97 = vld [vmem:[%s0 + $0x1d0] sm:$0xff]
  %v98 = vld [vmem:[%s0 + $0x1d8] sm:$0xff]
  %v99 = vld [vmem:[%s0 + $0x1e0] sm:$0xff]
  %v100 = vld [vmem:[%s0 + $0x1e8] sm:$0xff]
  %v101 = vld [vmem:[%s0 + $0x1f0] sm:$0xff]
  %v102 = vld [vmem:[%s0 + $0x1f8] sm:$0xff]
  %v103 = vld [vmem:[%s0 + $0x200] sm:$0xff]
  %v104 = vld [vmem:[%s0 + $0x208] sm:$0xff]
  %v105 = vld [vmem:[%s0 + $0x210] sm:$0xff]
  %v106 = vld [vmem:[%s0 + $0x218] sm:$0xff]
  %v107 = vld [vmem:[%s0 + $0x220] sm:$0xff]
  %v108 = vld [vmem:[%s0 + $0x228] sm:$0xff]
  %v109 = vld [vmem:[%s0 + $0x230] sm:$0xff]
  %v110 = vld [vmem:[%s0 + $0x238] sm:$0xff]
  %v111 = vld [vmem:[%s0 + $0x240] sm:$0xff]
  %v112 = vld [vmem:[%s0 + $0x248] sm:$0xff]
  %v113 = vld [vmem:[%s0 + $0x250] sm:$0xff]
  %v114 = vld [vmem:[%s0 + $0x258] sm:$0xff]
  %v115 = vld [vmem:[%s0 + $0x260] sm:$0xff]
  %v116 = vld [vmem:[%s0 + $0x268] sm:$0xff]
  %v117 = vld [vmem:[%s0 + $0x270] sm:$0xff]
  %v118 = vld [vmem:[%s0 + $0x278] sm:$0xff]
  %v119 = vld [vmem:[%s0 + $0x280] sm:$0xff]
  %v120 = vld [vmem:[%s0 + $0x288] sm:$0xff]
  %v121 = vld [vmem:[%s0 + $0x290] sm:$0xff]
  %v122 = vld [vmem:[%s0 + $0x298] sm:$0xff]
  %v123 = vld [vmem:[%s0 + $0x2a0] sm:$0xff]
  %v124 = vld [vmem:[%s0 + $0x2a8] sm:$0xff]
  %v125 = vld [vmem:[%s0 + $0x2b0] sm:$0xff]
  %v126 = vld [vmem:[%s0 + $0x2b8] sm:$0xff]
  %v127 = vld [vmem:[%s0 + $0x2c0] sm:$0xff]
  %v128 = vld [vmem:[%s0 + $0x2c8] sm:$0xff]
  %v129 = vld [vmem:[%s0 + $0x2d0] sm:$0xff]
  %v130 = vld [vmem:[%s0 + $0x2d8] sm:$0xff]
  %v131 = vld [vmem:[%s0 + $0x2e0] sm:$0xff]
  %v132 = vld [vmem:[%s0 + $0x2e8] sm:$0xff]
  %v133 = vld [vmem:[%s0 + $0x2f0] sm:$0xff]
  %v134 = vld [vmem:[%s0 + $0x2f8] sm:$0xff]
  %v135 = vld [vmem:[%s0 + $0x300] sm:$0xff]
  %v136 = vld [vmem:[%s0 + $0x308] sm:$0xff]
  %v137 = vld [vmem:[%s0 + $0x310] sm:$0xff]
  %v138 = vld [vmem:[%s0 + $0x318] sm:$0xff]
  %v139 = vld [vmem:[%s0 + $0x320] sm:$0xff]
  %v140 = vld [vmem:[%s0 + $0x328] sm:$0xff]
  %v141 = vld [vmem:[%s0 + $0x330] sm:$0xff]
  %v142 = vld [vmem:[%s0 + $0x338] sm:$0xff]
  %v143 = vld [vmem:[%s0 + $0x340] sm:$0xff]
  %v144 = vld [vmem:[%s0 + $0x348] sm:$0xff]
  %v145 = vld [vmem:[%s0 + $0x350] sm:$0xff]
  %v146 = vld [vmem:[%s0 + $0x358] sm:$0xff]
  %v147 = vld [vmem:[%s0 + $0x360] sm:$0xff]
  %v148 = vld [vmem:[%s0 + $0x368] sm:$0xff]
  %v149 = vld [vmem:[%s0 + $0x370] sm:$0xff]
  %v150 = vld [vmem:[%s0 + $0x378] sm:$0xff]
  %v151 = vld [vmem:[%s1] sm:$0xff]
  %v152 = vld [vmem:[%s1 + $0x8] sm:$0xff]
  %v153 = vld [vmem:[%s1 + $0x10] sm:$0xff]
  %v154 = vld [vmem:[%s1 + $0x18] sm:$0xff]
  %v155 = vld [vmem:[%s1 + $0x20] sm:$0xff]
  %v156 = vld [vmem:[%s1 + $0x28] sm:$0xff]
  %v157 = vld [vmem:[%s1 + $0x30] sm:$0xff]
  %v158 = vld [vmem:[%s1 + $0x38] sm:$0xff]
  %v159 = vld [vmem:[%s1 + $0x40] sm:$0xff]
  %v160 = vld [vmem:[%s1 + $0x48] sm:$0xff]
  %v161 = vld [vmem:[%s1 + $0x50] sm:$0xff]
  %v162 = vld [vmem:[%s1 + $0x58] sm:$0xff]
  %v163 = vld [vmem:[%s1 + $0x60] sm:$0xff]
  %v164 = vld [vmem:[%s1 + $0x68] sm:$0xff]
  %v165 = vld [vmem:[%s1 + $0x70] sm:$0xff]
  %v166 = vld [vmem:[%s1 + $0x78] sm:$0xff]
  %v167 = vld [vmem:[%s1 + $0x80] sm:$0xff]
  %v168 = vld [vmem:[%s1 + $0x88] sm:$0xff]
  %v169 = vld [vmem:[%s1 + $0x90] sm:$0xff]
  %v170 = vld [vmem:[%s1 + $0x98] sm:$0xff]
  %v171 = vld [vmem:[%s1 + $0xa0] sm:$0xff]
  %v172 = vld [vmem:[%s1 + $0xa8] sm:$0xff]
  %v173 = vld [vmem:[%s1 + $0xb0] sm:$0xff]
  %v174 = vld [vmem:[%s1 + $0xb8] sm:$0xff]
  %v175 = vld [vmem:[%s1 + $0xc0] sm:$0xff]
  %v176 = vld [vmem:[%s1 + $0xc8] sm:$0xff]
  %v177 = vld [vmem:[%s1 + $0xd0] sm:$0xff]
  %v178 = vld [vmem:[%s1 + $0xd8] sm:$0xff]
  %v179 = vld [vmem:[%s1 + $0xe0] sm:$0xff]
  %v180 = vld [vmem:[%s1 + $0xe8] sm:$0xff]
  %v181 = vld [vmem:[%s1 + $0xf0] sm:$0xff]
  %v182 = vld [vmem:[%s1 + $0xf8] sm:$0xff]
  %v183 = vld [vmem:[%s1 + $0x100] sm:$0xff]
  %v184 = vld [vmem:[%s1 + $0x108] sm:$0xff]
  %v185 = vld [vmem:[%s1 + $0x110] sm:$0xff]
  %v186 = vld [vmem:[%s1 + $0x118] sm:$0xff]
  %v187 = vld [vmem:[%s1 + $0x120] sm:$0xff]
  %v188 = vld [vmem:[%s1 + $0x128] sm:$0xff]
  %v189 = vld [vmem:[%s1 + $0x130] sm:$0xff]
  %v190 = vld [vmem:[%s1 + $0x138] sm:$0xff]
  %v191 = vld [vmem:[%s1 + $0x140] sm:$0xff]
  %v192 = vld [vmem:[%s1 + $0x148] sm:$0xff]
  %v193 = vld [vmem:[%s1 + $0x150] sm:$0xff]
  %v194 = vld [vmem:[%s1 + $0x158] sm:$0xff]
  %v195 = vld [vmem:[%s1 + $0x160] sm:$0xff]
  %v196 = vld [vmem:[%s1 + $0x168] sm:$0xff]
  %v197 = vld [vmem:[%s1 + $0x170] sm:$0xff]
  %v198 = vld [vmem:[%s1 + $0x178] sm:$0xff]
  %v199 = vld [vmem:[%s1 + $0x180] sm:$0xff]
  %v200 = vld [vmem:[%s1 + $0x188] sm:$0xff]
  %v201 = vld [vmem:[%s1 + $0x190] sm:$0xff]
  %v202 = vld [vmem:[%s1 + $0x198] sm:$0xff]
  %v203 = vld [vmem:[%s1 + $0x1a0] sm:$0xff]
  %v204 = vld [vmem:[%s1 + $0x1a8] sm:$0xff]
  %v205 = vld [vmem:[%s1 + $0x1b0] sm:$0xff]
  %v206 = vld [vmem:[%s1 + $0x1b8] sm:$0xff]
  %v207 = vld [vmem:[%s1 + $0x1c0] sm:$0xff]
  %v208 = vld [vmem:[%s1 + $0x1c8] sm:$0xff]
  %v209 = vld [vmem:[%s1 + $0x1d0] sm:$0xff]
  %v210 = vld [vmem:[%s1 + $0x1d8] sm:$0xff]
  %v211 = vld [vmem:[%s2] sm:$0x3]
  %v213 = vlaneseq
  %v214 = vshrl.u32 %v213, 7
  %v215 = vsub.s32 0, %v214
  %v216 = vrot.slane %v211, %v215
  %v217 = vlaneseq
  %v218 = vshrl.u32 %v217, 7
  %v219 = vsub.s32 1, %v218
  %v220 = vrot.slane %v211, %v219
  %v335 = vunpack.c.l.b16 %v39
  %v336 = vunpack.c.h.b16 %v39
  %v337 = vunpack.c.l.b16 %v40
  %v338 = vunpack.c.h.b16 %v40
  %v339 = vunpack.c.l.b16 %v41
  %v340 = vunpack.c.h.b16 %v41
  %v341 = vunpack.c.l.b16 %v42
  %v342 = vunpack.c.h.b16 %v42
  %v343 = vunpack.c.l.b16 %v43
  %v344 = vunpack.c.h.b16 %v43
  %v345 = vunpack.c.l.b16 %v44
  %v346 = vunpack.c.h.b16 %v44
  %v347 = vunpack.c.l.b16 %v45
  %v348 = vunpack.c.h.b16 %v45
  %v349 = vunpack.c.l.b16 %v46
  %v350 = vunpack.c.h.b16 %v46
  %v351 = vunpack.c.l.b16 %v47
  %v352 = vunpack.c.h.b16 %v47
  %v353 = vunpack.c.l.b16 %v48
  %v354 = vunpack.c.h.b16 %v48
  %v355 = vunpack.c.l.b16 %v49
  %v356 = vunpack.c.h.b16 %v49
  %v357 = vunpack.c.l.b16 %v50
  %v358 = vunpack.c.h.b16 %v50
  %v359 = vunpack.c.l.b16 %v51
  %v360 = vunpack.c.h.b16 %v51
  %v361 = vunpack.c.l.b16 %v52
  %v362 = vunpack.c.h.b16 %v52
  %v363 = vunpack.c.l.b16 %v53
  %v364 = vunpack.c.h.b16 %v53
  %v365 = vunpack.c.l.b16 %v54
  %v366 = vunpack.c.h.b16 %v54
  %v367 = vunpack.c.l.b16 %v55
  %v368 = vunpack.c.h.b16 %v55
  %v369 = vunpack.c.l.b16 %v56
  %v370 = vunpack.c.h.b16 %v56
  %v371 = vunpack.c.l.b16 %v57
  %v372 = vunpack.c.h.b16 %v57
  %v373 = vunpack.c.l.b16 %v58
  %v374 = vunpack.c.h.b16 %v58
  %v375 = vunpack.c.l.b16 %v59
  %v376 = vunpack.c.h.b16 %v59
  %v377 = vunpack.c.l.b16 %v60
  %v378 = vunpack.c.h.b16 %v60
  %v379 = vunpack.c.l.b16 %v61
  %v380 = vunpack.c.h.b16 %v61
  %v381 = vunpack.c.l.b16 %v62
  %v382 = vunpack.c.h.b16 %v62
  %v383 = vunpack.c.l.b16 %v63
  %v384 = vunpack.c.h.b16 %v63
  %v385 = vunpack.c.l.b16 %v64
  %v386 = vunpack.c.h.b16 %v64
  %v387 = vunpack.c.l.b16 %v65
  %v388 = vunpack.c.h.b16 %v65
  %v389 = vunpack.c.l.b16 %v66
  %v390 = vunpack.c.h.b16 %v66
  %v391 = vunpack.c.l.b16 %v67
  %v392 = vunpack.c.h.b16 %v67
  %v393 = vunpack.c.l.b16 %v68
  %v394 = vunpack.c.h.b16 %v68
  %v395 = vunpack.c.l.b16 %v69
  %v396 = vunpack.c.h.b16 %v69
  %v397 = vunpack.c.l.b16 %v70
  %v398 = vunpack.c.h.b16 %v70
  %v399 = vunpack.c.l.b16 %v71
  %v400 = vunpack.c.h.b16 %v71
  %v401 = vunpack.c.l.b16 %v72
  %v402 = vunpack.c.h.b16 %v72
  %v403 = vunpack.c.l.b16 %v73
  %v404 = vunpack.c.h.b16 %v73
  %v405 = vunpack.c.l.b16 %v74
  %v406 = vunpack.c.h.b16 %v74
  %v407 = vunpack.c.l.b16 %v75
  %v408 = vunpack.c.h.b16 %v75
  %v409 = vunpack.c.l.b16 %v76
  %v410 = vunpack.c.h.b16 %v76
  %v411 = vunpack.c.l.b16 %v77
  %v412 = vunpack.c.h.b16 %v77
  %v413 = vunpack.c.l.b16 %v78
  %v414 = vunpack.c.h.b16 %v78
  %v415 = vunpack.c.l.b16 %v79
  %v416 = vunpack.c.h.b16 %v79
  %v417 = vunpack.c.l.b16 %v80
  %v418 = vunpack.c.h.b16 %v80
  %v419 = vunpack.c.l.b16 %v81
  %v420 = vunpack.c.h.b16 %v81
  %v421 = vunpack.c.l.b16 %v82
  %v422 = vunpack.c.h.b16 %v82
  %v423 = vunpack.c.l.b16 %v83
  %v424 = vunpack.c.h.b16 %v83
  %v425 = vunpack.c.l.b16 %v84
  %v426 = vunpack.c.h.b16 %v84
  %v427 = vunpack.c.l.b16 %v85
  %v428 = vunpack.c.h.b16 %v85
  %v429 = vunpack.c.l.b16 %v86
  %v430 = vunpack.c.h.b16 %v86
  %v431 = vunpack.c.l.b16 %v87
  %v432 = vunpack.c.h.b16 %v87
  %v433 = vunpack.c.l.b16 %v88
  %v434 = vunpack.c.h.b16 %v88
  %v435 = vunpack.c.l.b16 %v89
  %v436 = vunpack.c.h.b16 %v89
  %v437 = vunpack.c.l.b16 %v90
  %v438 = vunpack.c.h.b16 %v90
  %v439 = vunpack.c.l.b16 %v91
  %v440 = vunpack.c.h.b16 %v91
  %v441 = vunpack.c.l.b16 %v92
  %v442 = vunpack.c.h.b16 %v92
  %v443 = vunpack.c.l.b16 %v93
  %v444 = vunpack.c.h.b16 %v93
  %v445 = vunpack.c.l.b16 %v94
  %v446 = vunpack.c.h.b16 %v94
  %v447 = vunpack.c.l.b16 %v95
  %v448 = vunpack.c.h.b16 %v95
  %v449 = vunpack.c.l.b16 %v96
  %v450 = vunpack.c.h.b16 %v96
  %v451 = vunpack.c.l.b16 %v97
  %v452 = vunpack.c.h.b16 %v97
  %v453 = vunpack.c.l.b16 %v98
  %v454 = vunpack.c.h.b16 %v98
  %v455 = vunpack.c.l.b16 %v99
  %v456 = vunpack.c.h.b16 %v99
  %v457 = vunpack.c.l.b16 %v100
  %v458 = vunpack.c.h.b16 %v100
  %v459 = vunpack.c.l.b16 %v101
  %v460 = vunpack.c.h.b16 %v101
  %v461 = vunpack.c.l.b16 %v102
  %v462 = vunpack.c.h.b16 %v102
  %v463 = vunpack.c.l.b16 %v103
  %v464 = vunpack.c.h.b16 %v103
  %v465 = vunpack.c.l.b16 %v104
  %v466 = vunpack.c.h.b16 %v104
  %v467 = vunpack.c.l.b16 %v105
  %v468 = vunpack.c.h.b16 %v105
  %v469 = vunpack.c.l.b16 %v106
  %v470 = vunpack.c.h.b16 %v106
  %v471 = vunpack.c.l.b16 %v107
  %v472 = vunpack.c.h.b16 %v107
  %v473 = vunpack.c.l.b16 %v108
  %v474 = vunpack.c.h.b16 %v108
  %v475 = vunpack.c.l.b16 %v109
  %v476 = vunpack.c.h.b16 %v109
  %v477 = vunpack.c.l.b16 %v110
  %v478 = vunpack.c.h.b16 %v110
  %v479 = vunpack.c.l.b16 %v111
  %v480 = vunpack.c.h.b16 %v111
  %v481 = vunpack.c.l.b16 %v112
  %v482 = vunpack.c.h.b16 %v112
  %v483 = vunpack.c.l.b16 %v113
  %v484 = vunpack.c.h.b16 %v113
  %v485 = vunpack.c.l.b16 %v114
  %v486 = vunpack.c.h.b16 %v114
  %v487 = vunpack.c.l.b16 %v115
  %v488 = vunpack.c.h.b16 %v115
  %v489 = vunpack.c.l.b16 %v116
  %v490 = vunpack.c.h.b16 %v116
  %v491 = vunpack.c.l.b16 %v117
  %v492 = vunpack.c.h.b16 %v117
  %v493 = vunpack.c.l.b16 %v118
  %v494 = vunpack.c.h.b16 %v118
  %v495 = vunpack.c.l.b16 %v119
  %v496 = vunpack.c.h.b16 %v119
  %v497 = vunpack.c.l.b16 %v120
  %v498 = vunpack.c.h.b16 %v120
  %v499 = vunpack.c.l.b16 %v121
  %v500 = vunpack.c.h.b16 %v121
  %v501 = vunpack.c.l.b16 %v122
  %v502 = vunpack.c.h.b16 %v122
  %v503 = vunpack.c.l.b16 %v123
  %v504 = vunpack.c.h.b16 %v123
  %v505 = vunpack.c.l.b16 %v124
  %v506 = vunpack.c.h.b16 %v124
  %v507 = vunpack.c.l.b16 %v125
  %v508 = vunpack.c.h.b16 %v125
  %v509 = vunpack.c.l.b16 %v126
  %v510 = vunpack.c.h.b16 %v126
  %v511 = vunpack.c.l.b16 %v127
  %v512 = vunpack.c.h.b16 %v127
  %v513 = vunpack.c.l.b16 %v128
  %v514 = vunpack.c.h.b16 %v128
  %v515 = vunpack.c.l.b16 %v129
  %v516 = vunpack.c.h.b16 %v129
  %v517 = vunpack.c.l.b16 %v130
  %v518 = vunpack.c.h.b16 %v130
  %v519 = vunpack.c.l.b16 %v131
  %v520 = vunpack.c.h.b16 %v131
  %v521 = vunpack.c.l.b16 %v132
  %v522 = vunpack.c.h.b16 %v132
  %v523 = vunpack.c.l.b16 %v133
  %v524 = vunpack.c.h.b16 %v133
  %v525 = vunpack.c.l.b16 %v134
  %v526 = vunpack.c.h.b16 %v134
  %v527 = vunpack.c.l.b16 %v135
  %v528 = vunpack.c.h.b16 %v135
  %v529 = vunpack.c.l.b16 %v136
  %v530 = vunpack.c.h.b16 %v136
  %v531 = vunpack.c.l.b16 %v137
  %v532 = vunpack.c.h.b16 %v137
  %v533 = vunpack.c.l.b16 %v138
  %v534 = vunpack.c.h.b16 %v138
  %v535 = vunpack.c.l.b16 %v139
  %v536 = vunpack.c.h.b16 %v139
  %v537 = vunpack.c.l.b16 %v140
  %v538 = vunpack.c.h.b16 %v140
  %v539 = vunpack.c.l.b16 %v141
  %v540 = vunpack.c.h.b16 %v141
  %v541 = vunpack.c.l.b16 %v142
  %v542 = vunpack.c.h.b16 %v142
  %v543 = vunpack.c.l.b16 %v143
  %v544 = vunpack.c.h.b16 %v143
  %v545 = vunpack.c.l.b16 %v144
  %v546 = vunpack.c.h.b16 %v144
  %v547 = vunpack.c.l.b16 %v145
  %v548 = vunpack.c.h.b16 %v145
  %v549 = vunpack.c.l.b16 %v146
  %v550 = vunpack.c.h.b16 %v146
  %v551 = vunpack.c.l.b16 %v147
  %v552 = vunpack.c.h.b16 %v147
  %v553 = vunpack.c.l.b16 %v148
  %v554 = vunpack.c.h.b16 %v148
  %v555 = vunpack.c.l.b16 %v149
  %v556 = vunpack.c.h.b16 %v149
  %v557 = vunpack.c.l.b16 %v150
  %v558 = vunpack.c.h.b16 %v150
  %v559 = vpack.c.b16 %v339, %v335
  %v560 = vpack.c.b16 %v340, %v336
  %v561 = vpack.c.b16 %v341, %v337
  %v562 = vpack.c.b16 %v342, %v338
  %v563 = vpack.c.b16 %v347, %v343
  %v564 = vpack.c.b16 %v348, %v344
  %v565 = vpack.c.b16 %v349, %v345
  %v566 = vpack.c.b16 %v350, %v346
  %v567 = vpack.c.b16 %v355, %v351
  %v568 = vpack.c.b16 %v356, %v352
  %v569 = vpack.c.b16 %v357, %v353
  %v570 = vpack.c.b16 %v358, %v354
  %v571 = vpack.c.b16 %v363, %v359
  %v572 = vpack.c.b16 %v364, %v360
  %v573 = vpack.c.b16 %v365, %v361
  %v574 = vpack.c.b16 %v366, %v362
  %v575 = vpack.c.b16 %v371, %v367
  %v576 = vpack.c.b16 %v372, %v368
  %v577 = vpack.c.b16 %v373, %v369
  %v578 = vpack.c.b16 %v374, %v370
  %v579 = vpack.c.b16 %v379, %v375
  %v580 = vpack.c.b16 %v380, %v376
  %v581 = vpack.c.b16 %v381, %v377
  %v582 = vpack.c.b16 %v382, %v378
  %v583 = vpack.c.b16 %v387, %v383
  %v584 = vpack.c.b16 %v388, %v384
  %v585 = vpack.c.b16 %v389, %v385
  %v586 = vpack.c.b16 %v390, %v386
  %v587 = vpack.c.b16 %v395, %v391
  %v588 = vpack.c.b16 %v396, %v392
  %v589 = vpack.c.b16 %v397, %v393
  %v590 = vpack.c.b16 %v398, %v394
  %v591 = vpack.c.b16 %v403, %v399
  %v592 = vpack.c.b16 %v404, %v400
  %v593 = vpack.c.b16 %v405, %v401
  %v594 = vpack.c.b16 %v406, %v402
  %v595 = vpack.c.b16 %v411, %v407
  %v596 = vpack.c.b16 %v412, %v408
  %v597 = vpack.c.b16 %v413, %v409
  %v598 = vpack.c.b16 %v414, %v410
  %v599 = vpack.c.b16 %v419, %v415
  %v600 = vpack.c.b16 %v420, %v416
  %v601 = vpack.c.b16 %v421, %v417
  %v602 = vpack.c.b16 %v422, %v418
  %v603 = vpack.c.b16 %v427, %v423
  %v604 = vpack.c.b16 %v428, %v424
  %v605 = vpack.c.b16 %v429, %v425
  %v606 = vpack.c.b16 %v430, %v426
  %v607 = vpack.c.b16 %v435, %v431
  %v608 = vpack.c.b16 %v436, %v432
  %v609 = vpack.c.b16 %v437, %v433
  %v610 = vpack.c.b16 %v438, %v434
  %v611 = vpack.c.b16 %v443, %v439
  %v612 = vpack.c.b16 %v444, %v440
  %v613 = vpack.c.b16 %v445, %v441
  %v614 = vpack.c.b16 %v446, %v442
  %v615 = vpack.c.b16 %v451, %v447
  %v616 = vpack.c.b16 %v452, %v448
  %v617 = vpack.c.b16 %v453, %v449
  %v618 = vpack.c.b16 %v454, %v450
  %v619 = vpack.c.b16 %v459, %v455
  %v620 = vpack.c.b16 %v460, %v456
  %v621 = vpack.c.b16 %v461, %v457
  %v622 = vpack.c.b16 %v462, %v458
  %v623 = vpack.c.b16 %v467, %v463
  %v624 = vpack.c.b16 %v468, %v464
  %v625 = vpack.c.b16 %v469, %v465
  %v626 = vpack.c.b16 %v470, %v466
  %v627 = vpack.c.b16 %v475, %v471
  %v628 = vpack.c.b16 %v476, %v472
  %v629 = vpack.c.b16 %v477, %v473
  %v630 = vpack.c.b16 %v478, %v474
  %v631 = vpack.c.b16 %v483, %v479
  %v632 = vpack.c.b16 %v484, %v480
  %v633 = vpack.c.b16 %v485, %v481
  %v634 = vpack.c.b16 %v486, %v482
  %v635 = vpack.c.b16 %v491, %v487
  %v636 = vpack.c.b16 %v492, %v488
  %v637 = vpack.c.b16 %v493, %v489
  %v638 = vpack.c.b16 %v494, %v490
  %v639 = vpack.c.b16 %v499, %v495
  %v640 = vpack.c.b16 %v500, %v496
  %v641 = vpack.c.b16 %v501, %v497
  %v642 = vpack.c.b16 %v502, %v498
  %v643 = vpack.c.b16 %v507, %v503
  %v644 = vpack.c.b16 %v508, %v504
  %v645 = vpack.c.b16 %v509, %v505
  %v646 = vpack.c.b16 %v510, %v506
  %v647 = vpack.c.b16 %v515, %v511
  %v648 = vpack.c.b16 %v516, %v512
  %v649 = vpack.c.b16 %v517, %v513
  %v650 = vpack.c.b16 %v518, %v514
  %v651 = vpack.c.b16 %v523, %v519
  %v652 = vpack.c.b16 %v524, %v520
  %v653 = vpack.c.b16 %v525, %v521
  %v654 = vpack.c.b16 %v526, %v522
  %v655 = vpack.c.b16 %v531, %v527
  %v656 = vpack.c.b16 %v532, %v528
  %v657 = vpack.c.b16 %v533, %v529
  %v658 = vpack.c.b16 %v534, %v530
  %v659 = vpack.c.b16 %v539, %v535
  %v660 = vpack.c.b16 %v540, %v536
  %v661 = vpack.c.b16 %v541, %v537
  %v662 = vpack.c.b16 %v542, %v538
  %v663 = vpack.c.b16 %v547, %v543
  %v664 = vpack.c.b16 %v548, %v544
  %v665 = vpack.c.b16 %v549, %v545
  %v666 = vpack.c.b16 %v550, %v546
  %v667 = vpack.c.b16 %v555, %v551
  %v668 = vpack.c.b16 %v556, %v552
  %v669 = vpack.c.b16 %v557, %v553
  %v670 = vpack.c.b16 %v558, %v554
  %v815 = vunpack.c.l.b16 %v151
  %v816 = vunpack.c.h.b16 %v151
  %v817 = vunpack.c.l.b16 %v152
  %v818 = vunpack.c.h.b16 %v152
  %v819 = vunpack.c.l.b16 %v153
  %v820 = vunpack.c.h.b16 %v153
  %v821 = vunpack.c.l.b16 %v154
  %v822 = vunpack.c.h.b16 %v154
  %v823 = vunpack.c.l.b16 %v155
  %v824 = vunpack.c.h.b16 %v155
  %v825 = vunpack.c.l.b16 %v156
  %v826 = vunpack.c.h.b16 %v156
  %v827 = vunpack.c.l.b16 %v157
  %v828 = vunpack.c.h.b16 %v157
  %v829 = vunpack.c.l.b16 %v158
  %v830 = vunpack.c.h.b16 %v158
  %v831 = vunpack.c.l.b16 %v159
  %v832 = vunpack.c.h.b16 %v159
  %v833 = vunpack.c.l.b16 %v160
  %v834 = vunpack.c.h.b16 %v160
  %v835 = vunpack.c.l.b16 %v161
  %v836 = vunpack.c.h.b16 %v161
  %v837 = vunpack.c.l.b16 %v162
  %v838 = vunpack.c.h.b16 %v162
  %v839 = vunpack.c.l.b16 %v163
  %v840 = vunpack.c.h.b16 %v163
  %v841 = vunpack.c.l.b16 %v164
  %v842 = vunpack.c.h.b16 %v164
  %v843 = vunpack.c.l.b16 %v165
  %v844 = vunpack.c.h.b16 %v165
  %v845 = vunpack.c.l.b16 %v166
  %v846 = vunpack.c.h.b16 %v166
  %v847 = vunpack.c.l.b16 %v167
  %v848 = vunpack.c.h.b16 %v167
  %v849 = vunpack.c.l.b16 %v168
  %v850 = vunpack.c.h.b16 %v168
  %v851 = vunpack.c.l.b16 %v169
  %v852 = vunpack.c.h.b16 %v169
  %v853 = vunpack.c.l.b16 %v170
  %v854 = vunpack.c.h.b16 %v170
  %v855 = vunpack.c.l.b16 %v171
  %v856 = vunpack.c.h.b16 %v171
  %v857 = vunpack.c.l.b16 %v172
  %v858 = vunpack.c.h.b16 %v172
  %v859 = vunpack.c.l.b16 %v173
  %v860 = vunpack.c.h.b16 %v173
  %v861 = vunpack.c.l.b16 %v174
  %v862 = vunpack.c.h.b16 %v174
  %v863 = vunpack.c.l.b16 %v175
  %v864 = vunpack.c.h.b16 %v175
  %v865 = vunpack.c.l.b16 %v176
  %v866 = vunpack.c.h.b16 %v176
  %v867 = vunpack.c.l.b16 %v177
  %v868 = vunpack.c.h.b16 %v177
  %v869 = vunpack.c.l.b16 %v178
  %v870 = vunpack.c.h.b16 %v178
  %v871 = vunpack.c.l.b16 %v179
  %v872 = vunpack.c.h.b16 %v179
  %v873 = vunpack.c.l.b16 %v180
  %v874 = vunpack.c.h.b16 %v180
  %v875 = vunpack.c.l.b16 %v181
  %v876 = vunpack.c.h.b16 %v181
  %v877 = vunpack.c.l.b16 %v182
  %v878 = vunpack.c.h.b16 %v182
  %v879 = vunpack.c.l.b16 %v183
  %v880 = vunpack.c.h.b16 %v183
  %v881 = vunpack.c.l.b16 %v184
  %v882 = vunpack.c.h.b16 %v184
  %v883 = vunpack.c.l.b16 %v185
  %v884 = vunpack.c.h.b16 %v185
  %v885 = vunpack.c.l.b16 %v186
  %v886 = vunpack.c.h.b16 %v186
  %v887 = vunpack.c.l.b16 %v187
  %v888 = vunpack.c.h.b16 %v187
  %v889 = vunpack.c.l.b16 %v188
  %v890 = vunpack.c.h.b16 %v188
  %v891 = vunpack.c.l.b16 %v189
  %v892 = vunpack.c.h.b16 %v189
  %v893 = vunpack.c.l.b16 %v190
  %v894 = vunpack.c.h.b16 %v190
  %v895 = vunpack.c.l.b16 %v191
  %v896 = vunpack.c.h.b16 %v191
  %v897 = vunpack.c.l.b16 %v192
  %v898 = vunpack.c.h.b16 %v192
  %v899 = vunpack.c.l.b16 %v193
  %v900 = vunpack.c.h.b16 %v193
  %v901 = vunpack.c.l.b16 %v194
  %v902 = vunpack.c.h.b16 %v194
  %v903 = vunpack.c.l.b16 %v195
  %v904 = vunpack.c.h.b16 %v195
  %v905 = vunpack.c.l.b16 %v196
  %v906 = vunpack.c.h.b16 %v196
  %v907 = vunpack.c.l.b16 %v197
  %v908 = vunpack.c.h.b16 %v197
  %v909 = vunpack.c.l.b16 %v198
  %v910 = vunpack.c.h.b16 %v198
  %v911 = vunpack.c.l.b16 %v199
  %v912 = vunpack.c.h.b16 %v199
  %v913 = vunpack.c.l.b16 %v200
  %v914 = vunpack.c.h.b16 %v200
  %v915 = vunpack.c.l.b16 %v201
  %v916 = vunpack.c.h.b16 %v201
  %v917 = vunpack.c.l.b16 %v202
  %v918 = vunpack.c.h.b16 %v202
  %v919 = vunpack.c.l.b16 %v203
  %v920 = vunpack.c.h.b16 %v203
  %v921 = vunpack.c.l.b16 %v204
  %v922 = vunpack.c.h.b16 %v204
  %v923 = vunpack.c.l.b16 %v205
  %v924 = vunpack.c.h.b16 %v205
  %v925 = vunpack.c.l.b16 %v206
  %v926 = vunpack.c.h.b16 %v206
  %v927 = vunpack.c.l.b16 %v207
  %v928 = vunpack.c.h.b16 %v207
  %v929 = vunpack.c.l.b16 %v208
  %v930 = vunpack.c.h.b16 %v208
  %v931 = vunpack.c.l.b16 %v209
  %v932 = vunpack.c.h.b16 %v209
  %v933 = vunpack.c.l.b16 %v210
  %v934 = vunpack.c.h.b16 %v210
  %v935 = vpack.c.b16 %v817, %v815
  %v936 = vpack.c.b16 %v818, %v816
  %v937 = vpack.c.b16 %v821, %v819
  %v938 = vpack.c.b16 %v822, %v820
  %v939 = vpack.c.b16 %v825, %v823
  %v940 = vpack.c.b16 %v826, %v824
  %v941 = vpack.c.b16 %v829, %v827
  %v942 = vpack.c.b16 %v830, %v828
  %v943 = vpack.c.b16 %v833, %v831
  %v944 = vpack.c.b16 %v834, %v832
  %v945 = vpack.c.b16 %v837, %v835
  %v946 = vpack.c.b16 %v838, %v836
  %v947 = vpack.c.b16 %v841, %v839
  %v948 = vpack.c.b16 %v842, %v840
  %v949 = vpack.c.b16 %v845, %v843
  %v950 = vpack.c.b16 %v846, %v844
  %v951 = vpack.c.b16 %v849, %v847
  %v952 = vpack.c.b16 %v850, %v848
  %v953 = vpack.c.b16 %v853, %v851
  %v954 = vpack.c.b16 %v854, %v852
  %v955 = vpack.c.b16 %v857, %v855
  %v956 = vpack.c.b16 %v858, %v856
  %v957 = vpack.c.b16 %v861, %v859
  %v958 = vpack.c.b16 %v862, %v860
  %v959 = vpack.c.b16 %v865, %v863
  %v960 = vpack.c.b16 %v866, %v864
  %v961 = vpack.c.b16 %v869, %v867
  %v962 = vpack.c.b16 %v870, %v868
  %v963 = vpack.c.b16 %v873, %v871
  %v964 = vpack.c.b16 %v874, %v872
  %v965 = vpack.c.b16 %v877, %v875
  %v966 = vpack.c.b16 %v878, %v876
  %v967 = vpack.c.b16 %v881, %v879
  %v968 = vpack.c.b16 %v882, %v880
  %v969 = vpack.c.b16 %v885, %v883
  %v970 = vpack.c.b16 %v886, %v884
  %v971 = vpack.c.b16 %v889, %v887
  %v972 = vpack.c.b16 %v890, %v888
  %v973 = vpack.c.b16 %v893, %v891
  %v974 = vpack.c.b16 %v894, %v892
  %v975 = vpack.c.b16 %v897, %v895
  %v976 = vpack.c.b16 %v898, %v896
  %v977 = vpack.c.b16 %v901, %v899
  %v978 = vpack.c.b16 %v902, %v900
  %v979 = vpack.c.b16 %v905, %v903
  %v980 = vpack.c.b16 %v906, %v904
  %v981 = vpack.c.b16 %v909, %v907
  %v982 = vpack.c.b16 %v910, %v908
  %v983 = vpack.c.b16 %v913, %v911
  %v984 = vpack.c.b16 %v914, %v912
  %v985 = vpack.c.b16 %v917, %v915
  %v986 = vpack.c.b16 %v918, %v916
  %v987 = vpack.c.b16 %v921, %v919
  %v988 = vpack.c.b16 %v922, %v920
  %v989 = vpack.c.b16 %v925, %v923
  %v990 = vpack.c.b16 %v926, %v924
  %v991 = vpack.c.b16 %v929, %v927
  %v992 = vpack.c.b16 %v930, %v928
  %v993 = vpack.c.b16 %v933, %v931
  %v994 = vpack.c.b16 %v934, %v932
  %vm1055 = vcmask 785408
  %v1057 = vsel %vm1055, %v562, 0
  %v1060 = vsel %vm1055, %v566, 0
  %v1063 = vsel %vm1055, %v570, 0
  %v1066 = vsel %vm1055, %v574, 0
  %v1069 = vsel %vm1055, %v578, 0
  %v1072 = vsel %vm1055, %v582, 0
  %v1075 = vsel %vm1055, %v586, 0
  %v1078 = vsel %vm1055, %v590, 0
  %v1081 = vsel %vm1055, %v594, 0
  %v1084 = vsel %vm1055, %v598, 0
  %v1087 = vsel %vm1055, %v602, 0
  %v1090 = vsel %vm1055, %v606, 0
  %v1093 = vsel %vm1055, %v610, 0
  %v1096 = vsel %vm1055, %v614, 0
  %v1099 = vsel %vm1055, %v618, 0
  %v1102 = vsel %vm1055, %v622, 0
  %v1105 = vsel %vm1055, %v626, 0
  %v1108 = vsel %vm1055, %v630, 0
  %v1111 = vsel %vm1055, %v634, 0
  %v1114 = vsel %vm1055, %v638, 0
  %v1117 = vsel %vm1055, %v642, 0
  %v1120 = vsel %vm1055, %v646, 0
  %v1123 = vsel %vm1055, %v650, 0
  %v1126 = vsel %vm1055, %v654, 0
  %v1129 = vsel %vm1055, %v658, 0
  %v1132 = vsel %vm1055, %v662, 0
  %v1135 = vsel %vm1055, %v666, 0
  %v1138 = vsel %vm1055, %v670, 0
  %1140 = vmatprep.subr.bf16.mxu0 %v950
  %1141 = vmatpush1.bf16.msra.mxu0 %v949
  %1142 = vmatprep.subr.bf16.mxu0 %v948
  %1143 = vmatpush1.bf16.msra.mxu0 %v947
  %1144 = vmatprep.subr.bf16.mxu0 %v946
  %1145 = vmatpush1.bf16.msra.mxu0 %v945
  %1146 = vmatprep.subr.bf16.mxu0 %v944
  %1147 = vmatpush1.bf16.msra.mxu0 %v943
  %1148 = vmatprep.subr.bf16.mxu0 %v942
  %1149 = vmatpush1.bf16.msra.mxu0 %v941
  %1150 = vmatprep.subr.bf16.mxu0 %v940
  %1151 = vmatpush1.bf16.msra.mxu0 %v939
  %1152 = vmatprep.subr.bf16.mxu0 %v938
  %1153 = vmatpush1.bf16.msra.mxu0 %v937
  %1154 = vmatprep.subr.bf16.mxu0 %v936
  %1155 = vmatpush1.bf16.msra.mxu0 %v935
  %1156 = vmatprep.subr.bf16.mxu0 %v966
  %1157 = vmatpush2.bf16.msra.mxu0 %v965
  %1158 = vmatprep.subr.bf16.mxu0 %v964
  %1159 = vmatpush2.bf16.msra.mxu0 %v963
  %1160 = vmatprep.subr.bf16.mxu0 %v962
  %1161 = vmatpush2.bf16.msra.mxu0 %v961
  %1162 = vmatprep.subr.bf16.mxu0 %v960
  %1163 = vmatpush2.bf16.msra.mxu0 %v959
  %1164 = vmatprep.subr.bf16.mxu0 %v958
  %1165 = vmatpush2.bf16.msra.mxu0 %v957
  %1166 = vmatprep.subr.bf16.mxu0 %v956
  %1167 = vmatpush2.bf16.msra.mxu0 %v955
  %1168 = vmatprep.subr.bf16.mxu0 %v954
  %1169 = vmatpush2.bf16.msra.mxu0 %v953
  %1170 = vmatprep.subr.bf16.mxu0 %v952
  %1171 = vmatpush2.bf16.msra.mxu0 %v951
  %1172 = vmatprep.mubr.bf16.mxu0 %v560
  %1173 = vmatmul.mubr.bf16.gmra.mxu0 %v559
  %v1174 = vpop.f32.mrf.mxu0
  %v1175 = vadd.f32 %v216, %v1174
  %v1176 = vpop.f32.mrf.mxu0
  %v1177 = vadd.f32 %v220, %v1176
  %v1178 = vpop.f32.mrf.mxu0
  %v1179 = vadd.f32 %v216, %v1178
  %v1180 = vpop.f32.mrf.mxu0
  %v1181 = vadd.f32 %v220, %v1180
  %1182 = vmatprep.mubr.bf16.mxu0 %v564
  %1183 = vmatmul.mubr.bf16.gmra.mxu0 %v563
  %v1184 = vpop.f32.mrf.mxu0
  %v1185 = vadd.f32 %v216, %v1184
  %v1186 = vpop.f32.mrf.mxu0
  %v1187 = vadd.f32 %v220, %v1186
  %v1188 = vpop.f32.mrf.mxu0
  %v1189 = vadd.f32 %v216, %v1188
  %v1190 = vpop.f32.mrf.mxu0
  %v1191 = vadd.f32 %v220, %v1190
  %1192 = vmatprep.mubr.bf16.mxu0 %v568
  %1193 = vmatmul.mubr.bf16.gmra.mxu0 %v567
  %v1194 = vpop.f32.mrf.mxu0
  %v1195 = vadd.f32 %v216, %v1194
  %v1196 = vpop.f32.mrf.mxu0
  %v1197 = vadd.f32 %v220, %v1196
  %v1198 = vpop.f32.mrf.mxu0
  %v1199 = vadd.f32 %v216, %v1198
  %v1200 = vpop.f32.mrf.mxu0
  %v1201 = vadd.f32 %v220, %v1200
  %1202 = vmatprep.mubr.bf16.mxu0 %v572
  %1203 = vmatmul.mubr.bf16.gmra.mxu0 %v571
  %v1204 = vpop.f32.mrf.mxu0
  %v1205 = vadd.f32 %v216, %v1204
  %v1206 = vpop.f32.mrf.mxu0
  %v1207 = vadd.f32 %v220, %v1206
  %v1208 = vpop.f32.mrf.mxu0
  %v1209 = vadd.f32 %v216, %v1208
  %v1210 = vpop.f32.mrf.mxu0
  %v1211 = vadd.f32 %v220, %v1210
  %1212 = vmatprep.mubr.bf16.mxu0 %v576
  %1213 = vmatmul.mubr.bf16.gmra.mxu0 %v575
  %v1214 = vpop.f32.mrf.mxu0
  %v1215 = vadd.f32 %v216, %v1214
  %v1216 = vpop.f32.mrf.mxu0
  %v1217 = vadd.f32 %v220, %v1216
  %v1218 = vpop.f32.mrf.mxu0
  %v1219 = vadd.f32 %v216, %v1218
  %v1220 = vpop.f32.mrf.mxu0
  %v1221 = vadd.f32 %v220, %v1220
  %1222 = vmatprep.mubr.bf16.mxu0 %v580
  %1223 = vmatmul.mubr.bf16.gmra.mxu0 %v579
  %v1224 = vpop.f32.mrf.mxu0
  %v1225 = vadd.f32 %v216, %v1224
  %v1226 = vpop.f32.mrf.mxu0
  %v1227 = vadd.f32 %v220, %v1226
  %v1228 = vpop.f32.mrf.mxu0
  %v1229 = vadd.f32 %v216, %v1228
  %v1230 = vpop.f32.mrf.mxu0
  %v1231 = vadd.f32 %v220, %v1230
  %1232 = vmatprep.mubr.bf16.mxu0 %v584
  %1233 = vmatmul.mubr.bf16.gmra.mxu0 %v583
  %v1234 = vpop.f32.mrf.mxu0
  %v1235 = vadd.f32 %v216, %v1234
  %v1236 = vpop.f32.mrf.mxu0
  %v1237 = vadd.f32 %v220, %v1236
  %v1238 = vpop.f32.mrf.mxu0
  %v1239 = vadd.f32 %v216, %v1238
  %v1240 = vpop.f32.mrf.mxu0
  %v1241 = vadd.f32 %v220, %v1240
  %1242 = vmatprep.mubr.bf16.mxu0 %v588
  %1243 = vmatmul.mubr.bf16.gmra.mxu0 %v587
  %v1244 = vpop.f32.mrf.mxu0
  %v1245 = vadd.f32 %v216, %v1244
  %v1246 = vpop.f32.mrf.mxu0
  %v1247 = vadd.f32 %v220, %v1246
  %v1248 = vpop.f32.mrf.mxu0
  %v1249 = vadd.f32 %v216, %v1248
  %v1250 = vpop.f32.mrf.mxu0
  %v1251 = vadd.f32 %v220, %v1250
  %1252 = vmatprep.mubr.bf16.mxu0 %v592
  %1253 = vmatmul.mubr.bf16.gmra.mxu0 %v591
  %v1254 = vpop.f32.mrf.mxu0
  %v1255 = vadd.f32 %v216, %v1254
  %v1256 = vpop.f32.mrf.mxu0
  %v1257 = vadd.f32 %v220, %v1256
  %v1258 = vpop.f32.mrf.mxu0
  %v1259 = vadd.f32 %v216, %v1258
  %v1260 = vpop.f32.mrf.mxu0
  %v1261 = vadd.f32 %v220, %v1260
  %1262 = vmatprep.mubr.bf16.mxu0 %v596
  %1263 = vmatmul.mubr.bf16.gmra.mxu0 %v595
  %v1264 = vpop.f32.mrf.mxu0
  %v1265 = vadd.f32 %v216, %v1264
  %v1266 = vpop.f32.mrf.mxu0
  %v1267 = vadd.f32 %v220, %v1266
  %v1268 = vpop.f32.mrf.mxu0
  %v1269 = vadd.f32 %v216, %v1268
  %v1270 = vpop.f32.mrf.mxu0
  %v1271 = vadd.f32 %v220, %v1270
  %1272 = vmatprep.mubr.bf16.mxu0 %v600
  %1273 = vmatmul.mubr.bf16.gmra.mxu0 %v599
  %v1274 = vpop.f32.mrf.mxu0
  %v1275 = vadd.f32 %v216, %v1274
  %v1276 = vpop.f32.mrf.mxu0
  %v1277 = vadd.f32 %v220, %v1276
  %v1278 = vpop.f32.mrf.mxu0
  %v1279 = vadd.f32 %v216, %v1278
  %v1280 = vpop.f32.mrf.mxu0
  %v1281 = vadd.f32 %v220, %v1280
  %1282 = vmatprep.mubr.bf16.mxu0 %v604
  %1283 = vmatmul.mubr.bf16.gmra.mxu0 %v603
  %v1284 = vpop.f32.mrf.mxu0
  %v1285 = vadd.f32 %v216, %v1284
  %v1286 = vpop.f32.mrf.mxu0
  %v1287 = vadd.f32 %v220, %v1286
  %v1288 = vpop.f32.mrf.mxu0
  %v1289 = vadd.f32 %v216, %v1288
  %v1290 = vpop.f32.mrf.mxu0
  %v1291 = vadd.f32 %v220, %v1290
  %1292 = vmatprep.mubr.bf16.mxu0 %v608
  %1293 = vmatmul.mubr.bf16.gmra.mxu0 %v607
  %v1294 = vpop.f32.mrf.mxu0
  %v1295 = vadd.f32 %v216, %v1294
  %v1296 = vpop.f32.mrf.mxu0
  %v1297 = vadd.f32 %v220, %v1296
  %v1298 = vpop.f32.mrf.mxu0
  %v1299 = vadd.f32 %v216, %v1298
  %v1300 = vpop.f32.mrf.mxu0
  %v1301 = vadd.f32 %v220, %v1300
  %1302 = vmatprep.mubr.bf16.mxu0 %v612
  %1303 = vmatmul.mubr.bf16.gmra.mxu0 %v611
  %v1304 = vpop.f32.mrf.mxu0
  %v1305 = vadd.f32 %v216, %v1304
  %v1306 = vpop.f32.mrf.mxu0
  %v1307 = vadd.f32 %v220, %v1306
  %v1308 = vpop.f32.mrf.mxu0
  %v1309 = vadd.f32 %v216, %v1308
  %v1310 = vpop.f32.mrf.mxu0
  %v1311 = vadd.f32 %v220, %v1310
  %1312 = vmatprep.mubr.bf16.mxu0 %v616
  %1313 = vmatmul.mubr.bf16.gmra.mxu0 %v615
  %v1314 = vpop.f32.mrf.mxu0
  %v1315 = vadd.f32 %v216, %v1314
  %v1316 = vpop.f32.mrf.mxu0
  %v1317 = vadd.f32 %v220, %v1316
  %v1318 = vpop.f32.mrf.mxu0
  %v1319 = vadd.f32 %v216, %v1318
  %v1320 = vpop.f32.mrf.mxu0
  %v1321 = vadd.f32 %v220, %v1320
  %1322 = vmatprep.mubr.bf16.mxu0 %v620
  %1323 = vmatmul.mubr.bf16.gmra.mxu0 %v619
  %v1324 = vpop.f32.mrf.mxu0
  %v1325 = vadd.f32 %v216, %v1324
  %v1326 = vpop.f32.mrf.mxu0
  %v1327 = vadd.f32 %v220, %v1326
  %v1328 = vpop.f32.mrf.mxu0
  %v1329 = vadd.f32 %v216, %v1328
  %v1330 = vpop.f32.mrf.mxu0
  %v1331 = vadd.f32 %v220, %v1330
  %1332 = vmatprep.mubr.bf16.mxu0 %v624
  %1333 = vmatmul.mubr.bf16.gmra.mxu0 %v623
  %v1334 = vpop.f32.mrf.mxu0
  %v1335 = vadd.f32 %v216, %v1334
  %v1336 = vpop.f32.mrf.mxu0
  %v1337 = vadd.f32 %v220, %v1336
  %v1338 = vpop.f32.mrf.mxu0
  %v1339 = vadd.f32 %v216, %v1338
  %v1340 = vpop.f32.mrf.mxu0
  %v1341 = vadd.f32 %v220, %v1340
  %1342 = vmatprep.mubr.bf16.mxu0 %v628
  %1343 = vmatmul.mubr.bf16.gmra.mxu0 %v627
  %v1344 = vpop.f32.mrf.mxu0
  %v1345 = vadd.f32 %v216, %v1344
  %v1346 = vpop.f32.mrf.mxu0
  %v1347 = vadd.f32 %v220, %v1346
  %v1348 = vpop.f32.mrf.mxu0
  %v1349 = vadd.f32 %v216, %v1348
  %v1350 = vpop.f32.mrf.mxu0
  %v1351 = vadd.f32 %v220, %v1350
  %1352 = vmatprep.mubr.bf16.mxu0 %v632
  %1353 = vmatmul.mubr.bf16.gmra.mxu0 %v631
  %v1354 = vpop.f32.mrf.mxu0
  %v1355 = vadd.f32 %v216, %v1354
  %v1356 = vpop.f32.mrf.mxu0
  %v1357 = vadd.f32 %v220, %v1356
  %v1358 = vpop.f32.mrf.mxu0
  %v1359 = vadd.f32 %v216, %v1358
  %v1360 = vpop.f32.mrf.mxu0
  %v1361 = vadd.f32 %v220, %v1360
  %1362 = vmatprep.mubr.bf16.mxu0 %v636
  %1363 = vmatmul.mubr.bf16.gmra.mxu0 %v635
  %v1364 = vpop.f32.mrf.mxu0
  %v1365 = vadd.f32 %v216, %v1364
  %v1366 = vpop.f32.mrf.mxu0
  %v1367 = vadd.f32 %v220, %v1366
  %v1368 = vpop.f32.mrf.mxu0
  %v1369 = vadd.f32 %v216, %v1368
  %v1370 = vpop.f32.mrf.mxu0
  %v1371 = vadd.f32 %v220, %v1370
  %1372 = vmatprep.mubr.bf16.mxu0 %v640
  %1373 = vmatmul.mubr.bf16.gmra.mxu0 %v639
  %v1374 = vpop.f32.mrf.mxu0
  %v1375 = vadd.f32 %v216, %v1374
  %v1376 = vpop.f32.mrf.mxu0
  %v1377 = vadd.f32 %v220, %v1376
  %v1378 = vpop.f32.mrf.mxu0
  %v1379 = vadd.f32 %v216, %v1378
  %v1380 = vpop.f32.mrf.mxu0
  %v1381 = vadd.f32 %v220, %v1380
  %1382 = vmatprep.mubr.bf16.mxu0 %v644
  %1383 = vmatmul.mubr.bf16.gmra.mxu0 %v643
  %v1384 = vpop.f32.mrf.mxu0
  %v1385 = vadd.f32 %v216, %v1384
  %v1386 = vpop.f32.mrf.mxu0
  %v1387 = vadd.f32 %v220, %v1386
  %v1388 = vpop.f32.mrf.mxu0
  %v1389 = vadd.f32 %v216, %v1388
  %v1390 = vpop.f32.mrf.mxu0
  %v1391 = vadd.f32 %v220, %v1390
  %1392 = vmatprep.mubr.bf16.mxu0 %v648
  %1393 = vmatmul.mubr.bf16.gmra.mxu0 %v647
  %v1394 = vpop.f32.mrf.mxu0
  %v1395 = vadd.f32 %v216, %v1394
  %v1396 = vpop.f32.mrf.mxu0
  %v1397 = vadd.f32 %v220, %v1396
  %v1398 = vpop.f32.mrf.mxu0
  %v1399 = vadd.f32 %v216, %v1398
  %v1400 = vpop.f32.mrf.mxu0
  %v1401 = vadd.f32 %v220, %v1400
  %1402 = vmatprep.mubr.bf16.mxu0 %v652
  %1403 = vmatmul.mubr.bf16.gmra.mxu0 %v651
  %v1404 = vpop.f32.mrf.mxu0
  %v1405 = vadd.f32 %v216, %v1404
  %v1406 = vpop.f32.mrf.mxu0
  %v1407 = vadd.f32 %v220, %v1406
  %v1408 = vpop.f32.mrf.mxu0
  %v1409 = vadd.f32 %v216, %v1408
  %v1410 = vpop.f32.mrf.mxu0
  %v1411 = vadd.f32 %v220, %v1410
  %1412 = vmatprep.mubr.bf16.mxu0 %v656
  %1413 = vmatmul.mubr.bf16.gmra.mxu0 %v655
  %v1414 = vpop.f32.mrf.mxu0
  %v1415 = vadd.f32 %v216, %v1414
  %v1416 = vpop.f32.mrf.mxu0
  %v1417 = vadd.f32 %v220, %v1416
  %v1418 = vpop.f32.mrf.mxu0
  %v1419 = vadd.f32 %v216, %v1418
  %v1420 = vpop.f32.mrf.mxu0
  %v1421 = vadd.f32 %v220, %v1420
  %1422 = vmatprep.mubr.bf16.mxu0 %v660
  %1423 = vmatmul.mubr.bf16.gmra.mxu0 %v659
  %v1424 = vpop.f32.mrf.mxu0
  %v1425 = vadd.f32 %v216, %v1424
  %v1426 = vpop.f32.mrf.mxu0
  %v1427 = vadd.f32 %v220, %v1426
  %v1428 = vpop.f32.mrf.mxu0
  %v1429 = vadd.f32 %v216, %v1428
  %v1430 = vpop.f32.mrf.mxu0
  %v1431 = vadd.f32 %v220, %v1430
  %1432 = vmatprep.mubr.bf16.mxu0 %v664
  %1433 = vmatmul.mubr.bf16.gmra.mxu0 %v663
  %v1434 = vpop.f32.mrf.mxu0
  %v1435 = vadd.f32 %v216, %v1434
  %v1436 = vpop.f32.mrf.mxu0
  %v1437 = vadd.f32 %v220, %v1436
  %v1438 = vpop.f32.mrf.mxu0
  %v1439 = vadd.f32 %v216, %v1438
  %v1440 = vpop.f32.mrf.mxu0
  %v1441 = vadd.f32 %v220, %v1440
  %1442 = vmatprep.mubr.bf16.mxu0 %v668
  %1443 = vmatmul.mubr.bf16.gmra.mxu0 %v667
  %v1444 = vpop.f32.mrf.mxu0
  %v1445 = vadd.f32 %v216, %v1444
  %v1446 = vpop.f32.mrf.mxu0
  %v1447 = vadd.f32 %v220, %v1446
  %v1448 = vpop.f32.mrf.mxu0
  %v1449 = vadd.f32 %v216, %v1448
  %v1450 = vpop.f32.mrf.mxu0
  %v1451 = vadd.f32 %v220, %v1450
  %1452 = vdwg.mxu0
  %1453 = vmatprep.subr.bf16.mxu0 %v982
  %1454 = vmatpush1.bf16.msra.mxu0 %v981
  %1455 = vmatprep.subr.bf16.mxu0 %v980
  %1456 = vmatpush1.bf16.msra.mxu0 %v979
  %1457 = vmatprep.subr.bf16.mxu0 %v978
  %1458 = vmatpush1.bf16.msra.mxu0 %v977
  %1459 = vmatprep.subr.bf16.mxu0 %v976
  %1460 = vmatpush1.bf16.msra.mxu0 %v975
  %1461 = vmatprep.subr.bf16.mxu0 %v974
  %1462 = vmatpush1.bf16.msra.mxu0 %v973
  %1463 = vmatprep.subr.bf16.mxu0 %v972
  %1464 = vmatpush1.bf16.msra.mxu0 %v971
  %1465 = vmatprep.subr.bf16.mxu0 %v970
  %1466 = vmatpush1.bf16.msra.mxu0 %v969
  %1467 = vmatprep.subr.bf16.mxu0 %v968
  %1468 = vmatpush1.bf16.msra.mxu0 %v967
  %1469 = vmatprep.subr.bf16.mxu0 0
  %1470 = vmatpush2.bf16.msra.mxu0 0
  %1471 = vmatprep.subr.bf16.mxu0 0
  %1472 = vmatpush2.bf16.msra.mxu0 0
  %1473 = vmatprep.subr.bf16.mxu0 %v994
  %1474 = vmatpush2.bf16.msra.mxu0 %v993
  %1475 = vmatprep.subr.bf16.mxu0 %v992
  %1476 = vmatpush2.bf16.msra.mxu0 %v991
  %1477 = vmatprep.subr.bf16.mxu0 %v990
  %1478 = vmatpush2.bf16.msra.mxu0 %v989
  %1479 = vmatprep.subr.bf16.mxu0 %v988
  %1480 = vmatpush2.bf16.msra.mxu0 %v987
  %1481 = vmatprep.subr.bf16.mxu0 %v986
  %1482 = vmatpush2.bf16.msra.mxu0 %v985
  %1483 = vmatprep.subr.bf16.mxu0 %v984
  %1484 = vmatpush2.bf16.msra.mxu0 %v983
  %1485 = vmatprep.mubr.bf16.mxu0 %v1057
  %1486 = vmatmul.mubr.bf16.gmra.mxu0 %v561
  %v1487 = vpop.f32.mrf.mxu0
  %v1488 = vadd.f32 %v1175, %v1487
  %v1489 = vpop.f32.mrf.mxu0
  %v1490 = vadd.f32 %v1177, %v1489
  %v1491 = vpop.f32.mrf.mxu0
  %v1492 = vadd.f32 %v1179, %v1491
  %v1493 = vpop.f32.mrf.mxu0
  %v1494 = vadd.f32 %v1181, %v1493
  %1495 = vmatprep.mubr.bf16.mxu0 %v1060
  %1496 = vmatmul.mubr.bf16.gmra.mxu0 %v565
  %v1497 = vpop.f32.mrf.mxu0
  %v1498 = vadd.f32 %v1185, %v1497
  %v1499 = vpop.f32.mrf.mxu0
  %v1500 = vadd.f32 %v1187, %v1499
  %v1501 = vpop.f32.mrf.mxu0
  %v1502 = vadd.f32 %v1189, %v1501
  %v1503 = vpop.f32.mrf.mxu0
  %v1504 = vadd.f32 %v1191, %v1503
  %1505 = vmatprep.mubr.bf16.mxu0 %v1063
  %1506 = vmatmul.mubr.bf16.gmra.mxu0 %v569
  %v1507 = vpop.f32.mrf.mxu0
  %v1508 = vadd.f32 %v1195, %v1507
  %v1509 = vpop.f32.mrf.mxu0
  %v1510 = vadd.f32 %v1197, %v1509
  %v1511 = vpop.f32.mrf.mxu0
  %v1512 = vadd.f32 %v1199, %v1511
  %v1513 = vpop.f32.mrf.mxu0
  %v1514 = vadd.f32 %v1201, %v1513
  %1515 = vmatprep.mubr.bf16.mxu0 %v1066
  %1516 = vmatmul.mubr.bf16.gmra.mxu0 %v573
  %v1517 = vpop.f32.mrf.mxu0
  %v1518 = vadd.f32 %v1205, %v1517
  %v1519 = vpop.f32.mrf.mxu0
  %v1520 = vadd.f32 %v1207, %v1519
  %v1521 = vpop.f32.mrf.mxu0
  %v1522 = vadd.f32 %v1209, %v1521
  %v1523 = vpop.f32.mrf.mxu0
  %v1524 = vadd.f32 %v1211, %v1523
  %1525 = vmatprep.mubr.bf16.mxu0 %v1069
  %1526 = vmatmul.mubr.bf16.gmra.mxu0 %v577
  %v1527 = vpop.f32.mrf.mxu0
  %v1528 = vadd.f32 %v1215, %v1527
  %v1529 = vpop.f32.mrf.mxu0
  %v1530 = vadd.f32 %v1217, %v1529
  %v1531 = vpop.f32.mrf.mxu0
  %v1532 = vadd.f32 %v1219, %v1531
  %v1533 = vpop.f32.mrf.mxu0
  %v1534 = vadd.f32 %v1221, %v1533
  %1535 = vmatprep.mubr.bf16.mxu0 %v1072
  %1536 = vmatmul.mubr.bf16.gmra.mxu0 %v581
  %v1537 = vpop.f32.mrf.mxu0
  %v1538 = vadd.f32 %v1225, %v1537
  %v1539 = vpop.f32.mrf.mxu0
  %v1540 = vadd.f32 %v1227, %v1539
  %v1541 = vpop.f32.mrf.mxu0
  %v1542 = vadd.f32 %v1229, %v1541
  %v1543 = vpop.f32.mrf.mxu0
  %v1544 = vadd.f32 %v1231, %v1543
  %1545 = vmatprep.mubr.bf16.mxu0 %v1075
  %1546 = vmatmul.mubr.bf16.gmra.mxu0 %v585
  %v1547 = vpop.f32.mrf.mxu0
  %v1548 = vadd.f32 %v1235, %v1547
  %v1549 = vpop.f32.mrf.mxu0
  %v1550 = vadd.f32 %v1237, %v1549
  %v1551 = vpop.f32.mrf.mxu0
  %v1552 = vadd.f32 %v1239, %v1551
  %v1553 = vpop.f32.mrf.mxu0
  %v1554 = vadd.f32 %v1241, %v1553
  %1555 = vmatprep.mubr.bf16.mxu0 %v1078
  %1556 = vmatmul.mubr.bf16.gmra.mxu0 %v589
  %v1557 = vpop.f32.mrf.mxu0
  %v1558 = vadd.f32 %v1245, %v1557
  %v1559 = vpop.f32.mrf.mxu0
  %v1560 = vadd.f32 %v1247, %v1559
  %v1561 = vpop.f32.mrf.mxu0
  %v1562 = vadd.f32 %v1249, %v1561
  %v1563 = vpop.f32.mrf.mxu0
  %v1564 = vadd.f32 %v1251, %v1563
  %1565 = vmatprep.mubr.bf16.mxu0 %v1081
  %1566 = vmatmul.mubr.bf16.gmra.mxu0 %v593
  %v1567 = vpop.f32.mrf.mxu0
  %v1568 = vadd.f32 %v1255, %v1567
  %v1569 = vpop.f32.mrf.mxu0
  %v1570 = vadd.f32 %v1257, %v1569
  %v1571 = vpop.f32.mrf.mxu0
  %v1572 = vadd.f32 %v1259, %v1571
  %v1573 = vpop.f32.mrf.mxu0
  %v1574 = vadd.f32 %v1261, %v1573
  %1575 = vmatprep.mubr.bf16.mxu0 %v1084
  %1576 = vmatmul.mubr.bf16.gmra.mxu0 %v597
  %v1577 = vpop.f32.mrf.mxu0
  %v1578 = vadd.f32 %v1265, %v1577
  %v1579 = vpop.f32.mrf.mxu0
  %v1580 = vadd.f32 %v1267, %v1579
  %v1581 = vpop.f32.mrf.mxu0
  %v1582 = vadd.f32 %v1269, %v1581
  %v1583 = vpop.f32.mrf.mxu0
  %v1584 = vadd.f32 %v1271, %v1583
  %1585 = vmatprep.mubr.bf16.mxu0 %v1087
  %1586 = vmatmul.mubr.bf16.gmra.mxu0 %v601
  %v1587 = vpop.f32.mrf.mxu0
  %v1588 = vadd.f32 %v1275, %v1587
  %v1589 = vpop.f32.mrf.mxu0
  %v1590 = vadd.f32 %v1277, %v1589
  %v1591 = vpop.f32.mrf.mxu0
  %v1592 = vadd.f32 %v1279, %v1591
  %v1593 = vpop.f32.mrf.mxu0
  %v1594 = vadd.f32 %v1281, %v1593
  %1595 = vmatprep.mubr.bf16.mxu0 %v1090
  %1596 = vmatmul.mubr.bf16.gmra.mxu0 %v605
  %v1597 = vpop.f32.mrf.mxu0
  %v1598 = vadd.f32 %v1285, %v1597
  %v1599 = vpop.f32.mrf.mxu0
  %v1600 = vadd.f32 %v1287, %v1599
  %v1601 = vpop.f32.mrf.mxu0
  %v1602 = vadd.f32 %v1289, %v1601
  %v1603 = vpop.f32.mrf.mxu0
  %v1604 = vadd.f32 %v1291, %v1603
  %1605 = vmatprep.mubr.bf16.mxu0 %v1093
  %1606 = vmatmul.mubr.bf16.gmra.mxu0 %v609
  %v1607 = vpop.f32.mrf.mxu0
  %v1608 = vadd.f32 %v1295, %v1607
  %v1609 = vpop.f32.mrf.mxu0
  %v1610 = vadd.f32 %v1297, %v1609
  %v1611 = vpop.f32.mrf.mxu0
  %v1612 = vadd.f32 %v1299, %v1611
  %v1613 = vpop.f32.mrf.mxu0
  %v1614 = vadd.f32 %v1301, %v1613
  %1615 = vmatprep.mubr.bf16.mxu0 %v1096
  %1616 = vmatmul.mubr.bf16.gmra.mxu0 %v613
  %v1617 = vpop.f32.mrf.mxu0
  %v1618 = vadd.f32 %v1305, %v1617
  %v1619 = vpop.f32.mrf.mxu0
  %v1620 = vadd.f32 %v1307, %v1619
  %v1621 = vpop.f32.mrf.mxu0
  %v1622 = vadd.f32 %v1309, %v1621
  %v1623 = vpop.f32.mrf.mxu0
  %v1624 = vadd.f32 %v1311, %v1623
  %1625 = vmatprep.mubr.bf16.mxu0 %v1099
  %1626 = vmatmul.mubr.bf16.gmra.mxu0 %v617
  %v1627 = vpop.f32.mrf.mxu0
  %v1628 = vadd.f32 %v1315, %v1627
  %v1629 = vpop.f32.mrf.mxu0
  %v1630 = vadd.f32 %v1317, %v1629
  %v1631 = vpop.f32.mrf.mxu0
  %v1632 = vadd.f32 %v1319, %v1631
  %v1633 = vpop.f32.mrf.mxu0
  %v1634 = vadd.f32 %v1321, %v1633
  %1635 = vmatprep.mubr.bf16.mxu0 %v1102
  %1636 = vmatmul.mubr.bf16.gmra.mxu0 %v621
  %v1637 = vpop.f32.mrf.mxu0
  %v1638 = vadd.f32 %v1325, %v1637
  %v1639 = vpop.f32.mrf.mxu0
  %v1640 = vadd.f32 %v1327, %v1639
  %v1641 = vpop.f32.mrf.mxu0
  %v1642 = vadd.f32 %v1329, %v1641
  %v1643 = vpop.f32.mrf.mxu0
  %v1644 = vadd.f32 %v1331, %v1643
  %1645 = vmatprep.mubr.bf16.mxu0 %v1105
  %1646 = vmatmul.mubr.bf16.gmra.mxu0 %v625
  %v1647 = vpop.f32.mrf.mxu0
  %v1648 = vadd.f32 %v1335, %v1647
  %v1649 = vpop.f32.mrf.mxu0
  %v1650 = vadd.f32 %v1337, %v1649
  %v1651 = vpop.f32.mrf.mxu0
  %v1652 = vadd.f32 %v1339, %v1651
  %v1653 = vpop.f32.mrf.mxu0
  %v1654 = vadd.f32 %v1341, %v1653
  %1655 = vmatprep.mubr.bf16.mxu0 %v1108
  %1656 = vmatmul.mubr.bf16.gmra.mxu0 %v629
  %v1657 = vpop.f32.mrf.mxu0
  %v1658 = vadd.f32 %v1345, %v1657
  %v1659 = vpop.f32.mrf.mxu0
  %v1660 = vadd.f32 %v1347, %v1659
  %v1661 = vpop.f32.mrf.mxu0
  %v1662 = vadd.f32 %v1349, %v1661
  %v1663 = vpop.f32.mrf.mxu0
  %v1664 = vadd.f32 %v1351, %v1663
  %1665 = vmatprep.mubr.bf16.mxu0 %v1111
  %1666 = vmatmul.mubr.bf16.gmra.mxu0 %v633
  %v1667 = vpop.f32.mrf.mxu0
  %v1668 = vadd.f32 %v1355, %v1667
  %v1669 = vpop.f32.mrf.mxu0
  %v1670 = vadd.f32 %v1357, %v1669
  %v1671 = vpop.f32.mrf.mxu0
  %v1672 = vadd.f32 %v1359, %v1671
  %v1673 = vpop.f32.mrf.mxu0
  %v1674 = vadd.f32 %v1361, %v1673
  %1675 = vmatprep.mubr.bf16.mxu0 %v1114
  %1676 = vmatmul.mubr.bf16.gmra.mxu0 %v637
  %v1677 = vpop.f32.mrf.mxu0
  %v1678 = vadd.f32 %v1365, %v1677
  %v1679 = vpop.f32.mrf.mxu0
  %v1680 = vadd.f32 %v1367, %v1679
  %v1681 = vpop.f32.mrf.mxu0
  %v1682 = vadd.f32 %v1369, %v1681
  %v1683 = vpop.f32.mrf.mxu0
  %v1684 = vadd.f32 %v1371, %v1683
  %1685 = vmatprep.mubr.bf16.mxu0 %v1117
  %1686 = vmatmul.mubr.bf16.gmra.mxu0 %v641
  %v1687 = vpop.f32.mrf.mxu0
  %v1688 = vadd.f32 %v1375, %v1687
  %v1689 = vpop.f32.mrf.mxu0
  %v1690 = vadd.f32 %v1377, %v1689
  %v1691 = vpop.f32.mrf.mxu0
  %v1692 = vadd.f32 %v1379, %v1691
  %v1693 = vpop.f32.mrf.mxu0
  %v1694 = vadd.f32 %v1381, %v1693
  %1695 = vmatprep.mubr.bf16.mxu0 %v1120
  %1696 = vmatmul.mubr.bf16.gmra.mxu0 %v645
  %v1697 = vpop.f32.mrf.mxu0
  %v1698 = vadd.f32 %v1385, %v1697
  %v1699 = vpop.f32.mrf.mxu0
  %v1700 = vadd.f32 %v1387, %v1699
  %v1701 = vpop.f32.mrf.mxu0
  %v1702 = vadd.f32 %v1389, %v1701
  %v1703 = vpop.f32.mrf.mxu0
  %v1704 = vadd.f32 %v1391, %v1703
  %1705 = vmatprep.mubr.bf16.mxu0 %v1123
  %1706 = vmatmul.mubr.bf16.gmra.mxu0 %v649
  %v1707 = vpop.f32.mrf.mxu0
  %v1708 = vadd.f32 %v1395, %v1707
  %v1709 = vpop.f32.mrf.mxu0
  %v1710 = vadd.f32 %v1397, %v1709
  %v1711 = vpop.f32.mrf.mxu0
  %v1712 = vadd.f32 %v1399, %v1711
  %v1713 = vpop.f32.mrf.mxu0
  %v1714 = vadd.f32 %v1401, %v1713
  %1715 = vmatprep.mubr.bf16.mxu0 %v1126
  %1716 = vmatmul.mubr.bf16.gmra.mxu0 %v653
  %v1717 = vpop.f32.mrf.mxu0
  %v1718 = vadd.f32 %v1405, %v1717
  %v1719 = vpop.f32.mrf.mxu0
  %v1720 = vadd.f32 %v1407, %v1719
  %v1721 = vpop.f32.mrf.mxu0
  %v1722 = vadd.f32 %v1409, %v1721
  %v1723 = vpop.f32.mrf.mxu0
  %v1724 = vadd.f32 %v1411, %v1723
  %1725 = vmatprep.mubr.bf16.mxu0 %v1129
  %1726 = vmatmul.mubr.bf16.gmra.mxu0 %v657
  %v1727 = vpop.f32.mrf.mxu0
  %v1728 = vadd.f32 %v1415, %v1727
  %v1729 = vpop.f32.mrf.mxu0
  %v1730 = vadd.f32 %v1417, %v1729
  %v1731 = vpop.f32.mrf.mxu0
  %v1732 = vadd.f32 %v1419, %v1731
  %v1733 = vpop.f32.mrf.mxu0
  %v1734 = vadd.f32 %v1421, %v1733
  %1735 = vmatprep.mubr.bf16.mxu0 %v1132
  %1736 = vmatmul.mubr.bf16.gmra.mxu0 %v661
  %v1737 = vpop.f32.mrf.mxu0
  %v1738 = vadd.f32 %v1425, %v1737
  %v1739 = vpop.f32.mrf.mxu0
  %v1740 = vadd.f32 %v1427, %v1739
  %v1741 = vpop.f32.mrf.mxu0
  %v1742 = vadd.f32 %v1429, %v1741
  %v1743 = vpop.f32.mrf.mxu0
  %v1744 = vadd.f32 %v1431, %v1743
  %1745 = vmatprep.mubr.bf16.mxu0 %v1135
  %1746 = vmatmul.mubr.bf16.gmra.mxu0 %v665
  %v1747 = vpop.f32.mrf.mxu0
  %v1748 = vadd.f32 %v1435, %v1747
  %v1749 = vpop.f32.mrf.mxu0
  %v1750 = vadd.f32 %v1437, %v1749
  %v1751 = vpop.f32.mrf.mxu0
  %v1752 = vadd.f32 %v1439, %v1751
  %v1753 = vpop.f32.mrf.mxu0
  %v1754 = vadd.f32 %v1441, %v1753
  %1755 = vmatprep.mubr.bf16.mxu0 %v1138
  %1756 = vmatmul.mubr.bf16.gmra.mxu0 %v669
  %v1757 = vpop.f32.mrf.mxu0
  %v1758 = vadd.f32 %v1445, %v1757
  %v1759 = vpop.f32.mrf.mxu0
  %v1760 = vadd.f32 %v1447, %v1759
  %v1761 = vpop.f32.mrf.mxu0
  %v1762 = vadd.f32 %v1449, %v1761
  %v1763 = vpop.f32.mrf.mxu0
  %v1764 = vadd.f32 %v1451, %v1763
  %1765 = vdwg.mxu0
  %v1766 = vmax.f32 %v1488, 0.0
  %v1767 = vmax.f32 %v1490, 0.0
  %v1768 = vmax.f32 %v1492, 0.0
  %v1769 = vmax.f32 %v1494, 0.0
  %v1770 = vmax.f32 %v1498, 0.0
  %v1771 = vmax.f32 %v1500, 0.0
  %v1772 = vmax.f32 %v1502, 0.0
  %v1773 = vmax.f32 %v1504, 0.0
  %v1774 = vmax.f32 %v1508, 0.0
  %v1775 = vmax.f32 %v1510, 0.0
  %v1776 = vmax.f32 %v1512, 0.0
  %v1777 = vmax.f32 %v1514, 0.0
  %v1778 = vmax.f32 %v1518, 0.0
  %v1779 = vmax.f32 %v1520, 0.0
  %v1780 = vmax.f32 %v1522, 0.0
  %v1781 = vmax.f32 %v1524, 0.0
  %v1782 = vmax.f32 %v1528, 0.0
  %v1783 = vmax.f32 %v1530, 0.0
  %v1784 = vmax.f32 %v1532, 0.0
  %v1785 = vmax.f32 %v1534, 0.0
  %v1786 = vmax.f32 %v1538, 0.0
  %v1787 = vmax.f32 %v1540, 0.0
  %v1788 = vmax.f32 %v1542, 0.0
  %v1789 = vmax.f32 %v1544, 0.0
  %v1790 = vmax.f32 %v1548, 0.0
  %v1791 = vmax.f32 %v1550, 0.0
  %v1792 = vmax.f32 %v1552, 0.0
  %v1793 = vmax.f32 %v1554, 0.0
  %v1794 = vmax.f32 %v1558, 0.0
  %v1795 = vmax.f32 %v1560, 0.0
  %v1796 = vmax.f32 %v1562, 0.0
  %v1797 = vmax.f32 %v1564, 0.0
  %v1798 = vmax.f32 %v1568, 0.0
  %v1799 = vmax.f32 %v1570, 0.0
  %v1800 = vmax.f32 %v1572, 0.0
  %v1801 = vmax.f32 %v1574, 0.0
  %v1802 = vmax.f32 %v1578, 0.0
  %v1803 = vmax.f32 %v1580, 0.0
  %v1804 = vmax.f32 %v1582, 0.0
  %v1805 = vmax.f32 %v1584, 0.0
  %v1806 = vmax.f32 %v1588, 0.0
  %v1807 = vmax.f32 %v1590, 0.0
  %v1808 = vmax.f32 %v1592, 0.0
  %v1809 = vmax.f32 %v1594, 0.0
  %v1810 = vmax.f32 %v1598, 0.0
  %v1811 = vmax.f32 %v1600, 0.0
  %v1812 = vmax.f32 %v1602, 0.0
  %v1813 = vmax.f32 %v1604, 0.0
  %v1814 = vmax.f32 %v1608, 0.0
  %v1815 = vmax.f32 %v1610, 0.0
  %v1816 = vmax.f32 %v1612, 0.0
  %v1817 = vmax.f32 %v1614, 0.0
  %v1818 = vmax.f32 %v1618, 0.0
  %v1819 = vmax.f32 %v1620, 0.0
  %v1820 = vmax.f32 %v1622, 0.0
  %v1821 = vmax.f32 %v1624, 0.0
  %v1822 = vmax.f32 %v1628, 0.0
  %v1823 = vmax.f32 %v1630, 0.0
  %v1824 = vmax.f32 %v1632, 0.0
  %v1825 = vmax.f32 %v1634, 0.0
  %v1826 = vmax.f32 %v1638, 0.0
  %v1827 = vmax.f32 %v1640, 0.0
  %v1828 = vmax.f32 %v1642, 0.0
  %v1829 = vmax.f32 %v1644, 0.0
  %v1830 = vmax.f32 %v1648, 0.0
  %v1831 = vmax.f32 %v1650, 0.0
  %v1832 = vmax.f32 %v1652, 0.0
  %v1833 = vmax.f32 %v1654, 0.0
  %v1834 = vmax.f32 %v1658, 0.0
  %v1835 = vmax.f32 %v1660, 0.0
  %v1836 = vmax.f32 %v1662, 0.0
  %v1837 = vmax.f32 %v1664, 0.0
  %v1838 = vmax.f32 %v1668, 0.0
  %v1839 = vmax.f32 %v1670, 0.0
  %v1840 = vmax.f32 %v1672, 0.0
  %v1841 = vmax.f32 %v1674, 0.0
  %v1842 = vmax.f32 %v1678, 0.0
  %v1843 = vmax.f32 %v1680, 0.0
  %v1844 = vmax.f32 %v1682, 0.0
  %v1845 = vmax.f32 %v1684, 0.0
  %v1846 = vmax.f32 %v1688, 0.0
  %v1847 = vmax.f32 %v1690, 0.0
  %v1848 = vmax.f32 %v1692, 0.0
  %v1849 = vmax.f32 %v1694, 0.0
  %v1850 = vmax.f32 %v1698, 0.0
  %v1851 = vmax.f32 %v1700, 0.0
  %v1852 = vmax.f32 %v1702, 0.0
  %v1853 = vmax.f32 %v1704, 0.0
  %v1854 = vmax.f32 %v1708, 0.0
  %v1855 = vmax.f32 %v1710, 0.0
  %v1856 = vmax.f32 %v1712, 0.0
  %v1857 = vmax.f32 %v1714, 0.0
  %v1858 = vmax.f32 %v1718, 0.0
  %v1859 = vmax.f32 %v1720, 0.0
  %v1860 = vmax.f32 %v1722, 0.0
  %v1861 = vmax.f32 %v1724, 0.0
  %v1862 = vmax.f32 %v1728, 0.0
  %v1863 = vmax.f32 %v1730, 0.0
  %v1864 = vmax.f32 %v1732, 0.0
  %v1865 = vmax.f32 %v1734, 0.0
  %v1866 = vmax.f32 %v1738, 0.0
  %v1867 = vmax.f32 %v1740, 0.0
  %v1868 = vmax.f32 %v1742, 0.0
  %v1869 = vmax.f32 %v1744, 0.0
  %v1870 = vmax.f32 %v1748, 0.0
  %v1871 = vmax.f32 %v1750, 0.0
  %v1872 = vmax.f32 %v1752, 0.0
  %v1873 = vmax.f32 %v1754, 0.0
  %v1874 = vmax.f32 %v1758, 0.0
  %v1875 = vmax.f32 %v1760, 0.0
  %v1876 = vmax.f32 %v1762, 0.0
  %v1877 = vmax.f32 %v1764, 0.0
  %v1878 = vpack.c.bf16 %v1768, %v1766
  %v1879 = vpack.c.bf16 %v1769, %v1767
  %v1880 = vpack.c.bf16 %v1772, %v1770
  %v1881 = vpack.c.bf16 %v1773, %v1771
  %v1882 = vpack.c.bf16 %v1776, %v1774
  %v1883 = vpack.c.bf16 %v1777, %v1775
  %v1884 = vpack.c.bf16 %v1780, %v1778
  %v1885 = vpack.c.bf16 %v1781, %v1779
  %v1886 = vpack.c.bf16 %v1784, %v1782
  %v1887 = vpack.c.bf16 %v1785, %v1783
  %v1888 = vpack.c.bf16 %v1788, %v1786
  %v1889 = vpack.c.bf16 %v1789, %v1787
  %v1890 = vpack.c.bf16 %v1792, %v1790
  %v1891 = vpack.c.bf16 %v1793, %v1791
  %v1892 = vpack.c.bf16 %v1796, %v1794
  %v1893 = vpack.c.bf16 %v1797, %v1795
  %v1894 = vpack.c.bf16 %v1800, %v1798
  %v1895 = vpack.c.bf16 %v1801, %v1799
  %v1896 = vpack.c.bf16 %v1804, %v1802
  %v1897 = vpack.c.bf16 %v1805, %v1803
  %v1898 = vpack.c.bf16 %v1808, %v1806
  %v1899 = vpack.c.bf16 %v1809, %v1807
  %v1900 = vpack.c.bf16 %v1812, %v1810
  %v1901 = vpack.c.bf16 %v1813, %v1811
  %v1902 = vpack.c.bf16 %v1816, %v1814
  %v1903 = vpack.c.bf16 %v1817, %v1815
  %v1904 = vpack.c.bf16 %v1820, %v1818
  %v1905 = vpack.c.bf16 %v1821, %v1819
  %v1906 = vpack.c.bf16 %v1824, %v1822
  %v1907 = vpack.c.bf16 %v1825, %v1823
  %v1908 = vpack.c.bf16 %v1828, %v1826
  %v1909 = vpack.c.bf16 %v1829, %v1827
  %v1910 = vpack.c.bf16 %v1832, %v1830
  %v1911 = vpack.c.bf16 %v1833, %v1831
  %v1912 = vpack.c.bf16 %v1836, %v1834
  %v1913 = vpack.c.bf16 %v1837, %v1835
  %v1914 = vpack.c.bf16 %v1840, %v1838
  %v1915 = vpack.c.bf16 %v1841, %v1839
  %v1916 = vpack.c.bf16 %v1844, %v1842
  %v1917 = vpack.c.bf16 %v1845, %v1843
  %v1918 = vpack.c.bf16 %v1848, %v1846
  %v1919 = vpack.c.bf16 %v1849, %v1847
  %v1920 = vpack.c.bf16 %v1852, %v1850
  %v1921 = vpack.c.bf16 %v1853, %v1851
  %v1922 = vpack.c.bf16 %v1856, %v1854
  %v1923 = vpack.c.bf16 %v1857, %v1855
  %v1924 = vpack.c.bf16 %v1860, %v1858
  %v1925 = vpack.c.bf16 %v1861, %v1859
  %v1926 = vpack.c.bf16 %v1864, %v1862
  %v1927 = vpack.c.bf16 %v1865, %v1863
  %v1928 = vpack.c.bf16 %v1868, %v1866
  %v1929 = vpack.c.bf16 %v1869, %v1867
  %v1930 = vpack.c.bf16 %v1872, %v1870
  %v1931 = vpack.c.bf16 %v1873, %v1871
  %v1932 = vpack.c.bf16 %v1876, %v1874
  %v1933 = vpack.c.bf16 %v1877, %v1875
  %v1934 = vld [vmem:[%s9] sm:$0xf]
  %v1935 = vld [vmem:[%s9 + $0x4] sm:$0xf]
  %v1936 = vld [vmem:[%s9 + $0x8] sm:$0xf]
  %v1937 = vld [vmem:[%s9 + $0xc] sm:$0xf]
  %v1938 = vld [vmem:[%s9 + $0x10] sm:$0xf]
  %v1939 = vld [vmem:[%s9 + $0x14] sm:$0xf]
  %v1940 = vld [vmem:[%s9 + $0x18] sm:$0xf]
  %v1941 = vld [vmem:[%s9 + $0x1c] sm:$0xf]
  %v1942 = vld [vmem:[%s9 + $0x20] sm:$0xf]
  %v1943 = vld [vmem:[%s9 + $0x24] sm:$0xf]
  %v1944 = vld [vmem:[%s9 + $0x28] sm:$0xf]
  %v1945 = vld [vmem:[%s9 + $0x2c] sm:$0xf]
  %v1946 = vld [vmem:[%s9 + $0x30] sm:$0xf]
  %v1947 = vld [vmem:[%s9 + $0x34] sm:$0xf]
  %v1948 = vld [vmem:[%s9 + $0x38] sm:$0xf]
  %v1949 = vld [vmem:[%s9 + $0x3c] sm:$0xf]
  %v1950 = vld [vmem:[%s9 + $0x40] sm:$0xf]
  %v1951 = vld [vmem:[%s9 + $0x44] sm:$0xf]
  %v1952 = vld [vmem:[%s9 + $0x48] sm:$0xf]
  %v1953 = vld [vmem:[%s9 + $0x4c] sm:$0xf]
  %v1954 = vld [vmem:[%s9 + $0x50] sm:$0xf]
  %v1976 = vunpack.c.l.b16 %v1934
  %v1977 = vunpack.c.l.b16 %v1935
  %v1978 = vunpack.c.l.b16 %v1936
  %v1979 = vunpack.c.l.b16 %v1937
  %v1980 = vunpack.c.l.b16 %v1938
  %v1981 = vunpack.c.l.b16 %v1939
  %v1982 = vunpack.c.l.b16 %v1940
  %v1983 = vunpack.c.l.b16 %v1941
  %v1984 = vunpack.c.l.b16 %v1942
  %v1985 = vunpack.c.l.b16 %v1943
  %v1986 = vunpack.c.l.b16 %v1944
  %v1987 = vunpack.c.l.b16 %v1945
  %v1988 = vunpack.c.l.b16 %v1946
  %v1989 = vunpack.c.l.b16 %v1947
  %v1990 = vunpack.c.l.b16 %v1948
  %v1991 = vunpack.c.l.b16 %v1949
  %v1992 = vunpack.c.l.b16 %v1950
  %v1993 = vunpack.c.l.b16 %v1951
  %v1994 = vunpack.c.l.b16 %v1952
  %v1995 = vunpack.c.l.b16 %v1953
  %v1996 = vunpack.c.l.b16 %v1954
  %v1997 = vpack.c.b16 %v1977, %v1976
  %v1998 = vpack.c.b16 %v1979, %v1978
  %v1999 = vpack.c.b16 %v1981, %v1980
  %v2000 = vpack.c.b16 %v1983, %v1982
  %v2001 = vpack.c.b16 %v1985, %v1984
  %v2002 = vpack.c.b16 %v1987, %v1986
  %v2003 = vpack.c.b16 %v1989, %v1988
  %v2004 = vpack.c.b16 %v1991, %v1990
  %v2005 = vpack.c.b16 %v1993, %v1992
  %v2006 = vpack.c.b16 %v1995, %v1994
  %v2007 = vpack.c.b16 %v1996, %v1996
  %vm2018 = vcmask 326656
  %v2020 = vsel %vm2018, %v1879, 0
  %v2023 = vsel %vm2018, %v1881, 0
  %v2026 = vsel %vm2018, %v1883, 0
  %v2029 = vsel %vm2018, %v1885, 0
  %v2032 = vsel %vm2018, %v1887, 0
  %v2035 = vsel %vm2018, %v1889, 0
  %v2038 = vsel %vm2018, %v1891, 0
  %v2041 = vsel %vm2018, %v1893, 0
  %v2044 = vsel %vm2018, %v1895, 0
  %v2047 = vsel %vm2018, %v1897, 0
  %v2050 = vsel %vm2018, %v1899, 0
  %v2053 = vsel %vm2018, %v1901, 0
  %v2056 = vsel %vm2018, %v1903, 0
  %v2059 = vsel %vm2018, %v1905, 0
  %v2062 = vsel %vm2018, %v1907, 0
  %v2065 = vsel %vm2018, %v1909, 0
  %v2068 = vsel %vm2018, %v1911, 0
  %v2071 = vsel %vm2018, %v1913, 0
  %v2074 = vsel %vm2018, %v1915, 0
  %v2077 = vsel %vm2018, %v1917, 0
  %v2080 = vsel %vm2018, %v1919, 0
  %v2083 = vsel %vm2018, %v1921, 0
  %v2086 = vsel %vm2018, %v1923, 0
  %v2089 = vsel %vm2018, %v1925, 0
  %v2092 = vsel %vm2018, %v1927, 0
  %v2095 = vsel %vm2018, %v1929, 0
  %v2098 = vsel %vm2018, %v1931, 0
  %v2101 = vsel %vm2018, %v1933, 0
  %vm2103 = vcmask 1043456
  %v2105 = vsel %vm2103, %v2007, 0
  %2107 = vmatprep.subr.bf16.mxu0 0
  %2108 = vmatpush1.bf16.msra.mxu0 %v2004
  %2109 = vmatprep.subr.bf16.mxu0 0
  %2110 = vmatpush1.bf16.msra.mxu0 %v2003
  %2111 = vmatprep.subr.bf16.mxu0 0
  %2112 = vmatpush1.bf16.msra.mxu0 %v2002
  %2113 = vmatprep.subr.bf16.mxu0 0
  %2114 = vmatpush1.bf16.msra.mxu0 %v2001
  %2115 = vmatprep.subr.bf16.mxu0 0
  %2116 = vmatpush1.bf16.msra.mxu0 %v2000
  %2117 = vmatprep.subr.bf16.mxu0 0
  %2118 = vmatpush1.bf16.msra.mxu0 %v1999
  %2119 = vmatprep.subr.bf16.mxu0 0
  %2120 = vmatpush1.bf16.msra.mxu0 %v1998
  %2121 = vmatprep.subr.bf16.mxu0 0
  %2122 = vmatpush1.bf16.msra.mxu0 %v1997
  %2123 = vmatprep.subr.bf16.mxu0 0
  %2124 = vmatpush2.bf16.msra.mxu0 0
  %2125 = vmatprep.subr.bf16.mxu0 0
  %2126 = vmatpush2.bf16.msra.mxu0 0
  %2127 = vmatprep.subr.bf16.mxu0 0
  %2128 = vmatpush2.bf16.msra.mxu0 0
  %2129 = vmatprep.subr.bf16.mxu0 0
  %2130 = vmatpush2.bf16.msra.mxu0 0
  %2131 = vmatprep.subr.bf16.mxu0 0
  %2132 = vmatpush2.bf16.msra.mxu0 0
  %2133 = vmatprep.subr.bf16.mxu0 0
  %2134 = vmatpush2.bf16.msra.mxu0 %v2105
  %2135 = vmatprep.subr.bf16.mxu0 0
  %2136 = vmatpush2.bf16.msra.mxu0 %v2006
  %2137 = vmatprep.subr.bf16.mxu0 0
  %2138 = vmatpush2.bf16.msra.mxu0 %v2005
  %2139 = vmatprep.mubr.bf16.mxu0 %v2020
  %2140 = vmatmul.mubr.bf16.gmra.mxu0 %v1878
  %v2141 = vpop.f32.mrf.mxu0
  %v2142 = vadd.f32 0.0, %v2141
  %v2143 = vpop.f32.mrf.mxu0
  %v2144 = vpop.f32.mrf.mxu0
  %v2145 = vadd.f32 0.0, %v2144
  %v2146 = vpop.f32.mrf.mxu0
  %2147 = vmatprep.mubr.bf16.mxu0 %v2023
  %2148 = vmatmul.mubr.bf16.gmra.mxu0 %v1880
  %v2149 = vpop.f32.mrf.mxu0
  %v2150 = vadd.f32 0.0, %v2149
  %v2151 = vpop.f32.mrf.mxu0
  %v2152 = vpop.f32.mrf.mxu0
  %v2153 = vadd.f32 0.0, %v2152
  %v2154 = vpop.f32.mrf.mxu0
  %2155 = vmatprep.mubr.bf16.mxu0 %v2026
  %2156 = vmatmul.mubr.bf16.gmra.mxu0 %v1882
  %v2157 = vpop.f32.mrf.mxu0
  %v2158 = vadd.f32 0.0, %v2157
  %v2159 = vpop.f32.mrf.mxu0
  %v2160 = vpop.f32.mrf.mxu0
  %v2161 = vadd.f32 0.0, %v2160
  %v2162 = vpop.f32.mrf.mxu0
  %2163 = vmatprep.mubr.bf16.mxu0 %v2029
  %2164 = vmatmul.mubr.bf16.gmra.mxu0 %v1884
  %v2165 = vpop.f32.mrf.mxu0
  %v2166 = vadd.f32 0.0, %v2165
  %v2167 = vpop.f32.mrf.mxu0
  %v2168 = vpop.f32.mrf.mxu0
  %v2169 = vadd.f32 0.0, %v2168
  %v2170 = vpop.f32.mrf.mxu0
  %2171 = vmatprep.mubr.bf16.mxu0 %v2032
  %2172 = vmatmul.mubr.bf16.gmra.mxu0 %v1886
  %v2173 = vpop.f32.mrf.mxu0
  %v2174 = vadd.f32 0.0, %v2173
  %v2175 = vpop.f32.mrf.mxu0
  %v2176 = vpop.f32.mrf.mxu0
  %v2177 = vadd.f32 0.0, %v2176
  %v2178 = vpop.f32.mrf.mxu0
  %2179 = vmatprep.mubr.bf16.mxu0 %v2035
  %2180 = vmatmul.mubr.bf16.gmra.mxu0 %v1888
  %v2181 = vpop.f32.mrf.mxu0
  %v2182 = vadd.f32 0.0, %v2181
  %v2183 = vpop.f32.mrf.mxu0
  %v2184 = vpop.f32.mrf.mxu0
  %v2185 = vadd.f32 0.0, %v2184
  %v2186 = vpop.f32.mrf.mxu0
  %2187 = vmatprep.mubr.bf16.mxu0 %v2038
  %2188 = vmatmul.mubr.bf16.gmra.mxu0 %v1890
  %v2189 = vpop.f32.mrf.mxu0
  %v2190 = vadd.f32 0.0, %v2189
  %v2191 = vpop.f32.mrf.mxu0
  %v2192 = vpop.f32.mrf.mxu0
  %v2193 = vadd.f32 0.0, %v2192
  %v2194 = vpop.f32.mrf.mxu0
  %2195 = vmatprep.mubr.bf16.mxu0 %v2041
  %2196 = vmatmul.mubr.bf16.gmra.mxu0 %v1892
  %v2197 = vpop.f32.mrf.mxu0
  %v2198 = vadd.f32 0.0, %v2197
  %v2199 = vpop.f32.mrf.mxu0
  %v2200 = vpop.f32.mrf.mxu0
  %v2201 = vadd.f32 0.0, %v2200
  %v2202 = vpop.f32.mrf.mxu0
  %2203 = vmatprep.mubr.bf16.mxu0 %v2044
  %2204 = vmatmul.mubr.bf16.gmra.mxu0 %v1894
  %v2205 = vpop.f32.mrf.mxu0
  %v2206 = vadd.f32 0.0, %v2205
  %v2207 = vpop.f32.mrf.mxu0
  %v2208 = vpop.f32.mrf.mxu0
  %v2209 = vadd.f32 0.0, %v2208
  %v2210 = vpop.f32.mrf.mxu0
  %2211 = vmatprep.mubr.bf16.mxu0 %v2047
  %2212 = vmatmul.mubr.bf16.gmra.mxu0 %v1896
  %v2213 = vpop.f32.mrf.mxu0
  %v2214 = vadd.f32 0.0, %v2213
  %v2215 = vpop.f32.mrf.mxu0
  %v2216 = vpop.f32.mrf.mxu0
  %v2217 = vadd.f32 0.0, %v2216
  %v2218 = vpop.f32.mrf.mxu0
  %2219 = vmatprep.mubr.bf16.mxu0 %v2050
  %2220 = vmatmul.mubr.bf16.gmra.mxu0 %v1898
  %v2221 = vpop.f32.mrf.mxu0
  %v2222 = vadd.f32 0.0, %v2221
  %v2223 = vpop.f32.mrf.mxu0
  %v2224 = vpop.f32.mrf.mxu0
  %v2225 = vadd.f32 0.0, %v2224
  %v2226 = vpop.f32.mrf.mxu0
  %2227 = vmatprep.mubr.bf16.mxu0 %v2053
  %2228 = vmatmul.mubr.bf16.gmra.mxu0 %v1900
  %v2229 = vpop.f32.mrf.mxu0
  %v2230 = vadd.f32 0.0, %v2229
  %v2231 = vpop.f32.mrf.mxu0
  %v2232 = vpop.f32.mrf.mxu0
  %v2233 = vadd.f32 0.0, %v2232
  %v2234 = vpop.f32.mrf.mxu0
  %2235 = vmatprep.mubr.bf16.mxu0 %v2056
  %2236 = vmatmul.mubr.bf16.gmra.mxu0 %v1902
  %v2237 = vpop.f32.mrf.mxu0
  %v2238 = vadd.f32 0.0, %v2237
  %v2239 = vpop.f32.mrf.mxu0
  %v2240 = vpop.f32.mrf.mxu0
  %v2241 = vadd.f32 0.0, %v2240
  %v2242 = vpop.f32.mrf.mxu0
  %2243 = vmatprep.mubr.bf16.mxu0 %v2059
  %2244 = vmatmul.mubr.bf16.gmra.mxu0 %v1904
  %v2245 = vpop.f32.mrf.mxu0
  %v2246 = vadd.f32 0.0, %v2245
  %v2247 = vpop.f32.mrf.mxu0
  %v2248 = vpop.f32.mrf.mxu0
  %v2249 = vadd.f32 0.0, %v2248
  %v2250 = vpop.f32.mrf.mxu0
  %2251 = vmatprep.mubr.bf16.mxu0 %v2062
  %2252 = vmatmul.mubr.bf16.gmra.mxu0 %v1906
  %v2253 = vpop.f32.mrf.mxu0
  %v2254 = vadd.f32 0.0, %v2253
  %v2255 = vpop.f32.mrf.mxu0
  %v2256 = vpop.f32.mrf.mxu0
  %v2257 = vadd.f32 0.0, %v2256
  %v2258 = vpop.f32.mrf.mxu0
  %2259 = vmatprep.mubr.bf16.mxu0 %v2065
  %2260 = vmatmul.mubr.bf16.gmra.mxu0 %v1908
  %v2261 = vpop.f32.mrf.mxu0
  %v2262 = vadd.f32 0.0, %v2261
  %v2263 = vpop.f32.mrf.mxu0
  %v2264 = vpop.f32.mrf.mxu0
  %v2265 = vadd.f32 0.0, %v2264
  %v2266 = vpop.f32.mrf.mxu0
  %2267 = vmatprep.mubr.bf16.mxu0 %v2068
  %2268 = vmatmul.mubr.bf16.gmra.mxu0 %v1910
  %v2269 = vpop.f32.mrf.mxu0
  %v2270 = vadd.f32 0.0, %v2269
  %v2271 = vpop.f32.mrf.mxu0
  %v2272 = vpop.f32.mrf.mxu0
  %v2273 = vadd.f32 0.0, %v2272
  %v2274 = vpop.f32.mrf.mxu0
  %2275 = vmatprep.mubr.bf16.mxu0 %v2071
  %2276 = vmatmul.mubr.bf16.gmra.mxu0 %v1912
  %v2277 = vpop.f32.mrf.mxu0
  %v2278 = vadd.f32 0.0, %v2277
  %v2279 = vpop.f32.mrf.mxu0
  %v2280 = vpop.f32.mrf.mxu0
  %v2281 = vadd.f32 0.0, %v2280
  %v2282 = vpop.f32.mrf.mxu0
  %2283 = vmatprep.mubr.bf16.mxu0 %v2074
  %2284 = vmatmul.mubr.bf16.gmra.mxu0 %v1914
  %v2285 = vpop.f32.mrf.mxu0
  %v2286 = vadd.f32 0.0, %v2285
  %v2287 = vpop.f32.mrf.mxu0
  %v2288 = vpop.f32.mrf.mxu0
  %v2289 = vadd.f32 0.0, %v2288
  %v2290 = vpop.f32.mrf.mxu0
  %2291 = vmatprep.mubr.bf16.mxu0 %v2077
  %2292 = vmatmul.mubr.bf16.gmra.mxu0 %v1916
  %v2293 = vpop.f32.mrf.mxu0
  %v2294 = vadd.f32 0.0, %v2293
  %v2295 = vpop.f32.mrf.mxu0
  %v2296 = vpop.f32.mrf.mxu0
  %v2297 = vadd.f32 0.0, %v2296
  %v2298 = vpop.f32.mrf.mxu0
  %2299 = vmatprep.mubr.bf16.mxu0 %v2080
  %2300 = vmatmul.mubr.bf16.gmra.mxu0 %v1918
  %v2301 = vpop.f32.mrf.mxu0
  %v2302 = vadd.f32 0.0, %v2301
  %v2303 = vpop.f32.mrf.mxu0
  %v2304 = vpop.f32.mrf.mxu0
  %v2305 = vadd.f32 0.0, %v2304
  %v2306 = vpop.f32.mrf.mxu0
  %2307 = vmatprep.mubr.bf16.mxu0 %v2083
  %2308 = vmatmul.mubr.bf16.gmra.mxu0 %v1920
  %v2309 = vpop.f32.mrf.mxu0
  %v2310 = vadd.f32 0.0, %v2309
  %v2311 = vpop.f32.mrf.mxu0
  %v2312 = vpop.f32.mrf.mxu0
  %v2313 = vadd.f32 0.0, %v2312
  %v2314 = vpop.f32.mrf.mxu0
  %2315 = vmatprep.mubr.bf16.mxu0 %v2086
  %2316 = vmatmul.mubr.bf16.gmra.mxu0 %v1922
  %v2317 = vpop.f32.mrf.mxu0
  %v2318 = vadd.f32 0.0, %v2317
  %v2319 = vpop.f32.mrf.mxu0
  %v2320 = vpop.f32.mrf.mxu0
  %v2321 = vadd.f32 0.0, %v2320
  %v2322 = vpop.f32.mrf.mxu0
  %2323 = vmatprep.mubr.bf16.mxu0 %v2089
  %2324 = vmatmul.mubr.bf16.gmra.mxu0 %v1924
  %v2325 = vpop.f32.mrf.mxu0
  %v2326 = vadd.f32 0.0, %v2325
  %v2327 = vpop.f32.mrf.mxu0
  %v2328 = vpop.f32.mrf.mxu0
  %v2329 = vadd.f32 0.0, %v2328
  %v2330 = vpop.f32.mrf.mxu0
  %2331 = vmatprep.mubr.bf16.mxu0 %v2092
  %2332 = vmatmul.mubr.bf16.gmra.mxu0 %v1926
  %v2333 = vpop.f32.mrf.mxu0
  %v2334 = vadd.f32 0.0, %v2333
  %v2335 = vpop.f32.mrf.mxu0
  %v2336 = vpop.f32.mrf.mxu0
  %v2337 = vadd.f32 0.0, %v2336
  %v2338 = vpop.f32.mrf.mxu0
  %2339 = vmatprep.mubr.bf16.mxu0 %v2095
  %2340 = vmatmul.mubr.bf16.gmra.mxu0 %v1928
  %v2341 = vpop.f32.mrf.mxu0
  %v2342 = vadd.f32 0.0, %v2341
  %v2343 = vpop.f32.mrf.mxu0
  %v2344 = vpop.f32.mrf.mxu0
  %v2345 = vadd.f32 0.0, %v2344
  %v2346 = vpop.f32.mrf.mxu0
  %2347 = vmatprep.mubr.bf16.mxu0 %v2098
  %2348 = vmatmul.mubr.bf16.gmra.mxu0 %v1930
  %v2349 = vpop.f32.mrf.mxu0
  %v2350 = vadd.f32 0.0, %v2349
  %v2351 = vpop.f32.mrf.mxu0
  %v2352 = vpop.f32.mrf.mxu0
  %v2353 = vadd.f32 0.0, %v2352
  %v2354 = vpop.f32.mrf.mxu0
  %2355 = vmatprep.mubr.bf16.mxu0 %v2101
  %2356 = vmatmul.mubr.bf16.gmra.mxu0 %v1932
  %v2357 = vpop.f32.mrf.mxu0
  %v2358 = vadd.f32 0.0, %v2357
  %v2359 = vpop.f32.mrf.mxu0
  %v2360 = vpop.f32.mrf.mxu0
  %v2361 = vadd.f32 0.0, %v2360
  %v2362 = vpop.f32.mrf.mxu0
  %2363 = vdwg.mxu0
  %s2364 = scalar_lea.vmem %s9, 84
  %v2365 = vld [vmem:[%s2364] sm:$0xf]
  %v2366 = vld [vmem:[%s2364 + $0x4] sm:$0xf]
  %v2367 = vld [vmem:[%s2364 + $0x8] sm:$0xf]
  %v2368 = vld [vmem:[%s2364 + $0xc] sm:$0xf]
  %v2369 = vld [vmem:[%s2364 + $0x10] sm:$0xf]
  %v2370 = vld [vmem:[%s2364 + $0x14] sm:$0xf]
  %v2371 = vld [vmem:[%s2364 + $0x18] sm:$0xf]
  %v2372 = vld [vmem:[%s2364 + $0x1c] sm:$0xf]
  %v2373 = vld [vmem:[%s2364 + $0x20] sm:$0xf]
  %v2374 = vld [vmem:[%s2364 + $0x24] sm:$0xf]
  %v2375 = vld [vmem:[%s2364 + $0x28] sm:$0xf]
  %v2376 = vld [vmem:[%s2364 + $0x2c] sm:$0xf]
  %v2377 = vld [vmem:[%s2364 + $0x30] sm:$0xf]
  %v2378 = vld [vmem:[%s2364 + $0x34] sm:$0xf]
  %v2379 = vld [vmem:[%s2364 + $0x38] sm:$0xf]
  %v2380 = vld [vmem:[%s2364 + $0x3c] sm:$0xf]
  %v2381 = vld [vmem:[%s2364 + $0x40] sm:$0xf]
  %v2382 = vld [vmem:[%s2364 + $0x44] sm:$0xf]
  %v2383 = vld [vmem:[%s2364 + $0x48] sm:$0xf]
  %v2384 = vld [vmem:[%s2364 + $0x4c] sm:$0xf]
  %v2385 = vld [vmem:[%s2364 + $0x50] sm:$0xf]
  %v2407 = vunpack.c.l.b16 %v2365
  %v2408 = vunpack.c.l.b16 %v2366
  %v2409 = vunpack.c.l.b16 %v2367
  %v2410 = vunpack.c.l.b16 %v2368
  %v2411 = vunpack.c.l.b16 %v2369
  %v2412 = vunpack.c.l.b16 %v2370
  %v2413 = vunpack.c.l.b16 %v2371
  %v2414 = vunpack.c.l.b16 %v2372
  %v2415 = vunpack.c.l.b16 %v2373
  %v2416 = vunpack.c.l.b16 %v2374
  %v2417 = vunpack.c.l.b16 %v2375
  %v2418 = vunpack.c.l.b16 %v2376
  %v2419 = vunpack.c.l.b16 %v2377
  %v2420 = vunpack.c.l.b16 %v2378
  %v2421 = vunpack.c.l.b16 %v2379
  %v2422 = vunpack.c.l.b16 %v2380
  %v2423 = vunpack.c.l.b16 %v2381
  %v2424 = vunpack.c.l.b16 %v2382
  %v2425 = vunpack.c.l.b16 %v2383
  %v2426 = vunpack.c.l.b16 %v2384
  %v2427 = vunpack.c.l.b16 %v2385
  %v2428 = vpack.c.b16 %v2408, %v2407
  %v2429 = vpack.c.b16 %v2410, %v2409
  %v2430 = vpack.c.b16 %v2412, %v2411
  %v2431 = vpack.c.b16 %v2414, %v2413
  %v2432 = vpack.c.b16 %v2416, %v2415
  %v2433 = vpack.c.b16 %v2418, %v2417
  %v2434 = vpack.c.b16 %v2420, %v2419
  %v2435 = vpack.c.b16 %v2422, %v2421
  %v2436 = vpack.c.b16 %v2424, %v2423
  %v2437 = vpack.c.b16 %v2426, %v2425
  %v2438 = vpack.c.b16 %v2427, %v2427
  %v2450 = vsel %vm2103, %v2438, 0
  %2452 = vmatprep.subr.bf16.mxu0 0
  %2453 = vmatpush1.bf16.msra.mxu0 %v2435
  %2454 = vmatprep.subr.bf16.mxu0 0
  %2455 = vmatpush1.bf16.msra.mxu0 %v2434
  %2456 = vmatprep.subr.bf16.mxu0 0
  %2457 = vmatpush1.bf16.msra.mxu0 %v2433
  %2458 = vmatprep.subr.bf16.mxu0 0
  %2459 = vmatpush1.bf16.msra.mxu0 %v2432
  %2460 = vmatprep.subr.bf16.mxu0 0
  %2461 = vmatpush1.bf16.msra.mxu0 %v2431
  %2462 = vmatprep.subr.bf16.mxu0 0
  %2463 = vmatpush1.bf16.msra.mxu0 %v2430
  %2464 = vmatprep.subr.bf16.mxu0 0
  %2465 = vmatpush1.bf16.msra.mxu0 %v2429
  %2466 = vmatprep.subr.bf16.mxu0 0
  %2467 = vmatpush1.bf16.msra.mxu0 %v2428
  %2468 = vmatprep.subr.bf16.mxu0 0
  %2469 = vmatpush2.bf16.msra.mxu0 0
  %2470 = vmatprep.subr.bf16.mxu0 0
  %2471 = vmatpush2.bf16.msra.mxu0 0
  %2472 = vmatprep.subr.bf16.mxu0 0
  %2473 = vmatpush2.bf16.msra.mxu0 0
  %2474 = vmatprep.subr.bf16.mxu0 0
  %2475 = vmatpush2.bf16.msra.mxu0 0
  %2476 = vmatprep.subr.bf16.mxu0 0
  %2477 = vmatpush2.bf16.msra.mxu0 0
  %2478 = vmatprep.subr.bf16.mxu0 0
  %2479 = vmatpush2.bf16.msra.mxu0 %v2450
  %2480 = vmatprep.subr.bf16.mxu0 0
  %2481 = vmatpush2.bf16.msra.mxu0 %v2437
  %2482 = vmatprep.subr.bf16.mxu0 0
  %2483 = vmatpush2.bf16.msra.mxu0 %v2436
  %2484 = vmatprep.mubr.bf16.mxu0 %v2020
  %2485 = vmatmul.mubr.bf16.gmra.mxu0 %v1878
  %v2486 = vpop.f32.mrf.mxu0
  %v2487 = vadd.f32 0.0, %v2486
  %v2488 = vpop.f32.mrf.mxu0
  %v2489 = vpop.f32.mrf.mxu0
  %v2490 = vadd.f32 0.0, %v2489
  %v2491 = vpop.f32.mrf.mxu0
  %2492 = vmatprep.mubr.bf16.mxu0 %v2023
  %2493 = vmatmul.mubr.bf16.gmra.mxu0 %v1880
  %v2494 = vpop.f32.mrf.mxu0
  %v2495 = vadd.f32 0.0, %v2494
  %v2496 = vpop.f32.mrf.mxu0
  %v2497 = vpop.f32.mrf.mxu0
  %v2498 = vadd.f32 0.0, %v2497
  %v2499 = vpop.f32.mrf.mxu0
  %2500 = vmatprep.mubr.bf16.mxu0 %v2026
  %2501 = vmatmul.mubr.bf16.gmra.mxu0 %v1882
  %v2502 = vpop.f32.mrf.mxu0
  %v2503 = vadd.f32 0.0, %v2502
  %v2504 = vpop.f32.mrf.mxu0
  %v2505 = vpop.f32.mrf.mxu0
  %v2506 = vadd.f32 0.0, %v2505
  %v2507 = vpop.f32.mrf.mxu0
  %2508 = vmatprep.mubr.bf16.mxu0 %v2029
  %2509 = vmatmul.mubr.bf16.gmra.mxu0 %v1884
  %v2510 = vpop.f32.mrf.mxu0
  %v2511 = vadd.f32 0.0, %v2510
  %v2512 = vpop.f32.mrf.mxu0
  %v2513 = vpop.f32.mrf.mxu0
  %v2514 = vadd.f32 0.0, %v2513
  %v2515 = vpop.f32.mrf.mxu0
  %2516 = vmatprep.mubr.bf16.mxu0 %v2032
  %2517 = vmatmul.mubr.bf16.gmra.mxu0 %v1886
  %v2518 = vpop.f32.mrf.mxu0
  %v2519 = vadd.f32 0.0, %v2518
  %v2520 = vpop.f32.mrf.mxu0
  %v2521 = vpop.f32.mrf.mxu0
  %v2522 = vadd.f32 0.0, %v2521
  %v2523 = vpop.f32.mrf.mxu0
  %2524 = vmatprep.mubr.bf16.mxu0 %v2035
  %2525 = vmatmul.mubr.bf16.gmra.mxu0 %v1888
  %v2526 = vpop.f32.mrf.mxu0
  %v2527 = vadd.f32 0.0, %v2526
  %v2528 = vpop.f32.mrf.mxu0
  %v2529 = vpop.f32.mrf.mxu0
  %v2530 = vadd.f32 0.0, %v2529
  %v2531 = vpop.f32.mrf.mxu0
  %2532 = vmatprep.mubr.bf16.mxu0 %v2038
  %2533 = vmatmul.mubr.bf16.gmra.mxu0 %v1890
  %v2534 = vpop.f32.mrf.mxu0
  %v2535 = vadd.f32 0.0, %v2534
  %v2536 = vpop.f32.mrf.mxu0
  %v2537 = vpop.f32.mrf.mxu0
  %v2538 = vadd.f32 0.0, %v2537
  %v2539 = vpop.f32.mrf.mxu0
  %2540 = vmatprep.mubr.bf16.mxu0 %v2041
  %2541 = vmatmul.mubr.bf16.gmra.mxu0 %v1892
  %v2542 = vpop.f32.mrf.mxu0
  %v2543 = vadd.f32 0.0, %v2542
  %v2544 = vpop.f32.mrf.mxu0
  %v2545 = vpop.f32.mrf.mxu0
  %v2546 = vadd.f32 0.0, %v2545
  %v2547 = vpop.f32.mrf.mxu0
  %2548 = vmatprep.mubr.bf16.mxu0 %v2044
  %2549 = vmatmul.mubr.bf16.gmra.mxu0 %v1894
  %v2550 = vpop.f32.mrf.mxu0
  %v2551 = vadd.f32 0.0, %v2550
  %v2552 = vpop.f32.mrf.mxu0
  %v2553 = vpop.f32.mrf.mxu0
  %v2554 = vadd.f32 0.0, %v2553
  %v2555 = vpop.f32.mrf.mxu0
  %2556 = vmatprep.mubr.bf16.mxu0 %v2047
  %2557 = vmatmul.mubr.bf16.gmra.mxu0 %v1896
  %v2558 = vpop.f32.mrf.mxu0
  %v2559 = vadd.f32 0.0, %v2558
  %v2560 = vpop.f32.mrf.mxu0
  %v2561 = vpop.f32.mrf.mxu0
  %v2562 = vadd.f32 0.0, %v2561
  %v2563 = vpop.f32.mrf.mxu0
  %2564 = vmatprep.mubr.bf16.mxu0 %v2050
  %2565 = vmatmul.mubr.bf16.gmra.mxu0 %v1898
  %v2566 = vpop.f32.mrf.mxu0
  %v2567 = vadd.f32 0.0, %v2566
  %v2568 = vpop.f32.mrf.mxu0
  %v2569 = vpop.f32.mrf.mxu0
  %v2570 = vadd.f32 0.0, %v2569
  %v2571 = vpop.f32.mrf.mxu0
  %2572 = vmatprep.mubr.bf16.mxu0 %v2053
  %2573 = vmatmul.mubr.bf16.gmra.mxu0 %v1900
  %v2574 = vpop.f32.mrf.mxu0
  %v2575 = vadd.f32 0.0, %v2574
  %v2576 = vpop.f32.mrf.mxu0
  %v2577 = vpop.f32.mrf.mxu0
  %v2578 = vadd.f32 0.0, %v2577
  %v2579 = vpop.f32.mrf.mxu0
  %2580 = vmatprep.mubr.bf16.mxu0 %v2056
  %2581 = vmatmul.mubr.bf16.gmra.mxu0 %v1902
  %v2582 = vpop.f32.mrf.mxu0
  %v2583 = vadd.f32 0.0, %v2582
  %v2584 = vpop.f32.mrf.mxu0
  %v2585 = vpop.f32.mrf.mxu0
  %v2586 = vadd.f32 0.0, %v2585
  %v2587 = vpop.f32.mrf.mxu0
  %2588 = vmatprep.mubr.bf16.mxu0 %v2059
  %2589 = vmatmul.mubr.bf16.gmra.mxu0 %v1904
  %v2590 = vpop.f32.mrf.mxu0
  %v2591 = vadd.f32 0.0, %v2590
  %v2592 = vpop.f32.mrf.mxu0
  %v2593 = vpop.f32.mrf.mxu0
  %v2594 = vadd.f32 0.0, %v2593
  %v2595 = vpop.f32.mrf.mxu0
  %2596 = vmatprep.mubr.bf16.mxu0 %v2062
  %2597 = vmatmul.mubr.bf16.gmra.mxu0 %v1906
  %v2598 = vpop.f32.mrf.mxu0
  %v2599 = vadd.f32 0.0, %v2598
  %v2600 = vpop.f32.mrf.mxu0
  %v2601 = vpop.f32.mrf.mxu0
  %v2602 = vadd.f32 0.0, %v2601
  %v2603 = vpop.f32.mrf.mxu0
  %2604 = vmatprep.mubr.bf16.mxu0 %v2065
  %2605 = vmatmul.mubr.bf16.gmra.mxu0 %v1908
  %v2606 = vpop.f32.mrf.mxu0
  %v2607 = vadd.f32 0.0, %v2606
  %v2608 = vpop.f32.mrf.mxu0
  %v2609 = vpop.f32.mrf.mxu0
  %v2610 = vadd.f32 0.0, %v2609
  %v2611 = vpop.f32.mrf.mxu0
  %2612 = vmatprep.mubr.bf16.mxu0 %v2068
  %2613 = vmatmul.mubr.bf16.gmra.mxu0 %v1910
  %v2614 = vpop.f32.mrf.mxu0
  %v2615 = vadd.f32 0.0, %v2614
  %v2616 = vpop.f32.mrf.mxu0
  %v2617 = vpop.f32.mrf.mxu0
  %v2618 = vadd.f32 0.0, %v2617
  %v2619 = vpop.f32.mrf.mxu0
  %2620 = vmatprep.mubr.bf16.mxu0 %v2071
  %2621 = vmatmul.mubr.bf16.gmra.mxu0 %v1912
  %v2622 = vpop.f32.mrf.mxu0
  %v2623 = vadd.f32 0.0, %v2622
  %v2624 = vpop.f32.mrf.mxu0
  %v2625 = vpop.f32.mrf.mxu0
  %v2626 = vadd.f32 0.0, %v2625
  %v2627 = vpop.f32.mrf.mxu0
  %2628 = vmatprep.mubr.bf16.mxu0 %v2074
  %2629 = vmatmul.mubr.bf16.gmra.mxu0 %v1914
  %v2630 = vpop.f32.mrf.mxu0
  %v2631 = vadd.f32 0.0, %v2630
  %v2632 = vpop.f32.mrf.mxu0
  %v2633 = vpop.f32.mrf.mxu0
  %v2634 = vadd.f32 0.0, %v2633
  %v2635 = vpop.f32.mrf.mxu0
  %2636 = vmatprep.mubr.bf16.mxu0 %v2077
  %2637 = vmatmul.mubr.bf16.gmra.mxu0 %v1916
  %v2638 = vpop.f32.mrf.mxu0
  %v2639 = vadd.f32 0.0, %v2638
  %v2640 = vpop.f32.mrf.mxu0
  %v2641 = vpop.f32.mrf.mxu0
  %v2642 = vadd.f32 0.0, %v2641
  %v2643 = vpop.f32.mrf.mxu0
  %2644 = vmatprep.mubr.bf16.mxu0 %v2080
  %2645 = vmatmul.mubr.bf16.gmra.mxu0 %v1918
  %v2646 = vpop.f32.mrf.mxu0
  %v2647 = vadd.f32 0.0, %v2646
  %v2648 = vpop.f32.mrf.mxu0
  %v2649 = vpop.f32.mrf.mxu0
  %v2650 = vadd.f32 0.0, %v2649
  %v2651 = vpop.f32.mrf.mxu0
  %2652 = vmatprep.mubr.bf16.mxu0 %v2083
  %2653 = vmatmul.mubr.bf16.gmra.mxu0 %v1920
  %v2654 = vpop.f32.mrf.mxu0
  %v2655 = vadd.f32 0.0, %v2654
  %v2656 = vpop.f32.mrf.mxu0
  %v2657 = vpop.f32.mrf.mxu0
  %v2658 = vadd.f32 0.0, %v2657
  %v2659 = vpop.f32.mrf.mxu0
  %2660 = vmatprep.mubr.bf16.mxu0 %v2086
  %2661 = vmatmul.mubr.bf16.gmra.mxu0 %v1922
  %v2662 = vpop.f32.mrf.mxu0
  %v2663 = vadd.f32 0.0, %v2662
  %v2664 = vpop.f32.mrf.mxu0
  %v2665 = vpop.f32.mrf.mxu0
  %v2666 = vadd.f32 0.0, %v2665
  %v2667 = vpop.f32.mrf.mxu0
  %2668 = vmatprep.mubr.bf16.mxu0 %v2089
  %2669 = vmatmul.mubr.bf16.gmra.mxu0 %v1924
  %v2670 = vpop.f32.mrf.mxu0
  %v2671 = vadd.f32 0.0, %v2670
  %v2672 = vpop.f32.mrf.mxu0
  %v2673 = vpop.f32.mrf.mxu0
  %v2674 = vadd.f32 0.0, %v2673
  %v2675 = vpop.f32.mrf.mxu0
  %2676 = vmatprep.mubr.bf16.mxu0 %v2092
  %2677 = vmatmul.mubr.bf16.gmra.mxu0 %v1926
  %v2678 = vpop.f32.mrf.mxu0
  %v2679 = vadd.f32 0.0, %v2678
  %v2680 = vpop.f32.mrf.mxu0
  %v2681 = vpop.f32.mrf.mxu0
  %v2682 = vadd.f32 0.0, %v2681
  %v2683 = vpop.f32.mrf.mxu0
  %2684 = vmatprep.mubr.bf16.mxu0 %v2095
  %2685 = vmatmul.mubr.bf16.gmra.mxu0 %v1928
  %v2686 = vpop.f32.mrf.mxu0
  %v2687 = vadd.f32 0.0, %v2686
  %v2688 = vpop.f32.mrf.mxu0
  %v2689 = vpop.f32.mrf.mxu0
  %v2690 = vadd.f32 0.0, %v2689
  %v2691 = vpop.f32.mrf.mxu0
  %2692 = vmatprep.mubr.bf16.mxu0 %v2098
  %2693 = vmatmul.mubr.bf16.gmra.mxu0 %v1930
  %v2694 = vpop.f32.mrf.mxu0
  %v2695 = vadd.f32 0.0, %v2694
  %v2696 = vpop.f32.mrf.mxu0
  %v2697 = vpop.f32.mrf.mxu0
  %v2698 = vadd.f32 0.0, %v2697
  %v2699 = vpop.f32.mrf.mxu0
  %2700 = vmatprep.mubr.bf16.mxu0 %v2101
  %2701 = vmatmul.mubr.bf16.gmra.mxu0 %v1932
  %v2702 = vpop.f32.mrf.mxu0
  %v2703 = vadd.f32 0.0, %v2702
  %v2704 = vpop.f32.mrf.mxu0
  %v2705 = vpop.f32.mrf.mxu0
  %v2706 = vadd.f32 0.0, %v2705
  %v2707 = vpop.f32.mrf.mxu0
  %2708 = vdwg.mxu0
  %v2709 = vmax.f32 %v2142, %v2487
  %v2710 = vmax.f32 %v2145, %v2490
  %v2711 = vmax.f32 %v2150, %v2495
  %v2712 = vmax.f32 %v2153, %v2498
  %v2713 = vmax.f32 %v2158, %v2503
  %v2714 = vmax.f32 %v2161, %v2506
  %v2715 = vmax.f32 %v2166, %v2511
  %v2716 = vmax.f32 %v2169, %v2514
  %v2717 = vmax.f32 %v2174, %v2519
  %v2718 = vmax.f32 %v2177, %v2522
  %v2719 = vmax.f32 %v2182, %v2527
  %v2720 = vmax.f32 %v2185, %v2530
  %v2721 = vmax.f32 %v2190, %v2535
  %v2722 = vmax.f32 %v2193, %v2538
  %v2723 = vmax.f32 %v2198, %v2543
  %v2724 = vmax.f32 %v2201, %v2546
  %v2725 = vmax.f32 %v2206, %v2551
  %v2726 = vmax.f32 %v2209, %v2554
  %v2727 = vmax.f32 %v2214, %v2559
  %v2728 = vmax.f32 %v2217, %v2562
  %v2729 = vmax.f32 %v2222, %v2567
  %v2730 = vmax.f32 %v2225, %v2570
  %v2731 = vmax.f32 %v2230, %v2575
  %v2732 = vmax.f32 %v2233, %v2578
  %v2733 = vmax.f32 %v2238, %v2583
  %v2734 = vmax.f32 %v2241, %v2586
  %v2735 = vmax.f32 %v2246, %v2591
  %v2736 = vmax.f32 %v2249, %v2594
  %v2737 = vmax.f32 %v2254, %v2599
  %v2738 = vmax.f32 %v2257, %v2602
  %v2739 = vmax.f32 %v2262, %v2607
  %v2740 = vmax.f32 %v2265, %v2610
  %v2741 = vmax.f32 %v2270, %v2615
  %v2742 = vmax.f32 %v2273, %v2618
  %v2743 = vmax.f32 %v2278, %v2623
  %v2744 = vmax.f32 %v2281, %v2626
  %v2745 = vmax.f32 %v2286, %v2631
  %v2746 = vmax.f32 %v2289, %v2634
  %v2747 = vmax.f32 %v2294, %v2639
  %v2748 = vmax.f32 %v2297, %v2642
  %v2749 = vmax.f32 %v2302, %v2647
  %v2750 = vmax.f32 %v2305, %v2650
  %v2751 = vmax.f32 %v2310, %v2655
  %v2752 = vmax.f32 %v2313, %v2658
  %v2753 = vmax.f32 %v2318, %v2663
  %v2754 = vmax.f32 %v2321, %v2666
  %v2755 = vmax.f32 %v2326, %v2671
  %v2756 = vmax.f32 %v2329, %v2674
  %v2757 = vmax.f32 %v2334, %v2679
  %v2758 = vmax.f32 %v2337, %v2682
  %v2759 = vmax.f32 %v2342, %v2687
  %v2760 = vmax.f32 %v2345, %v2690
  %v2761 = vmax.f32 %v2350, %v2695
  %v2762 = vmax.f32 %v2353, %v2698
  %v2763 = vmax.f32 %v2358, %v2703
  %v2764 = vmax.f32 %v2361, %v2706
  %v2765 = vmax.f32 %v2709, %v2737
  %v2766 = vmax.f32 %v2710, %v2738
  %v2767 = vmax.f32 %v2711, %v2739
  %v2768 = vmax.f32 %v2712, %v2740
  %v2769 = vmax.f32 %v2713, %v2741
  %v2770 = vmax.f32 %v2714, %v2742
  %v2771 = vmax.f32 %v2715, %v2743
  %v2772 = vmax.f32 %v2716, %v2744
  %v2773 = vmax.f32 %v2717, %v2745
  %v2774 = vmax.f32 %v2718, %v2746
  %v2775 = vmax.f32 %v2719, %v2747
  %v2776 = vmax.f32 %v2720, %v2748
  %v2777 = vmax.f32 %v2721, %v2749
  %v2778 = vmax.f32 %v2722, %v2750
  %v2779 = vmax.f32 %v2723, %v2751
  %v2780 = vmax.f32 %v2724, %v2752
  %v2781 = vmax.f32 %v2725, %v2753
  %v2782 = vmax.f32 %v2726, %v2754
  %v2783 = vmax.f32 %v2727, %v2755
  %v2784 = vmax.f32 %v2728, %v2756
  %v2785 = vmax.f32 %v2729, %v2757
  %v2786 = vmax.f32 %v2730, %v2758
  %v2787 = vmax.f32 %v2731, %v2759
  %v2788 = vmax.f32 %v2732, %v2760
  %v2789 = vmax.f32 %v2733, %v2761
  %v2790 = vmax.f32 %v2734, %v2762
  %v2791 = vmax.f32 %v2735, %v2763
  %v2792 = vmax.f32 %v2736, %v2764
  %v2793 = vpack.c.bf16 %v2766, %v2765
  %v2794 = vpack.c.bf16 %v2768, %v2767
  %v2795 = vpack.c.bf16 %v2770, %v2769
  %v2796 = vpack.c.bf16 %v2772, %v2771
  %v2797 = vpack.c.bf16 %v2774, %v2773
  %v2798 = vpack.c.bf16 %v2776, %v2775
  %v2799 = vpack.c.bf16 %v2778, %v2777
  %v2800 = vpack.c.bf16 %v2780, %v2779
  %v2801 = vpack.c.bf16 %v2782, %v2781
  %v2802 = vpack.c.bf16 %v2784, %v2783
  %v2803 = vpack.c.bf16 %v2786, %v2785
  %v2804 = vpack.c.bf16 %v2788, %v2787
  %v2805 = vpack.c.bf16 %v2790, %v2789
  %v2806 = vpack.c.bf16 %v2792, %v2791
  %v2807 = vld [vmem:[%s3] sm:$0xff]
  %v2808 = vld [vmem:[%s3 + $0x8] sm:$0xff]
  %v2809 = vld [vmem:[%s3 + $0x10] sm:$0xff]
  %v2810 = vld [vmem:[%s3 + $0x18] sm:$0xff]
  %v2811 = vld [vmem:[%s3 + $0x20] sm:$0xff]
  %v2812 = vld [vmem:[%s3 + $0x28] sm:$0xff]
  %v2813 = vld [vmem:[%s3 + $0x30] sm:$0xff]
  %v2814 = vld [vmem:[%s3 + $0x38] sm:$0xff]
  %v2815 = vld [vmem:[%s3 + $0x40] sm:$0xff]
  %v2816 = vld [vmem:[%s3 + $0x48] sm:$0xff]
  %v2817 = vld [vmem:[%s3 + $0x50] sm:$0x33]
  %s2818 = scalar_lea.vmem %s3, 88
  %v2819 = vld [vmem:[%s2818] sm:$0xff]
  %v2820 = vld [vmem:[%s2818 + $0x8] sm:$0xff]
  %v2821 = vld [vmem:[%s2818 + $0x10] sm:$0xff]
  %v2822 = vld [vmem:[%s2818 + $0x18] sm:$0xff]
  %v2823 = vld [vmem:[%s2818 + $0x20] sm:$0xff]
  %v2824 = vld [vmem:[%s2818 + $0x28] sm:$0xff]
  %v2825 = vld [vmem:[%s2818 + $0x30] sm:$0xff]
  %v2826 = vld [vmem:[%s2818 + $0x38] sm:$0xff]
  %v2827 = vld [vmem:[%s2818 + $0x40] sm:$0xff]
  %v2828 = vld [vmem:[%s2818 + $0x48] sm:$0xff]
  %v2829 = vld [vmem:[%s2818 + $0x50] sm:$0x33]
  %v2841 = vunpack.c.l.b16 %v2819
  %v2842 = vunpack.c.h.b16 %v2819
  %v2843 = vunpack.c.l.b16 %v2820
  %v2844 = vunpack.c.h.b16 %v2820
  %v2845 = vunpack.c.l.b16 %v2821
  %v2846 = vunpack.c.h.b16 %v2821
  %v2847 = vunpack.c.l.b16 %v2822
  %v2848 = vunpack.c.h.b16 %v2822
  %v2849 = vunpack.c.l.b16 %v2823
  %v2850 = vunpack.c.h.b16 %v2823
  %v2851 = vunpack.c.l.b16 %v2824
  %v2852 = vunpack.c.h.b16 %v2824
  %v2853 = vunpack.c.l.b16 %v2825
  %v2854 = vunpack.c.h.b16 %v2825
  %v2855 = vunpack.c.l.b16 %v2826
  %v2856 = vunpack.c.h.b16 %v2826
  %v2857 = vunpack.c.l.b16 %v2827
  %v2858 = vunpack.c.h.b16 %v2827
  %v2859 = vunpack.c.l.b16 %v2828
  %v2860 = vunpack.c.h.b16 %v2828
  %v2861 = vunpack.c.l.b16 %v2829
  %v2862 = vunpack.c.h.b16 %v2829
  %v2863 = vpack.c.b16 %v2843, %v2841
  %v2864 = vpack.c.b16 %v2844, %v2842
  %v2865 = vpack.c.b16 %v2847, %v2845
  %v2866 = vpack.c.b16 %v2848, %v2846
  %v2867 = vpack.c.b16 %v2851, %v2849
  %v2868 = vpack.c.b16 %v2852, %v2850
  %v2869 = vpack.c.b16 %v2855, %v2853
  %v2870 = vpack.c.b16 %v2856, %v2854
  %v2871 = vpack.c.b16 %v2859, %v2857
  %v2872 = vpack.c.b16 %v2860, %v2858
  %v2873 = vpack.c.b16 %v2861, %v2861
  %v2874 = vpack.c.b16 %v2862, %v2862
  %vm2885 = vcmask 687104
  %v2887 = vsel %vm2885, %v2794, 0
  %v2890 = vsel %vm2885, %v2795, 0
  %v2893 = vsel %vm2885, %v2796, 0
  %v2896 = vsel %vm2885, %v2797, 0
  %v2899 = vsel %vm2885, %v2798, 0
  %v2902 = vsel %vm2885, %v2799, 0
  %v2905 = vsel %vm2885, %v2800, 0
  %v2908 = vsel %vm2885, %v2801, 0
  %v2911 = vsel %vm2885, %v2802, 0
  %v2914 = vsel %vm2885, %v2803, 0
  %vm2916 = vcmask 1041408
  %v2918 = vsel %vm2916, %v2873, 0
  %v2921 = vsel %vm2916, %v2874, 0
  %2923 = vmatprep.subr.bf16.mxu0 0
  %2924 = vmatpush1.bf16.msra.mxu0 0
  %2925 = vmatprep.subr.bf16.mxu0 0
  %2926 = vmatpush1.bf16.msra.mxu0 0
  %2927 = vmatprep.subr.bf16.mxu0 %v2921
  %2928 = vmatpush1.bf16.msra.mxu0 %v2918
  %2929 = vmatprep.subr.bf16.mxu0 %v2872
  %2930 = vmatpush1.bf16.msra.mxu0 %v2871
  %2931 = vmatprep.subr.bf16.mxu0 %v2870
  %2932 = vmatpush1.bf16.msra.mxu0 %v2869
  %2933 = vmatprep.subr.bf16.mxu0 %v2868
  %2934 = vmatpush1.bf16.msra.mxu0 %v2867
  %2935 = vmatprep.subr.bf16.mxu0 %v2866
  %2936 = vmatpush1.bf16.msra.mxu0 %v2865
  %2937 = vmatprep.subr.bf16.mxu0 %v2864
  %2938 = vmatpush1.bf16.msra.mxu0 %v2863
  %2939 = vmatprep.subr.bf16.mxu0 0
  %2940 = vmatpush2.bf16.msra.mxu0 0
  %2941 = vmatprep.subr.bf16.mxu0 0
  %2942 = vmatpush2.bf16.msra.mxu0 0
  %2943 = vmatprep.subr.bf16.mxu0 0
  %2944 = vmatpush2.bf16.msra.mxu0 0
  %2945 = vmatprep.subr.bf16.mxu0 0
  %2946 = vmatpush2.bf16.msra.mxu0 0
  %2947 = vmatprep.subr.bf16.mxu0 0
  %2948 = vmatpush2.bf16.msra.mxu0 0
  %2949 = vmatprep.subr.bf16.mxu0 0
  %2950 = vmatpush2.bf16.msra.mxu0 0
  %2951 = vmatprep.subr.bf16.mxu0 0
  %2952 = vmatpush2.bf16.msra.mxu0 0
  %2953 = vmatprep.subr.bf16.mxu0 0
  %2954 = vmatpush2.bf16.msra.mxu0 0
  %2955 = vmatprep.mubr.bf16.mxu0 0
  %2956 = vmatmul.mubr.bf16.gmra.mxu0 %v2887
  %v2957 = vpop.f32.mrf.mxu0
  %v2958 = vadd.f32 0.0, %v2957
  %v2959 = vpop.f32.mrf.mxu0
  %v2960 = vadd.f32 0.0, %v2959
  %v2961 = vpop.f32.mrf.mxu0
  %v2962 = vadd.f32 0.0, %v2961
  %v2963 = vpop.f32.mrf.mxu0
  %v2964 = vadd.f32 0.0, %v2963
  %2965 = vmatprep.mubr.bf16.mxu0 0
  %2966 = vmatmul.mubr.bf16.gmra.mxu0 %v2890
  %v2967 = vpop.f32.mrf.mxu0
  %v2968 = vadd.f32 0.0, %v2967
  %v2969 = vpop.f32.mrf.mxu0
  %v2970 = vadd.f32 0.0, %v2969
  %v2971 = vpop.f32.mrf.mxu0
  %v2972 = vadd.f32 0.0, %v2971
  %v2973 = vpop.f32.mrf.mxu0
  %v2974 = vadd.f32 0.0, %v2973
  %2975 = vmatprep.mubr.bf16.mxu0 0
  %2976 = vmatmul.mubr.bf16.gmra.mxu0 %v2893
  %v2977 = vpop.f32.mrf.mxu0
  %v2978 = vadd.f32 0.0, %v2977
  %v2979 = vpop.f32.mrf.mxu0
  %v2980 = vadd.f32 0.0, %v2979
  %v2981 = vpop.f32.mrf.mxu0
  %v2982 = vadd.f32 0.0, %v2981
  %v2983 = vpop.f32.mrf.mxu0
  %v2984 = vadd.f32 0.0, %v2983
  %2985 = vmatprep.mubr.bf16.mxu0 0
  %2986 = vmatmul.mubr.bf16.gmra.mxu0 %v2896
  %v2987 = vpop.f32.mrf.mxu0
  %v2988 = vadd.f32 0.0, %v2987
  %v2989 = vpop.f32.mrf.mxu0
  %v2990 = vadd.f32 0.0, %v2989
  %v2991 = vpop.f32.mrf.mxu0
  %v2992 = vadd.f32 0.0, %v2991
  %v2993 = vpop.f32.mrf.mxu0
  %v2994 = vadd.f32 0.0, %v2993
  %2995 = vmatprep.mubr.bf16.mxu0 0
  %2996 = vmatmul.mubr.bf16.gmra.mxu0 %v2899
  %v2997 = vpop.f32.mrf.mxu0
  %v2998 = vadd.f32 0.0, %v2997
  %v2999 = vpop.f32.mrf.mxu0
  %v3000 = vadd.f32 0.0, %v2999
  %v3001 = vpop.f32.mrf.mxu0
  %v3002 = vadd.f32 0.0, %v3001
  %v3003 = vpop.f32.mrf.mxu0
  %v3004 = vadd.f32 0.0, %v3003
  %3005 = vmatprep.mubr.bf16.mxu0 0
  %3006 = vmatmul.mubr.bf16.gmra.mxu0 %v2902
  %v3007 = vpop.f32.mrf.mxu0
  %v3008 = vadd.f32 0.0, %v3007
  %v3009 = vpop.f32.mrf.mxu0
  %v3010 = vadd.f32 0.0, %v3009
  %v3011 = vpop.f32.mrf.mxu0
  %v3012 = vadd.f32 0.0, %v3011
  %v3013 = vpop.f32.mrf.mxu0
  %v3014 = vadd.f32 0.0, %v3013
  %3015 = vmatprep.mubr.bf16.mxu0 0
  %3016 = vmatmul.mubr.bf16.gmra.mxu0 %v2905
  %v3017 = vpop.f32.mrf.mxu0
  %v3018 = vadd.f32 0.0, %v3017
  %v3019 = vpop.f32.mrf.mxu0
  %v3020 = vadd.f32 0.0, %v3019
  %v3021 = vpop.f32.mrf.mxu0
  %v3022 = vadd.f32 0.0, %v3021
  %v3023 = vpop.f32.mrf.mxu0
  %v3024 = vadd.f32 0.0, %v3023
  %3025 = vmatprep.mubr.bf16.mxu0 0
  %3026 = vmatmul.mubr.bf16.gmra.mxu0 %v2908
  %v3027 = vpop.f32.mrf.mxu0
  %v3028 = vadd.f32 0.0, %v3027
  %v3029 = vpop.f32.mrf.mxu0
  %v3030 = vadd.f32 0.0, %v3029
  %v3031 = vpop.f32.mrf.mxu0
  %v3032 = vadd.f32 0.0, %v3031
  %v3033 = vpop.f32.mrf.mxu0
  %v3034 = vadd.f32 0.0, %v3033
  %3035 = vmatprep.mubr.bf16.mxu0 0
  %3036 = vmatmul.mubr.bf16.gmra.mxu0 %v2911
  %v3037 = vpop.f32.mrf.mxu0
  %v3038 = vadd.f32 0.0, %v3037
  %v3039 = vpop.f32.mrf.mxu0
  %v3040 = vadd.f32 0.0, %v3039
  %v3041 = vpop.f32.mrf.mxu0
  %v3042 = vadd.f32 0.0, %v3041
  %v3043 = vpop.f32.mrf.mxu0
  %v3044 = vadd.f32 0.0, %v3043
  %3045 = vmatprep.mubr.bf16.mxu0 0
  %3046 = vmatmul.mubr.bf16.gmra.mxu0 %v2914
  %v3047 = vpop.f32.mrf.mxu0
  %v3048 = vadd.f32 0.0, %v3047
  %v3049 = vpop.f32.mrf.mxu0
  %v3050 = vadd.f32 0.0, %v3049
  %v3051 = vpop.f32.mrf.mxu0
  %v3052 = vadd.f32 0.0, %v3051
  %v3053 = vpop.f32.mrf.mxu0
  %v3054 = vadd.f32 0.0, %v3053
  %3055 = vdwg.mxu0
  %v3067 = vunpack.c.l.b16 %v2807
  %v3068 = vunpack.c.h.b16 %v2807
  %v3069 = vunpack.c.l.b16 %v2808
  %v3070 = vunpack.c.h.b16 %v2808
  %v3071 = vunpack.c.l.b16 %v2809
  %v3072 = vunpack.c.h.b16 %v2809
  %v3073 = vunpack.c.l.b16 %v2810
  %v3074 = vunpack.c.h.b16 %v2810
  %v3075 = vunpack.c.l.b16 %v2811
  %v3076 = vunpack.c.h.b16 %v2811
  %v3077 = vunpack.c.l.b16 %v2812
  %v3078 = vunpack.c.h.b16 %v2812
  %v3079 = vunpack.c.l.b16 %v2813
  %v3080 = vunpack.c.h.b16 %v2813
  %v3081 = vunpack.c.l.b16 %v2814
  %v3082 = vunpack.c.h.b16 %v2814
  %v3083 = vunpack.c.l.b16 %v2815
  %v3084 = vunpack.c.h.b16 %v2815
  %v3085 = vunpack.c.l.b16 %v2816
  %v3086 = vunpack.c.h.b16 %v2816
  %v3087 = vunpack.c.l.b16 %v2817
  %v3088 = vunpack.c.h.b16 %v2817
  %v3089 = vpack.c.b16 %v3069, %v3067
  %v3090 = vpack.c.b16 %v3070, %v3068
  %v3091 = vpack.c.b16 %v3073, %v3071
  %v3092 = vpack.c.b16 %v3074, %v3072
  %v3093 = vpack.c.b16 %v3077, %v3075
  %v3094 = vpack.c.b16 %v3078, %v3076
  %v3095 = vpack.c.b16 %v3081, %v3079
  %v3096 = vpack.c.b16 %v3082, %v3080
  %v3097 = vpack.c.b16 %v3085, %v3083
  %v3098 = vpack.c.b16 %v3086, %v3084
  %v3099 = vpack.c.b16 %v3087, %v3087
  %v3100 = vpack.c.b16 %v3088, %v3088
  %v3112 = vsel %vm2885, %v2793, 0
  %v3115 = vsel %vm2916, %v3099, 0
  %v3118 = vsel %vm2916, %v3100, 0
  %3120 = vmatprep.subr.bf16.mxu0 0
  %3121 = vmatpush1.bf16.msra.mxu0 0
  %3122 = vmatprep.subr.bf16.mxu0 0
  %3123 = vmatpush1.bf16.msra.mxu0 0
  %3124 = vmatprep.subr.bf16.mxu0 %v3118
  %3125 = vmatpush1.bf16.msra.mxu0 %v3115
  %3126 = vmatprep.subr.bf16.mxu0 %v3098
  %3127 = vmatpush1.bf16.msra.mxu0 %v3097
  %3128 = vmatprep.subr.bf16.mxu0 %v3096
  %3129 = vmatpush1.bf16.msra.mxu0 %v3095
  %3130 = vmatprep.subr.bf16.mxu0 %v3094
  %3131 = vmatpush1.bf16.msra.mxu0 %v3093
  %3132 = vmatprep.subr.bf16.mxu0 %v3092
  %3133 = vmatpush1.bf16.msra.mxu0 %v3091
  %3134 = vmatprep.subr.bf16.mxu0 %v3090
  %3135 = vmatpush1.bf16.msra.mxu0 %v3089
  %3136 = vmatprep.subr.bf16.mxu0 0
  %3137 = vmatpush2.bf16.msra.mxu0 0
  %3138 = vmatprep.subr.bf16.mxu0 0
  %3139 = vmatpush2.bf16.msra.mxu0 0
  %3140 = vmatprep.subr.bf16.mxu0 0
  %3141 = vmatpush2.bf16.msra.mxu0 0
  %3142 = vmatprep.subr.bf16.mxu0 0
  %3143 = vmatpush2.bf16.msra.mxu0 0
  %3144 = vmatprep.subr.bf16.mxu0 0
  %3145 = vmatpush2.bf16.msra.mxu0 0
  %3146 = vmatprep.subr.bf16.mxu0 0
  %3147 = vmatpush2.bf16.msra.mxu0 0
  %3148 = vmatprep.subr.bf16.mxu0 0
  %3149 = vmatpush2.bf16.msra.mxu0 0
  %3150 = vmatprep.subr.bf16.mxu0 0
  %3151 = vmatpush2.bf16.msra.mxu0 0
  %3152 = vmatprep.mubr.bf16.mxu0 0
  %3153 = vmatmul.mubr.bf16.gmra.mxu0 %v3112
  %v3154 = vpop.f32.mrf.mxu0
  %v3155 = vadd.f32 %v2958, %v3154
  %v3156 = vpop.f32.mrf.mxu0
  %v3157 = vadd.f32 %v2960, %v3156
  %v3158 = vpop.f32.mrf.mxu0
  %v3159 = vadd.f32 %v2962, %v3158
  %v3160 = vpop.f32.mrf.mxu0
  %v3161 = vadd.f32 %v2964, %v3160
  %3162 = vmatprep.mubr.bf16.mxu0 0
  %3163 = vmatmul.mubr.bf16.gmra.mxu0 %v2887
  %v3164 = vpop.f32.mrf.mxu0
  %v3165 = vadd.f32 %v2968, %v3164
  %v3166 = vpop.f32.mrf.mxu0
  %v3167 = vadd.f32 %v2970, %v3166
  %v3168 = vpop.f32.mrf.mxu0
  %v3169 = vadd.f32 %v2972, %v3168
  %v3170 = vpop.f32.mrf.mxu0
  %v3171 = vadd.f32 %v2974, %v3170
  %3172 = vmatprep.mubr.bf16.mxu0 0
  %3173 = vmatmul.mubr.bf16.gmra.mxu0 %v2890
  %v3174 = vpop.f32.mrf.mxu0
  %v3175 = vadd.f32 %v2978, %v3174
  %v3176 = vpop.f32.mrf.mxu0
  %v3177 = vadd.f32 %v2980, %v3176
  %v3178 = vpop.f32.mrf.mxu0
  %v3179 = vadd.f32 %v2982, %v3178
  %v3180 = vpop.f32.mrf.mxu0
  %v3181 = vadd.f32 %v2984, %v3180
  %3182 = vmatprep.mubr.bf16.mxu0 0
  %3183 = vmatmul.mubr.bf16.gmra.mxu0 %v2893
  %v3184 = vpop.f32.mrf.mxu0
  %v3185 = vadd.f32 %v2988, %v3184
  %v3186 = vpop.f32.mrf.mxu0
  %v3187 = vadd.f32 %v2990, %v3186
  %v3188 = vpop.f32.mrf.mxu0
  %v3189 = vadd.f32 %v2992, %v3188
  %v3190 = vpop.f32.mrf.mxu0
  %v3191 = vadd.f32 %v2994, %v3190
  %3192 = vmatprep.mubr.bf16.mxu0 0
  %3193 = vmatmul.mubr.bf16.gmra.mxu0 %v2896
  %v3194 = vpop.f32.mrf.mxu0
  %v3195 = vadd.f32 %v2998, %v3194
  %v3196 = vpop.f32.mrf.mxu0
  %v3197 = vadd.f32 %v3000, %v3196
  %v3198 = vpop.f32.mrf.mxu0
  %v3199 = vadd.f32 %v3002, %v3198
  %v3200 = vpop.f32.mrf.mxu0
  %v3201 = vadd.f32 %v3004, %v3200
  %3202 = vmatprep.mubr.bf16.mxu0 0
  %3203 = vmatmul.mubr.bf16.gmra.mxu0 %v2899
  %v3204 = vpop.f32.mrf.mxu0
  %v3205 = vadd.f32 %v3008, %v3204
  %v3206 = vpop.f32.mrf.mxu0
  %v3207 = vadd.f32 %v3010, %v3206
  %v3208 = vpop.f32.mrf.mxu0
  %v3209 = vadd.f32 %v3012, %v3208
  %v3210 = vpop.f32.mrf.mxu0
  %v3211 = vadd.f32 %v3014, %v3210
  %3212 = vmatprep.mubr.bf16.mxu0 0
  %3213 = vmatmul.mubr.bf16.gmra.mxu0 %v2902
  %v3214 = vpop.f32.mrf.mxu0
  %v3215 = vadd.f32 %v3018, %v3214
  %v3216 = vpop.f32.mrf.mxu0
  %v3217 = vadd.f32 %v3020, %v3216
  %v3218 = vpop.f32.mrf.mxu0
  %v3219 = vadd.f32 %v3022, %v3218
  %v3220 = vpop.f32.mrf.mxu0
  %v3221 = vadd.f32 %v3024, %v3220
  %3222 = vmatprep.mubr.bf16.mxu0 0
  %3223 = vmatmul.mubr.bf16.gmra.mxu0 %v2905
  %v3224 = vpop.f32.mrf.mxu0
  %v3225 = vadd.f32 %v3028, %v3224
  %v3226 = vpop.f32.mrf.mxu0
  %v3227 = vadd.f32 %v3030, %v3226
  %v3228 = vpop.f32.mrf.mxu0
  %v3229 = vadd.f32 %v3032, %v3228
  %v3230 = vpop.f32.mrf.mxu0
  %v3231 = vadd.f32 %v3034, %v3230
  %3232 = vmatprep.mubr.bf16.mxu0 0
  %3233 = vmatmul.mubr.bf16.gmra.mxu0 %v2908
  %v3234 = vpop.f32.mrf.mxu0
  %v3235 = vadd.f32 %v3038, %v3234
  %v3236 = vpop.f32.mrf.mxu0
  %v3237 = vadd.f32 %v3040, %v3236
  %v3238 = vpop.f32.mrf.mxu0
  %v3239 = vadd.f32 %v3042, %v3238
  %v3240 = vpop.f32.mrf.mxu0
  %v3241 = vadd.f32 %v3044, %v3240
  %3242 = vmatprep.mubr.bf16.mxu0 0
  %3243 = vmatmul.mubr.bf16.gmra.mxu0 %v2911
  %v3244 = vpop.f32.mrf.mxu0
  %v3245 = vadd.f32 %v3048, %v3244
  %v3246 = vpop.f32.mrf.mxu0
  %v3247 = vadd.f32 %v3050, %v3246
  %v3248 = vpop.f32.mrf.mxu0
  %v3249 = vadd.f32 %v3052, %v3248
  %v3250 = vpop.f32.mrf.mxu0
  %v3251 = vadd.f32 %v3054, %v3250
  %3252 = vdwg.mxu0
  %s3253 = scalar_lea.vmem %s3, 176
  %v3254 = vld [vmem:[%s3253] sm:$0xff]
  %v3255 = vld [vmem:[%s3253 + $0x8] sm:$0xff]
  %v3256 = vld [vmem:[%s3253 + $0x10] sm:$0xff]
  %v3257 = vld [vmem:[%s3253 + $0x18] sm:$0xff]
  %v3258 = vld [vmem:[%s3253 + $0x20] sm:$0xff]
  %v3259 = vld [vmem:[%s3253 + $0x28] sm:$0xff]
  %v3260 = vld [vmem:[%s3253 + $0x30] sm:$0xff]
  %v3261 = vld [vmem:[%s3253 + $0x38] sm:$0xff]
  %v3262 = vld [vmem:[%s3253 + $0x40] sm:$0xff]
  %v3263 = vld [vmem:[%s3253 + $0x48] sm:$0xff]
  %v3264 = vld [vmem:[%s3253 + $0x50] sm:$0x33]
  %v3276 = vunpack.c.l.b16 %v3254
  %v3277 = vunpack.c.h.b16 %v3254
  %v3278 = vunpack.c.l.b16 %v3255
  %v3279 = vunpack.c.h.b16 %v3255
  %v3280 = vunpack.c.l.b16 %v3256
  %v3281 = vunpack.c.h.b16 %v3256
  %v3282 = vunpack.c.l.b16 %v3257
  %v3283 = vunpack.c.h.b16 %v3257
  %v3284 = vunpack.c.l.b16 %v3258
  %v3285 = vunpack.c.h.b16 %v3258
  %v3286 = vunpack.c.l.b16 %v3259
  %v3287 = vunpack.c.h.b16 %v3259
  %v3288 = vunpack.c.l.b16 %v3260
  %v3289 = vunpack.c.h.b16 %v3260
  %v3290 = vunpack.c.l.b16 %v3261
  %v3291 = vunpack.c.h.b16 %v3261
  %v3292 = vunpack.c.l.b16 %v3262
  %v3293 = vunpack.c.h.b16 %v3262
  %v3294 = vunpack.c.l.b16 %v3263
  %v3295 = vunpack.c.h.b16 %v3263
  %v3296 = vunpack.c.l.b16 %v3264
  %v3297 = vunpack.c.h.b16 %v3264
  %v3298 = vpack.c.b16 %v3278, %v3276
  %v3299 = vpack.c.b16 %v3279, %v3277
  %v3300 = vpack.c.b16 %v3282, %v3280
  %v3301 = vpack.c.b16 %v3283, %v3281
  %v3302 = vpack.c.b16 %v3286, %v3284
  %v3303 = vpack.c.b16 %v3287, %v3285
  %v3304 = vpack.c.b16 %v3290, %v3288
  %v3305 = vpack.c.b16 %v3291, %v3289
  %v3306 = vpack.c.b16 %v3294, %v3292
  %v3307 = vpack.c.b16 %v3295, %v3293
  %v3308 = vpack.c.b16 %v3296, %v3296
  %v3309 = vpack.c.b16 %v3297, %v3297
  %v3321 = vsel %vm2885, %v2804, 0
  %v3324 = vsel %vm2916, %v3308, 0
  %v3327 = vsel %vm2916, %v3309, 0
  %3329 = vmatprep.subr.bf16.mxu0 0
  %3330 = vmatpush1.bf16.msra.mxu0 0
  %3331 = vmatprep.subr.bf16.mxu0 0
  %3332 = vmatpush1.bf16.msra.mxu0 0
  %3333 = vmatprep.subr.bf16.mxu0 %v3327
  %3334 = vmatpush1.bf16.msra.mxu0 %v3324
  %3335 = vmatprep.subr.bf16.mxu0 %v3307
  %3336 = vmatpush1.bf16.msra.mxu0 %v3306
  %3337 = vmatprep.subr.bf16.mxu0 %v3305
  %3338 = vmatpush1.bf16.msra.mxu0 %v3304
  %3339 = vmatprep.subr.bf16.mxu0 %v3303
  %3340 = vmatpush1.bf16.msra.mxu0 %v3302
  %3341 = vmatprep.subr.bf16.mxu0 %v3301
  %3342 = vmatpush1.bf16.msra.mxu0 %v3300
  %3343 = vmatprep.subr.bf16.mxu0 %v3299
  %3344 = vmatpush1.bf16.msra.mxu0 %v3298
  %3345 = vmatprep.subr.bf16.mxu0 0
  %3346 = vmatpush2.bf16.msra.mxu0 0
  %3347 = vmatprep.subr.bf16.mxu0 0
  %3348 = vmatpush2.bf16.msra.mxu0 0
  %3349 = vmatprep.subr.bf16.mxu0 0
  %3350 = vmatpush2.bf16.msra.mxu0 0
  %3351 = vmatprep.subr.bf16.mxu0 0
  %3352 = vmatpush2.bf16.msra.mxu0 0
  %3353 = vmatprep.subr.bf16.mxu0 0
  %3354 = vmatpush2.bf16.msra.mxu0 0
  %3355 = vmatprep.subr.bf16.mxu0 0
  %3356 = vmatpush2.bf16.msra.mxu0 0
  %3357 = vmatprep.subr.bf16.mxu0 0
  %3358 = vmatpush2.bf16.msra.mxu0 0
  %3359 = vmatprep.subr.bf16.mxu0 0
  %3360 = vmatpush2.bf16.msra.mxu0 0
  %3361 = vmatprep.mubr.bf16.mxu0 0
  %3362 = vmatmul.mubr.bf16.gmra.mxu0 %v2890
  %v3363 = vpop.f32.mrf.mxu0
  %v3364 = vadd.f32 0.0, %v3363
  %v3365 = vpop.f32.mrf.mxu0
  %v3366 = vadd.f32 0.0, %v3365
  %v3367 = vpop.f32.mrf.mxu0
  %v3368 = vadd.f32 0.0, %v3367
  %v3369 = vpop.f32.mrf.mxu0
  %v3370 = vadd.f32 0.0, %v3369
  %3371 = vmatprep.mubr.bf16.mxu0 0
  %3372 = vmatmul.mubr.bf16.gmra.mxu0 %v2893
  %v3373 = vpop.f32.mrf.mxu0
  %v3374 = vadd.f32 0.0, %v3373
  %v3375 = vpop.f32.mrf.mxu0
  %v3376 = vadd.f32 0.0, %v3375
  %v3377 = vpop.f32.mrf.mxu0
  %v3378 = vadd.f32 0.0, %v3377
  %v3379 = vpop.f32.mrf.mxu0
  %v3380 = vadd.f32 0.0, %v3379
  %3381 = vmatprep.mubr.bf16.mxu0 0
  %3382 = vmatmul.mubr.bf16.gmra.mxu0 %v2896
  %v3383 = vpop.f32.mrf.mxu0
  %v3384 = vadd.f32 0.0, %v3383
  %v3385 = vpop.f32.mrf.mxu0
  %v3386 = vadd.f32 0.0, %v3385
  %v3387 = vpop.f32.mrf.mxu0
  %v3388 = vadd.f32 0.0, %v3387
  %v3389 = vpop.f32.mrf.mxu0
  %v3390 = vadd.f32 0.0, %v3389
  %3391 = vmatprep.mubr.bf16.mxu0 0
  %3392 = vmatmul.mubr.bf16.gmra.mxu0 %v2899
  %v3393 = vpop.f32.mrf.mxu0
  %v3394 = vadd.f32 0.0, %v3393
  %v3395 = vpop.f32.mrf.mxu0
  %v3396 = vadd.f32 0.0, %v3395
  %v3397 = vpop.f32.mrf.mxu0
  %v3398 = vadd.f32 0.0, %v3397
  %v3399 = vpop.f32.mrf.mxu0
  %v3400 = vadd.f32 0.0, %v3399
  %3401 = vmatprep.mubr.bf16.mxu0 0
  %3402 = vmatmul.mubr.bf16.gmra.mxu0 %v2902
  %v3403 = vpop.f32.mrf.mxu0
  %v3404 = vadd.f32 0.0, %v3403
  %v3405 = vpop.f32.mrf.mxu0
  %v3406 = vadd.f32 0.0, %v3405
  %v3407 = vpop.f32.mrf.mxu0
  %v3408 = vadd.f32 0.0, %v3407
  %v3409 = vpop.f32.mrf.mxu0
  %v3410 = vadd.f32 0.0, %v3409
  %3411 = vmatprep.mubr.bf16.mxu0 0
  %3412 = vmatmul.mubr.bf16.gmra.mxu0 %v2905
  %v3413 = vpop.f32.mrf.mxu0
  %v3414 = vadd.f32 0.0, %v3413
  %v3415 = vpop.f32.mrf.mxu0
  %v3416 = vadd.f32 0.0, %v3415
  %v3417 = vpop.f32.mrf.mxu0
  %v3418 = vadd.f32 0.0, %v3417
  %v3419 = vpop.f32.mrf.mxu0
  %v3420 = vadd.f32 0.0, %v3419
  %3421 = vmatprep.mubr.bf16.mxu0 0
  %3422 = vmatmul.mubr.bf16.gmra.mxu0 %v2908
  %v3423 = vpop.f32.mrf.mxu0
  %v3424 = vadd.f32 0.0, %v3423
  %v3425 = vpop.f32.mrf.mxu0
  %v3426 = vadd.f32 0.0, %v3425
  %v3427 = vpop.f32.mrf.mxu0
  %v3428 = vadd.f32 0.0, %v3427
  %v3429 = vpop.f32.mrf.mxu0
  %v3430 = vadd.f32 0.0, %v3429
  %3431 = vmatprep.mubr.bf16.mxu0 0
  %3432 = vmatmul.mubr.bf16.gmra.mxu0 %v2911
  %v3433 = vpop.f32.mrf.mxu0
  %v3434 = vadd.f32 0.0, %v3433
  %v3435 = vpop.f32.mrf.mxu0
  %v3436 = vadd.f32 0.0, %v3435
  %v3437 = vpop.f32.mrf.mxu0
  %v3438 = vadd.f32 0.0, %v3437
  %v3439 = vpop.f32.mrf.mxu0
  %v3440 = vadd.f32 0.0, %v3439
  %3441 = vmatprep.mubr.bf16.mxu0 0
  %3442 = vmatmul.mubr.bf16.gmra.mxu0 %v2914
  %v3443 = vpop.f32.mrf.mxu0
  %v3444 = vadd.f32 0.0, %v3443
  %v3445 = vpop.f32.mrf.mxu0
  %v3446 = vadd.f32 0.0, %v3445
  %v3447 = vpop.f32.mrf.mxu0
  %v3448 = vadd.f32 0.0, %v3447
  %v3449 = vpop.f32.mrf.mxu0
  %v3450 = vadd.f32 0.0, %v3449
  %3451 = vmatprep.mubr.bf16.mxu0 0
  %3452 = vmatmul.mubr.bf16.gmra.mxu0 %v3321
  %v3453 = vpop.f32.mrf.mxu0
  %v3454 = vadd.f32 0.0, %v3453
  %v3455 = vpop.f32.mrf.mxu0
  %v3456 = vadd.f32 0.0, %v3455
  %v3457 = vpop.f32.mrf.mxu0
  %v3458 = vadd.f32 0.0, %v3457
  %v3459 = vpop.f32.mrf.mxu0
  %v3460 = vadd.f32 0.0, %v3459
  %3461 = vdwg.mxu0
  %v3462 = vadd.f32 %v3155, %v3364
  %v3463 = vadd.f32 %v3157, %v3366
  %v3464 = vadd.f32 %v3159, %v3368
  %v3465 = vadd.f32 %v3161, %v3370
  %v3466 = vadd.f32 %v3165, %v3374
  %v3467 = vadd.f32 %v3167, %v3376
  %v3468 = vadd.f32 %v3169, %v3378
  %v3469 = vadd.f32 %v3171, %v3380
  %v3470 = vadd.f32 %v3175, %v3384
  %v3471 = vadd.f32 %v3177, %v3386
  %v3472 = vadd.f32 %v3179, %v3388
  %v3473 = vadd.f32 %v3181, %v3390
  %v3474 = vadd.f32 %v3185, %v3394
  %v3475 = vadd.f32 %v3187, %v3396
  %v3476 = vadd.f32 %v3189, %v3398
  %v3477 = vadd.f32 %v3191, %v3400
  %v3478 = vadd.f32 %v3195, %v3404
  %v3479 = vadd.f32 %v3197, %v3406
  %v3480 = vadd.f32 %v3199, %v3408
  %v3481 = vadd.f32 %v3201, %v3410
  %v3482 = vadd.f32 %v3205, %v3414
  %v3483 = vadd.f32 %v3207, %v3416
  %v3484 = vadd.f32 %v3209, %v3418
  %v3485 = vadd.f32 %v3211, %v3420
  %v3486 = vadd.f32 %v3215, %v3424
  %v3487 = vadd.f32 %v3217, %v3426
  %v3488 = vadd.f32 %v3219, %v3428
  %v3489 = vadd.f32 %v3221, %v3430
  %v3490 = vadd.f32 %v3225, %v3434
  %v3491 = vadd.f32 %v3227, %v3436
  %v3492 = vadd.f32 %v3229, %v3438
  %v3493 = vadd.f32 %v3231, %v3440
  %v3494 = vadd.f32 %v3235, %v3444
  %v3495 = vadd.f32 %v3237, %v3446
  %v3496 = vadd.f32 %v3239, %v3448
  %v3497 = vadd.f32 %v3241, %v3450
  %v3498 = vadd.f32 %v3245, %v3454
  %v3499 = vadd.f32 %v3247, %v3456
  %v3500 = vadd.f32 %v3249, %v3458
  %v3501 = vadd.f32 %v3251, %v3460
  %s3502 = scalar_lea.vmem %s3, 264
  %v3503 = vld [vmem:[%s3502] sm:$0xff]
  %v3504 = vld [vmem:[%s3502 + $0x8] sm:$0xff]
  %v3505 = vld [vmem:[%s3502 + $0x10] sm:$0xff]
  %v3506 = vld [vmem:[%s3502 + $0x18] sm:$0xff]
  %v3507 = vld [vmem:[%s3502 + $0x20] sm:$0xff]
  %v3508 = vld [vmem:[%s3502 + $0x28] sm:$0xff]
  %v3509 = vld [vmem:[%s3502 + $0x30] sm:$0xff]
  %v3510 = vld [vmem:[%s3502 + $0x38] sm:$0xff]
  %v3511 = vld [vmem:[%s3502 + $0x40] sm:$0xff]
  %v3512 = vld [vmem:[%s3502 + $0x48] sm:$0xff]
  %v3513 = vld [vmem:[%s3502 + $0x50] sm:$0x33]
  %v3525 = vunpack.c.l.b16 %v3503
  %v3526 = vunpack.c.h.b16 %v3503
  %v3527 = vunpack.c.l.b16 %v3504
  %v3528 = vunpack.c.h.b16 %v3504
  %v3529 = vunpack.c.l.b16 %v3505
  %v3530 = vunpack.c.h.b16 %v3505
  %v3531 = vunpack.c.l.b16 %v3506
  %v3532 = vunpack.c.h.b16 %v3506
  %v3533 = vunpack.c.l.b16 %v3507
  %v3534 = vunpack.c.h.b16 %v3507
  %v3535 = vunpack.c.l.b16 %v3508
  %v3536 = vunpack.c.h.b16 %v3508
  %v3537 = vunpack.c.l.b16 %v3509
  %v3538 = vunpack.c.h.b16 %v3509
  %v3539 = vunpack.c.l.b16 %v3510
  %v3540 = vunpack.c.h.b16 %v3510
  %v3541 = vunpack.c.l.b16 %v3511
  %v3542 = vunpack.c.h.b16 %v3511
  %v3543 = vunpack.c.l.b16 %v3512
  %v3544 = vunpack.c.h.b16 %v3512
  %v3545 = vunpack.c.l.b16 %v3513
  %v3546 = vunpack.c.h.b16 %v3513
  %v3547 = vpack.c.b16 %v3527, %v3525
  %v3548 = vpack.c.b16 %v3528, %v3526
  %v3549 = vpack.c.b16 %v3531, %v3529
  %v3550 = vpack.c.b16 %v3532, %v3530
  %v3551 = vpack.c.b16 %v3535, %v3533
  %v3552 = vpack.c.b16 %v3536, %v3534
  %v3553 = vpack.c.b16 %v3539, %v3537
  %v3554 = vpack.c.b16 %v3540, %v3538
  %v3555 = vpack.c.b16 %v3543, %v3541
  %v3556 = vpack.c.b16 %v3544, %v3542
  %v3557 = vpack.c.b16 %v3545, %v3545
  %v3558 = vpack.c.b16 %v3546, %v3546
  %v3570 = vsel %vm2885, %v2805, 0
  %v3573 = vsel %vm2916, %v3557, 0
  %v3576 = vsel %vm2916, %v3558, 0
  %3578 = vmatprep.subr.bf16.mxu0 0
  %3579 = vmatpush1.bf16.msra.mxu0 0
  %3580 = vmatprep.subr.bf16.mxu0 0
  %3581 = vmatpush1.bf16.msra.mxu0 0
  %3582 = vmatprep.subr.bf16.mxu0 %v3576
  %3583 = vmatpush1.bf16.msra.mxu0 %v3573
  %3584 = vmatprep.subr.bf16.mxu0 %v3556
  %3585 = vmatpush1.bf16.msra.mxu0 %v3555
  %3586 = vmatprep.subr.bf16.mxu0 %v3554
  %3587 = vmatpush1.bf16.msra.mxu0 %v3553
  %3588 = vmatprep.subr.bf16.mxu0 %v3552
  %3589 = vmatpush1.bf16.msra.mxu0 %v3551
  %3590 = vmatprep.subr.bf16.mxu0 %v3550
  %3591 = vmatpush1.bf16.msra.mxu0 %v3549
  %3592 = vmatprep.subr.bf16.mxu0 %v3548
  %3593 = vmatpush1.bf16.msra.mxu0 %v3547
  %3594 = vmatprep.subr.bf16.mxu0 0
  %3595 = vmatpush2.bf16.msra.mxu0 0
  %3596 = vmatprep.subr.bf16.mxu0 0
  %3597 = vmatpush2.bf16.msra.mxu0 0
  %3598 = vmatprep.subr.bf16.mxu0 0
  %3599 = vmatpush2.bf16.msra.mxu0 0
  %3600 = vmatprep.subr.bf16.mxu0 0
  %3601 = vmatpush2.bf16.msra.mxu0 0
  %3602 = vmatprep.subr.bf16.mxu0 0
  %3603 = vmatpush2.bf16.msra.mxu0 0
  %3604 = vmatprep.subr.bf16.mxu0 0
  %3605 = vmatpush2.bf16.msra.mxu0 0
  %3606 = vmatprep.subr.bf16.mxu0 0
  %3607 = vmatpush2.bf16.msra.mxu0 0
  %3608 = vmatprep.subr.bf16.mxu0 0
  %3609 = vmatpush2.bf16.msra.mxu0 0
  %3610 = vmatprep.mubr.bf16.mxu0 0
  %3611 = vmatmul.mubr.bf16.gmra.mxu0 %v2893
  %v3612 = vpop.f32.mrf.mxu0
  %v3613 = vadd.f32 0.0, %v3612
  %v3614 = vpop.f32.mrf.mxu0
  %v3615 = vadd.f32 0.0, %v3614
  %v3616 = vpop.f32.mrf.mxu0
  %v3617 = vadd.f32 0.0, %v3616
  %v3618 = vpop.f32.mrf.mxu0
  %v3619 = vadd.f32 0.0, %v3618
  %3620 = vmatprep.mubr.bf16.mxu0 0
  %3621 = vmatmul.mubr.bf16.gmra.mxu0 %v2896
  %v3622 = vpop.f32.mrf.mxu0
  %v3623 = vadd.f32 0.0, %v3622
  %v3624 = vpop.f32.mrf.mxu0
  %v3625 = vadd.f32 0.0, %v3624
  %v3626 = vpop.f32.mrf.mxu0
  %v3627 = vadd.f32 0.0, %v3626
  %v3628 = vpop.f32.mrf.mxu0
  %v3629 = vadd.f32 0.0, %v3628
  %3630 = vmatprep.mubr.bf16.mxu0 0
  %3631 = vmatmul.mubr.bf16.gmra.mxu0 %v2899
  %v3632 = vpop.f32.mrf.mxu0
  %v3633 = vadd.f32 0.0, %v3632
  %v3634 = vpop.f32.mrf.mxu0
  %v3635 = vadd.f32 0.0, %v3634
  %v3636 = vpop.f32.mrf.mxu0
  %v3637 = vadd.f32 0.0, %v3636
  %v3638 = vpop.f32.mrf.mxu0
  %v3639 = vadd.f32 0.0, %v3638
  %3640 = vmatprep.mubr.bf16.mxu0 0
  %3641 = vmatmul.mubr.bf16.gmra.mxu0 %v2902
  %v3642 = vpop.f32.mrf.mxu0
  %v3643 = vadd.f32 0.0, %v3642
  %v3644 = vpop.f32.mrf.mxu0
  %v3645 = vadd.f32 0.0, %v3644
  %v3646 = vpop.f32.mrf.mxu0
  %v3647 = vadd.f32 0.0, %v3646
  %v3648 = vpop.f32.mrf.mxu0
  %v3649 = vadd.f32 0.0, %v3648
  %3650 = vmatprep.mubr.bf16.mxu0 0
  %3651 = vmatmul.mubr.bf16.gmra.mxu0 %v2905
  %v3652 = vpop.f32.mrf.mxu0
  %v3653 = vadd.f32 0.0, %v3652
  %v3654 = vpop.f32.mrf.mxu0
  %v3655 = vadd.f32 0.0, %v3654
  %v3656 = vpop.f32.mrf.mxu0
  %v3657 = vadd.f32 0.0, %v3656
  %v3658 = vpop.f32.mrf.mxu0
  %v3659 = vadd.f32 0.0, %v3658
  %3660 = vmatprep.mubr.bf16.mxu0 0
  %3661 = vmatmul.mubr.bf16.gmra.mxu0 %v2908
  %v3662 = vpop.f32.mrf.mxu0
  %v3663 = vadd.f32 0.0, %v3662
  %v3664 = vpop.f32.mrf.mxu0
  %v3665 = vadd.f32 0.0, %v3664
  %v3666 = vpop.f32.mrf.mxu0
  %v3667 = vadd.f32 0.0, %v3666
  %v3668 = vpop.f32.mrf.mxu0
  %v3669 = vadd.f32 0.0, %v3668
  %3670 = vmatprep.mubr.bf16.mxu0 0
  %3671 = vmatmul.mubr.bf16.gmra.mxu0 %v2911
  %v3672 = vpop.f32.mrf.mxu0
  %v3673 = vadd.f32 0.0, %v3672
  %v3674 = vpop.f32.mrf.mxu0
  %v3675 = vadd.f32 0.0, %v3674
  %v3676 = vpop.f32.mrf.mxu0
  %v3677 = vadd.f32 0.0, %v3676
  %v3678 = vpop.f32.mrf.mxu0
  %v3679 = vadd.f32 0.0, %v3678
  %3680 = vmatprep.mubr.bf16.mxu0 0
  %3681 = vmatmul.mubr.bf16.gmra.mxu0 %v2914
  %v3682 = vpop.f32.mrf.mxu0
  %v3683 = vadd.f32 0.0, %v3682
  %v3684 = vpop.f32.mrf.mxu0
  %v3685 = vadd.f32 0.0, %v3684
  %v3686 = vpop.f32.mrf.mxu0
  %v3687 = vadd.f32 0.0, %v3686
  %v3688 = vpop.f32.mrf.mxu0
  %v3689 = vadd.f32 0.0, %v3688
  %3690 = vmatprep.mubr.bf16.mxu0 0
  %3691 = vmatmul.mubr.bf16.gmra.mxu0 %v3321
  %v3692 = vpop.f32.mrf.mxu0
  %v3693 = vadd.f32 0.0, %v3692
  %v3694 = vpop.f32.mrf.mxu0
  %v3695 = vadd.f32 0.0, %v3694
  %v3696 = vpop.f32.mrf.mxu0
  %v3697 = vadd.f32 0.0, %v3696
  %v3698 = vpop.f32.mrf.mxu0
  %v3699 = vadd.f32 0.0, %v3698
  %3700 = vmatprep.mubr.bf16.mxu0 0
  %3701 = vmatmul.mubr.bf16.gmra.mxu0 %v3570
  %v3702 = vpop.f32.mrf.mxu0
  %v3703 = vadd.f32 0.0, %v3702
  %v3704 = vpop.f32.mrf.mxu0
  %v3705 = vadd.f32 0.0, %v3704
  %v3706 = vpop.f32.mrf.mxu0
  %v3707 = vadd.f32 0.0, %v3706
  %v3708 = vpop.f32.mrf.mxu0
  %v3709 = vadd.f32 0.0, %v3708
  %3710 = vdwg.mxu0
  %v3711 = vadd.f32 %v3462, %v3613
  %v3712 = vadd.f32 %v3463, %v3615
  %v3713 = vadd.f32 %v3464, %v3617
  %v3714 = vadd.f32 %v3465, %v3619
  %v3715 = vadd.f32 %v3466, %v3623
  %v3716 = vadd.f32 %v3467, %v3625
  %v3717 = vadd.f32 %v3468, %v3627
  %v3718 = vadd.f32 %v3469, %v3629
  %v3719 = vadd.f32 %v3470, %v3633
  %v3720 = vadd.f32 %v3471, %v3635
  %v3721 = vadd.f32 %v3472, %v3637
  %v3722 = vadd.f32 %v3473, %v3639
  %v3723 = vadd.f32 %v3474, %v3643
  %v3724 = vadd.f32 %v3475, %v3645
  %v3725 = vadd.f32 %v3476, %v3647
  %v3726 = vadd.f32 %v3477, %v3649
  %v3727 = vadd.f32 %v3478, %v3653
  %v3728 = vadd.f32 %v3479, %v3655
  %v3729 = vadd.f32 %v3480, %v3657
  %v3730 = vadd.f32 %v3481, %v3659
  %v3731 = vadd.f32 %v3482, %v3663
  %v3732 = vadd.f32 %v3483, %v3665
  %v3733 = vadd.f32 %v3484, %v3667
  %v3734 = vadd.f32 %v3485, %v3669
  %v3735 = vadd.f32 %v3486, %v3673
  %v3736 = vadd.f32 %v3487, %v3675
  %v3737 = vadd.f32 %v3488, %v3677
  %v3738 = vadd.f32 %v3489, %v3679
  %v3739 = vadd.f32 %v3490, %v3683
  %v3740 = vadd.f32 %v3491, %v3685
  %v3741 = vadd.f32 %v3492, %v3687
  %v3742 = vadd.f32 %v3493, %v3689
  %v3743 = vadd.f32 %v3494, %v3693
  %v3744 = vadd.f32 %v3495, %v3695
  %v3745 = vadd.f32 %v3496, %v3697
  %v3746 = vadd.f32 %v3497, %v3699
  %v3747 = vadd.f32 %v3498, %v3703
  %v3748 = vadd.f32 %v3499, %v3705
  %v3749 = vadd.f32 %v3500, %v3707
  %v3750 = vadd.f32 %v3501, %v3709
  %s3751 = scalar_lea.vmem %s3, 352
  %v3752 = vld [vmem:[%s3751] sm:$0xff]
  %v3753 = vld [vmem:[%s3751 + $0x8] sm:$0xff]
  %v3754 = vld [vmem:[%s3751 + $0x10] sm:$0xff]
  %v3755 = vld [vmem:[%s3751 + $0x18] sm:$0xff]
  %v3756 = vld [vmem:[%s3751 + $0x20] sm:$0xff]
  %v3757 = vld [vmem:[%s3751 + $0x28] sm:$0xff]
  %v3758 = vld [vmem:[%s3751 + $0x30] sm:$0xff]
  %v3759 = vld [vmem:[%s3751 + $0x38] sm:$0xff]
  %v3760 = vld [vmem:[%s3751 + $0x40] sm:$0xff]
  %v3761 = vld [vmem:[%s3751 + $0x48] sm:$0xff]
  %v3762 = vld [vmem:[%s3751 + $0x50] sm:$0x33]
  %v3774 = vunpack.c.l.b16 %v3752
  %v3775 = vunpack.c.h.b16 %v3752
  %v3776 = vunpack.c.l.b16 %v3753
  %v3777 = vunpack.c.h.b16 %v3753
  %v3778 = vunpack.c.l.b16 %v3754
  %v3779 = vunpack.c.h.b16 %v3754
  %v3780 = vunpack.c.l.b16 %v3755
  %v3781 = vunpack.c.h.b16 %v3755
  %v3782 = vunpack.c.l.b16 %v3756
  %v3783 = vunpack.c.h.b16 %v3756
  %v3784 = vunpack.c.l.b16 %v3757
  %v3785 = vunpack.c.h.b16 %v3757
  %v3786 = vunpack.c.l.b16 %v3758
  %v3787 = vunpack.c.h.b16 %v3758
  %v3788 = vunpack.c.l.b16 %v3759
  %v3789 = vunpack.c.h.b16 %v3759
  %v3790 = vunpack.c.l.b16 %v3760
  %v3791 = vunpack.c.h.b16 %v3760
  %v3792 = vunpack.c.l.b16 %v3761
  %v3793 = vunpack.c.h.b16 %v3761
  %v3794 = vunpack.c.l.b16 %v3762
  %v3795 = vunpack.c.h.b16 %v3762
  %v3796 = vpack.c.b16 %v3776, %v3774
  %v3797 = vpack.c.b16 %v3777, %v3775
  %v3798 = vpack.c.b16 %v3780, %v3778
  %v3799 = vpack.c.b16 %v3781, %v3779
  %v3800 = vpack.c.b16 %v3784, %v3782
  %v3801 = vpack.c.b16 %v3785, %v3783
  %v3802 = vpack.c.b16 %v3788, %v3786
  %v3803 = vpack.c.b16 %v3789, %v3787
  %v3804 = vpack.c.b16 %v3792, %v3790
  %v3805 = vpack.c.b16 %v3793, %v3791
  %v3806 = vpack.c.b16 %v3794, %v3794
  %v3807 = vpack.c.b16 %v3795, %v3795
  %v3819 = vsel %vm2885, %v2806, 0
  %v3822 = vsel %vm2916, %v3806, 0
  %v3825 = vsel %vm2916, %v3807, 0
  %3827 = vmatprep.subr.bf16.mxu0 0
  %3828 = vmatpush1.bf16.msra.mxu0 0
  %3829 = vmatprep.subr.bf16.mxu0 0
  %3830 = vmatpush1.bf16.msra.mxu0 0
  %3831 = vmatprep.subr.bf16.mxu0 %v3825
  %3832 = vmatpush1.bf16.msra.mxu0 %v3822
  %3833 = vmatprep.subr.bf16.mxu0 %v3805
  %3834 = vmatpush1.bf16.msra.mxu0 %v3804
  %3835 = vmatprep.subr.bf16.mxu0 %v3803
  %3836 = vmatpush1.bf16.msra.mxu0 %v3802
  %3837 = vmatprep.subr.bf16.mxu0 %v3801
  %3838 = vmatpush1.bf16.msra.mxu0 %v3800
  %3839 = vmatprep.subr.bf16.mxu0 %v3799
  %3840 = vmatpush1.bf16.msra.mxu0 %v3798
  %3841 = vmatprep.subr.bf16.mxu0 %v3797
  %3842 = vmatpush1.bf16.msra.mxu0 %v3796
  %3843 = vmatprep.subr.bf16.mxu0 0
  %3844 = vmatpush2.bf16.msra.mxu0 0
  %3845 = vmatprep.subr.bf16.mxu0 0
  %3846 = vmatpush2.bf16.msra.mxu0 0
  %3847 = vmatprep.subr.bf16.mxu0 0
  %3848 = vmatpush2.bf16.msra.mxu0 0
  %3849 = vmatprep.subr.bf16.mxu0 0
  %3850 = vmatpush2.bf16.msra.mxu0 0
  %3851 = vmatprep.subr.bf16.mxu0 0
  %3852 = vmatpush2.bf16.msra.mxu0 0
  %3853 = vmatprep.subr.bf16.mxu0 0
  %3854 = vmatpush2.bf16.msra.mxu0 0
  %3855 = vmatprep.subr.bf16.mxu0 0
  %3856 = vmatpush2.bf16.msra.mxu0 0
  %3857 = vmatprep.subr.bf16.mxu0 0
  %3858 = vmatpush2.bf16.msra.mxu0 0
  %3859 = vmatprep.mubr.bf16.mxu0 0
  %3860 = vmatmul.mubr.bf16.gmra.mxu0 %v2896
  %v3861 = vpop.f32.mrf.mxu0
  %v3862 = vadd.f32 0.0, %v3861
  %v3863 = vpop.f32.mrf.mxu0
  %v3864 = vadd.f32 0.0, %v3863
  %v3865 = vpop.f32.mrf.mxu0
  %v3866 = vadd.f32 0.0, %v3865
  %v3867 = vpop.f32.mrf.mxu0
  %v3868 = vadd.f32 0.0, %v3867
  %3869 = vmatprep.mubr.bf16.mxu0 0
  %3870 = vmatmul.mubr.bf16.gmra.mxu0 %v2899
  %v3871 = vpop.f32.mrf.mxu0
  %v3872 = vadd.f32 0.0, %v3871
  %v3873 = vpop.f32.mrf.mxu0
  %v3874 = vadd.f32 0.0, %v3873
  %v3875 = vpop.f32.mrf.mxu0
  %v3876 = vadd.f32 0.0, %v3875
  %v3877 = vpop.f32.mrf.mxu0
  %v3878 = vadd.f32 0.0, %v3877
  %3879 = vmatprep.mubr.bf16.mxu0 0
  %3880 = vmatmul.mubr.bf16.gmra.mxu0 %v2902
  %v3881 = vpop.f32.mrf.mxu0
  %v3882 = vadd.f32 0.0, %v3881
  %v3883 = vpop.f32.mrf.mxu0
  %v3884 = vadd.f32 0.0, %v3883
  %v3885 = vpop.f32.mrf.mxu0
  %v3886 = vadd.f32 0.0, %v3885
  %v3887 = vpop.f32.mrf.mxu0
  %v3888 = vadd.f32 0.0, %v3887
  %3889 = vmatprep.mubr.bf16.mxu0 0
  %3890 = vmatmul.mubr.bf16.gmra.mxu0 %v2905
  %v3891 = vpop.f32.mrf.mxu0
  %v3892 = vadd.f32 0.0, %v3891
  %v3893 = vpop.f32.mrf.mxu0
  %v3894 = vadd.f32 0.0, %v3893
  %v3895 = vpop.f32.mrf.mxu0
  %v3896 = vadd.f32 0.0, %v3895
  %v3897 = vpop.f32.mrf.mxu0
  %v3898 = vadd.f32 0.0, %v3897
  %3899 = vmatprep.mubr.bf16.mxu0 0
  %3900 = vmatmul.mubr.bf16.gmra.mxu0 %v2908
  %v3901 = vpop.f32.mrf.mxu0
  %v3902 = vadd.f32 0.0, %v3901
  %v3903 = vpop.f32.mrf.mxu0
  %v3904 = vadd.f32 0.0, %v3903
  %v3905 = vpop.f32.mrf.mxu0
  %v3906 = vadd.f32 0.0, %v3905
  %v3907 = vpop.f32.mrf.mxu0
  %v3908 = vadd.f32 0.0, %v3907
  %3909 = vmatprep.mubr.bf16.mxu0 0
  %3910 = vmatmul.mubr.bf16.gmra.mxu0 %v2911
  %v3911 = vpop.f32.mrf.mxu0
  %v3912 = vadd.f32 0.0, %v3911
  %v3913 = vpop.f32.mrf.mxu0
  %v3914 = vadd.f32 0.0, %v3913
  %v3915 = vpop.f32.mrf.mxu0
  %v3916 = vadd.f32 0.0, %v3915
  %v3917 = vpop.f32.mrf.mxu0
  %v3918 = vadd.f32 0.0, %v3917
  %3919 = vmatprep.mubr.bf16.mxu0 0
  %3920 = vmatmul.mubr.bf16.gmra.mxu0 %v2914
  %v3921 = vpop.f32.mrf.mxu0
  %v3922 = vadd.f32 0.0, %v3921
  %v3923 = vpop.f32.mrf.mxu0
  %v3924 = vadd.f32 0.0, %v3923
  %v3925 = vpop.f32.mrf.mxu0
  %v3926 = vadd.f32 0.0, %v3925
  %v3927 = vpop.f32.mrf.mxu0
  %v3928 = vadd.f32 0.0, %v3927
  %3929 = vmatprep.mubr.bf16.mxu0 0
  %3930 = vmatmul.mubr.bf16.gmra.mxu0 %v3321
  %v3931 = vpop.f32.mrf.mxu0
  %v3932 = vadd.f32 0.0, %v3931
  %v3933 = vpop.f32.mrf.mxu0
  %v3934 = vadd.f32 0.0, %v3933
  %v3935 = vpop.f32.mrf.mxu0
  %v3936 = vadd.f32 0.0, %v3935
  %v3937 = vpop.f32.mrf.mxu0
  %v3938 = vadd.f32 0.0, %v3937
  %3939 = vmatprep.mubr.bf16.mxu0 0
  %3940 = vmatmul.mubr.bf16.gmra.mxu0 %v3570
  %v3941 = vpop.f32.mrf.mxu0
  %v3942 = vadd.f32 0.0, %v3941
  %v3943 = vpop.f32.mrf.mxu0
  %v3944 = vadd.f32 0.0, %v3943
  %v3945 = vpop.f32.mrf.mxu0
  %v3946 = vadd.f32 0.0, %v3945
  %v3947 = vpop.f32.mrf.mxu0
  %v3948 = vadd.f32 0.0, %v3947
  %3949 = vmatprep.mubr.bf16.mxu0 0
  %3950 = vmatmul.mubr.bf16.gmra.mxu0 %v3819
  %v3951 = vpop.f32.mrf.mxu0
  %v3952 = vadd.f32 0.0, %v3951
  %v3953 = vpop.f32.mrf.mxu0
  %v3954 = vadd.f32 0.0, %v3953
  %v3955 = vpop.f32.mrf.mxu0
  %v3956 = vadd.f32 0.0, %v3955
  %v3957 = vpop.f32.mrf.mxu0
  %v3958 = vadd.f32 0.0, %v3957
  %3959 = vdwg.mxu0
  %v3960 = vadd.f32 %v3711, %v3862
  %v3961 = vadd.f32 %v3712, %v3864
  %v3962 = vadd.f32 %v3713, %v3866
  %v3963 = vadd.f32 %v3714, %v3868
  %v3964 = vadd.f32 %v3715, %v3872
  %v3965 = vadd.f32 %v3716, %v3874
  %v3966 = vadd.f32 %v3717, %v3876
  %v3967 = vadd.f32 %v3718, %v3878
  %v3968 = vadd.f32 %v3719, %v3882
  %v3969 = vadd.f32 %v3720, %v3884
  %v3970 = vadd.f32 %v3721, %v3886
  %v3971 = vadd.f32 %v3722, %v3888
  %v3972 = vadd.f32 %v3723, %v3892
  %v3973 = vadd.f32 %v3724, %v3894
  %v3974 = vadd.f32 %v3725, %v3896
  %v3975 = vadd.f32 %v3726, %v3898
  %v3976 = vadd.f32 %v3727, %v3902
  %v3977 = vadd.f32 %v3728, %v3904
  %v3978 = vadd.f32 %v3729, %v3906
  %v3979 = vadd.f32 %v3730, %v3908
  %v3980 = vadd.f32 %v3731, %v3912
  %v3981 = vadd.f32 %v3732, %v3914
  %v3982 = vadd.f32 %v3733, %v3916
  %v3983 = vadd.f32 %v3734, %v3918
  %v3984 = vadd.f32 %v3735, %v3922
  %v3985 = vadd.f32 %v3736, %v3924
  %v3986 = vadd.f32 %v3737, %v3926
  %v3987 = vadd.f32 %v3738, %v3928
  %v3988 = vadd.f32 %v3739, %v3932
  %v3989 = vadd.f32 %v3740, %v3934
  %v3990 = vadd.f32 %v3741, %v3936
  %v3991 = vadd.f32 %v3742, %v3938
  %v3992 = vadd.f32 %v3743, %v3942
  %v3993 = vadd.f32 %v3744, %v3944
  %v3994 = vadd.f32 %v3745, %v3946
  %v3995 = vadd.f32 %v3746, %v3948
  %v3996 = vadd.f32 %v3747, %v3952
  %v3997 = vadd.f32 %v3748, %v3954
  %v3998 = vadd.f32 %v3749, %v3956
  %v3999 = vadd.f32 %v3750, %v3958
  %v4000 = vld [vmem:[%s4] sm:$0x3]
  %v4002 = vlaneseq
  %v4003 = vshrl.u32 %v4002, 7
  %v4004 = vsub.s32 0, %v4003
  %v4005 = vrot.slane %v4000, %v4004
  %v4006 = vlaneseq
  %v4007 = vshrl.u32 %v4006, 7
  %v4008 = vsub.s32 1, %v4007
  %v4009 = vrot.slane %v4000, %v4008
  %v4012 = vadd.f32 %v3960, %v4005
  %v4013 = vadd.f32 %v3961, %v4009
  %v4014 = vadd.f32 %v3962, %v4005
  %v4015 = vadd.f32 %v3963, %v4009
  %v4016 = vadd.f32 %v3964, %v4005
  %v4017 = vadd.f32 %v3965, %v4009
  %v4018 = vadd.f32 %v3966, %v4005
  %v4019 = vadd.f32 %v3967, %v4009
  %v4020 = vadd.f32 %v3968, %v4005
  %v4021 = vadd.f32 %v3969, %v4009
  %v4022 = vadd.f32 %v3970, %v4005
  %v4023 = vadd.f32 %v3971, %v4009
  %v4024 = vadd.f32 %v3972, %v4005
  %v4025 = vadd.f32 %v3973, %v4009
  %v4026 = vadd.f32 %v3974, %v4005
  %v4027 = vadd.f32 %v3975, %v4009
  %v4028 = vadd.f32 %v3976, %v4005
  %v4029 = vadd.f32 %v3977, %v4009
  %v4030 = vadd.f32 %v3978, %v4005
  %v4031 = vadd.f32 %v3979, %v4009
  %v4032 = vadd.f32 %v3980, %v4005
  %v4033 = vadd.f32 %v3981, %v4009
  %v4034 = vadd.f32 %v3982, %v4005
  %v4035 = vadd.f32 %v3983, %v4009
  %v4036 = vadd.f32 %v3984, %v4005
  %v4037 = vadd.f32 %v3985, %v4009
  %v4038 = vadd.f32 %v3986, %v4005
  %v4039 = vadd.f32 %v3987, %v4009
  %v4040 = vadd.f32 %v3988, %v4005
  %v4041 = vadd.f32 %v3989, %v4009
  %v4042 = vadd.f32 %v3990, %v4005
  %v4043 = vadd.f32 %v3991, %v4009
  %v4044 = vadd.f32 %v3992, %v4005
  %v4045 = vadd.f32 %v3993, %v4009
  %v4046 = vadd.f32 %v3994, %v4005
  %v4047 = vadd.f32 %v3995, %v4009
  %v4048 = vadd.f32 %v3996, %v4005
  %v4049 = vadd.f32 %v3997, %v4009
  %v4050 = vadd.f32 %v3998, %v4005
  %v4051 = vadd.f32 %v3999, %v4009
  %v4052 = vmax.f32 %v4012, 0.0
  %v4053 = vmax.f32 %v4013, 0.0
  %v4054 = vmax.f32 %v4014, 0.0
  %v4055 = vmax.f32 %v4015, 0.0
  %v4056 = vmax.f32 %v4016, 0.0
  %v4057 = vmax.f32 %v4017, 0.0
  %v4058 = vmax.f32 %v4018, 0.0
  %v4059 = vmax.f32 %v4019, 0.0
  %v4060 = vmax.f32 %v4020, 0.0
  %v4061 = vmax.f32 %v4021, 0.0
  %v4062 = vmax.f32 %v4022, 0.0
  %v4063 = vmax.f32 %v4023, 0.0
  %v4064 = vmax.f32 %v4024, 0.0
  %v4065 = vmax.f32 %v4025, 0.0
  %v4066 = vmax.f32 %v4026, 0.0
  %v4067 = vmax.f32 %v4027, 0.0
  %v4068 = vmax.f32 %v4028, 0.0
  %v4069 = vmax.f32 %v4029, 0.0
  %v4070 = vmax.f32 %v4030, 0.0
  %v4071 = vmax.f32 %v4031, 0.0
  %v4072 = vmax.f32 %v4032, 0.0
  %v4073 = vmax.f32 %v4033, 0.0
  %v4074 = vmax.f32 %v4034, 0.0
  %v4075 = vmax.f32 %v4035, 0.0
  %v4076 = vmax.f32 %v4036, 0.0
  %v4077 = vmax.f32 %v4037, 0.0
  %v4078 = vmax.f32 %v4038, 0.0
  %v4079 = vmax.f32 %v4039, 0.0
  %v4080 = vmax.f32 %v4040, 0.0
  %v4081 = vmax.f32 %v4041, 0.0
  %v4082 = vmax.f32 %v4042, 0.0
  %v4083 = vmax.f32 %v4043, 0.0
  %v4084 = vmax.f32 %v4044, 0.0
  %v4085 = vmax.f32 %v4045, 0.0
  %v4086 = vmax.f32 %v4046, 0.0
  %v4087 = vmax.f32 %v4047, 0.0
  %v4088 = vmax.f32 %v4048, 0.0
  %v4089 = vmax.f32 %v4049, 0.0
  %v4090 = vmax.f32 %v4050, 0.0
  %v4091 = vmax.f32 %v4051, 0.0
  %v4092 = vpack.c.bf16 %v4054, %v4052
  %v4093 = vpack.c.bf16 %v4055, %v4053
  %v4094 = vpack.c.bf16 %v4058, %v4056
  %v4095 = vpack.c.bf16 %v4059, %v4057
  %v4096 = vpack.c.bf16 %v4062, %v4060
  %v4097 = vpack.c.bf16 %v4063, %v4061
  %v4098 = vpack.c.bf16 %v4066, %v4064
  %v4099 = vpack.c.bf16 %v4067, %v4065
  %v4100 = vpack.c.bf16 %v4070, %v4068
  %v4101 = vpack.c.bf16 %v4071, %v4069
  %v4102 = vpack.c.bf16 %v4074, %v4072
  %v4103 = vpack.c.bf16 %v4075, %v4073
  %v4104 = vpack.c.bf16 %v4078, %v4076
  %v4105 = vpack.c.bf16 %v4079, %v4077
  %v4106 = vpack.c.bf16 %v4082, %v4080
  %v4107 = vpack.c.bf16 %v4083, %v4081
  %v4108 = vpack.c.bf16 %v4086, %v4084
  %v4109 = vpack.c.bf16 %v4087, %v4085
  %v4110 = vpack.c.bf16 %v4090, %v4088
  %v4111 = vpack.c.bf16 %v4091, %v4089
  %v4112 = vld [vmem:[%s10] sm:$0xf]
  %v4113 = vld [vmem:[%s10 + $0x4] sm:$0xf]
  %v4114 = vld [vmem:[%s10 + $0x8] sm:$0xf]
  %v4115 = vld [vmem:[%s10 + $0xc] sm:$0xf]
  %v4116 = vld [vmem:[%s10 + $0x10] sm:$0xf]
  %v4117 = vld [vmem:[%s10 + $0x14] sm:$0xf]
  %v4118 = vld [vmem:[%s10 + $0x18] sm:$0xf]
  %v4119 = vld [vmem:[%s10 + $0x1c] sm:$0xf]
  %v4120 = vld [vmem:[%s10 + $0x20] sm:$0xf]
  %v4121 = vld [vmem:[%s10 + $0x24] sm:$0xf]
  %v4122 = vld [vmem:[%s10 + $0x28] sm:$0xf]
  %v4123 = vld [vmem:[%s10 + $0x2c] sm:$0xf]
  %v4124 = vld [vmem:[%s10 + $0x30] sm:$0xf]
  %v4125 = vld [vmem:[%s10 + $0x34] sm:$0xf]
  %v4126 = vld [vmem:[%s10 + $0x38] sm:$0xf]
  %v4127 = vld [vmem:[%s10 + $0x3c] sm:$0xf]
  %v4128 = vld [vmem:[%s10 + $0x40] sm:$0xf]
  %v4129 = vld [vmem:[%s10 + $0x44] sm:$0xf]
  %v4130 = vld [vmem:[%s10 + $0x48] sm:$0xf]
  %v4131 = vld [vmem:[%s10 + $0x4c] sm:$0xf]
  %v4152 = vunpack.c.l.b16 %v4112
  %v4153 = vunpack.c.l.b16 %v4113
  %v4154 = vunpack.c.l.b16 %v4114
  %v4155 = vunpack.c.l.b16 %v4115
  %v4156 = vunpack.c.l.b16 %v4116
  %v4157 = vunpack.c.l.b16 %v4117
  %v4158 = vunpack.c.l.b16 %v4118
  %v4159 = vunpack.c.l.b16 %v4119
  %v4160 = vunpack.c.l.b16 %v4120
  %v4161 = vunpack.c.l.b16 %v4121
  %v4162 = vunpack.c.l.b16 %v4122
  %v4163 = vunpack.c.l.b16 %v4123
  %v4164 = vunpack.c.l.b16 %v4124
  %v4165 = vunpack.c.l.b16 %v4125
  %v4166 = vunpack.c.l.b16 %v4126
  %v4167 = vunpack.c.l.b16 %v4127
  %v4168 = vunpack.c.l.b16 %v4128
  %v4169 = vunpack.c.l.b16 %v4129
  %v4170 = vunpack.c.l.b16 %v4130
  %v4171 = vunpack.c.l.b16 %v4131
  %v4172 = vpack.c.b16 %v4153, %v4152
  %v4173 = vpack.c.b16 %v4155, %v4154
  %v4174 = vpack.c.b16 %v4157, %v4156
  %v4175 = vpack.c.b16 %v4159, %v4158
  %v4176 = vpack.c.b16 %v4161, %v4160
  %v4177 = vpack.c.b16 %v4163, %v4162
  %v4178 = vpack.c.b16 %v4165, %v4164
  %v4179 = vpack.c.b16 %v4167, %v4166
  %v4180 = vpack.c.b16 %v4169, %v4168
  %v4181 = vpack.c.b16 %v4171, %v4170
  %vm4192 = vcmask 261120
  %v4194 = vsel %vm4192, %v4093, 0
  %v4197 = vsel %vm4192, %v4095, 0
  %v4200 = vsel %vm4192, %v4097, 0
  %v4203 = vsel %vm4192, %v4099, 0
  %v4206 = vsel %vm4192, %v4101, 0
  %v4209 = vsel %vm4192, %v4103, 0
  %v4212 = vsel %vm4192, %v4105, 0
  %v4215 = vsel %vm4192, %v4107, 0
  %v4218 = vsel %vm4192, %v4109, 0
  %v4221 = vsel %vm4192, %v4111, 0
  %4223 = vmatprep.subr.bf16.mxu0 0
  %4224 = vmatpush1.bf16.msra.mxu0 %v4179
  %4225 = vmatprep.subr.bf16.mxu0 0
  %4226 = vmatpush1.bf16.msra.mxu0 %v4178
  %4227 = vmatprep.subr.bf16.mxu0 0
  %4228 = vmatpush1.bf16.msra.mxu0 %v4177
  %4229 = vmatprep.subr.bf16.mxu0 0
  %4230 = vmatpush1.bf16.msra.mxu0 %v4176
  %4231 = vmatprep.subr.bf16.mxu0 0
  %4232 = vmatpush1.bf16.msra.mxu0 %v4175
  %4233 = vmatprep.subr.bf16.mxu0 0
  %4234 = vmatpush1.bf16.msra.mxu0 %v4174
  %4235 = vmatprep.subr.bf16.mxu0 0
  %4236 = vmatpush1.bf16.msra.mxu0 %v4173
  %4237 = vmatprep.subr.bf16.mxu0 0
  %4238 = vmatpush1.bf16.msra.mxu0 %v4172
  %4239 = vmatprep.subr.bf16.mxu0 0
  %4240 = vmatpush2.bf16.msra.mxu0 0
  %4241 = vmatprep.subr.bf16.mxu0 0
  %4242 = vmatpush2.bf16.msra.mxu0 0
  %4243 = vmatprep.subr.bf16.mxu0 0
  %4244 = vmatpush2.bf16.msra.mxu0 0
  %4245 = vmatprep.subr.bf16.mxu0 0
  %4246 = vmatpush2.bf16.msra.mxu0 0
  %4247 = vmatprep.subr.bf16.mxu0 0
  %4248 = vmatpush2.bf16.msra.mxu0 0
  %4249 = vmatprep.subr.bf16.mxu0 0
  %4250 = vmatpush2.bf16.msra.mxu0 0
  %4251 = vmatprep.subr.bf16.mxu0 0
  %4252 = vmatpush2.bf16.msra.mxu0 %v4181
  %4253 = vmatprep.subr.bf16.mxu0 0
  %4254 = vmatpush2.bf16.msra.mxu0 %v4180
  %4255 = vmatprep.mubr.bf16.mxu0 %v4194
  %4256 = vmatmul.mubr.bf16.gmra.mxu0 %v4092
  %v4257 = vpop.f32.mrf.mxu0
  %v4258 = vadd.f32 0.0, %v4257
  %v4259 = vpop.f32.mrf.mxu0
  %v4260 = vpop.f32.mrf.mxu0
  %v4261 = vadd.f32 0.0, %v4260
  %v4262 = vpop.f32.mrf.mxu0
  %4263 = vmatprep.mubr.bf16.mxu0 %v4197
  %4264 = vmatmul.mubr.bf16.gmra.mxu0 %v4094
  %v4265 = vpop.f32.mrf.mxu0
  %v4266 = vadd.f32 0.0, %v4265
  %v4267 = vpop.f32.mrf.mxu0
  %v4268 = vpop.f32.mrf.mxu0
  %v4269 = vadd.f32 0.0, %v4268
  %v4270 = vpop.f32.mrf.mxu0
  %4271 = vmatprep.mubr.bf16.mxu0 %v4200
  %4272 = vmatmul.mubr.bf16.gmra.mxu0 %v4096
  %v4273 = vpop.f32.mrf.mxu0
  %v4274 = vadd.f32 0.0, %v4273
  %v4275 = vpop.f32.mrf.mxu0
  %v4276 = vpop.f32.mrf.mxu0
  %v4277 = vadd.f32 0.0, %v4276
  %v4278 = vpop.f32.mrf.mxu0
  %4279 = vmatprep.mubr.bf16.mxu0 %v4203
  %4280 = vmatmul.mubr.bf16.gmra.mxu0 %v4098
  %v4281 = vpop.f32.mrf.mxu0
  %v4282 = vadd.f32 0.0, %v4281
  %v4283 = vpop.f32.mrf.mxu0
  %v4284 = vpop.f32.mrf.mxu0
  %v4285 = vadd.f32 0.0, %v4284
  %v4286 = vpop.f32.mrf.mxu0
  %4287 = vmatprep.mubr.bf16.mxu0 %v4206
  %4288 = vmatmul.mubr.bf16.gmra.mxu0 %v4100
  %v4289 = vpop.f32.mrf.mxu0
  %v4290 = vadd.f32 0.0, %v4289
  %v4291 = vpop.f32.mrf.mxu0
  %v4292 = vpop.f32.mrf.mxu0
  %v4293 = vadd.f32 0.0, %v4292
  %v4294 = vpop.f32.mrf.mxu0
  %4295 = vmatprep.mubr.bf16.mxu0 %v4209
  %4296 = vmatmul.mubr.bf16.gmra.mxu0 %v4102
  %v4297 = vpop.f32.mrf.mxu0
  %v4298 = vadd.f32 0.0, %v4297
  %v4299 = vpop.f32.mrf.mxu0
  %v4300 = vpop.f32.mrf.mxu0
  %v4301 = vadd.f32 0.0, %v4300
  %v4302 = vpop.f32.mrf.mxu0
  %4303 = vmatprep.mubr.bf16.mxu0 %v4212
  %4304 = vmatmul.mubr.bf16.gmra.mxu0 %v4104
  %v4305 = vpop.f32.mrf.mxu0
  %v4306 = vadd.f32 0.0, %v4305
  %v4307 = vpop.f32.mrf.mxu0
  %v4308 = vpop.f32.mrf.mxu0
  %v4309 = vadd.f32 0.0, %v4308
  %v4310 = vpop.f32.mrf.mxu0
  %4311 = vmatprep.mubr.bf16.mxu0 %v4215
  %4312 = vmatmul.mubr.bf16.gmra.mxu0 %v4106
  %v4313 = vpop.f32.mrf.mxu0
  %v4314 = vadd.f32 0.0, %v4313
  %v4315 = vpop.f32.mrf.mxu0
  %v4316 = vpop.f32.mrf.mxu0
  %v4317 = vadd.f32 0.0, %v4316
  %v4318 = vpop.f32.mrf.mxu0
  %4319 = vmatprep.mubr.bf16.mxu0 %v4218
  %4320 = vmatmul.mubr.bf16.gmra.mxu0 %v4108
  %v4321 = vpop.f32.mrf.mxu0
  %v4322 = vadd.f32 0.0, %v4321
  %v4323 = vpop.f32.mrf.mxu0
  %v4324 = vpop.f32.mrf.mxu0
  %v4325 = vadd.f32 0.0, %v4324
  %v4326 = vpop.f32.mrf.mxu0
  %4327 = vmatprep.mubr.bf16.mxu0 %v4221
  %4328 = vmatmul.mubr.bf16.gmra.mxu0 %v4110
  %v4329 = vpop.f32.mrf.mxu0
  %v4330 = vadd.f32 0.0, %v4329
  %v4331 = vpop.f32.mrf.mxu0
  %v4332 = vpop.f32.mrf.mxu0
  %v4333 = vadd.f32 0.0, %v4332
  %v4334 = vpop.f32.mrf.mxu0
  %4335 = vdwg.mxu0
  %s4336 = scalar_lea.vmem %s10, 80
  %v4337 = vld [vmem:[%s4336] sm:$0xf]
  %v4338 = vld [vmem:[%s4336 + $0x4] sm:$0xf]
  %v4339 = vld [vmem:[%s4336 + $0x8] sm:$0xf]
  %v4340 = vld [vmem:[%s4336 + $0xc] sm:$0xf]
  %v4341 = vld [vmem:[%s4336 + $0x10] sm:$0xf]
  %v4342 = vld [vmem:[%s4336 + $0x14] sm:$0xf]
  %v4343 = vld [vmem:[%s4336 + $0x18] sm:$0xf]
  %v4344 = vld [vmem:[%s4336 + $0x1c] sm:$0xf]
  %v4345 = vld [vmem:[%s4336 + $0x20] sm:$0xf]
  %v4346 = vld [vmem:[%s4336 + $0x24] sm:$0xf]
  %v4347 = vld [vmem:[%s4336 + $0x28] sm:$0xf]
  %v4348 = vld [vmem:[%s4336 + $0x2c] sm:$0xf]
  %v4349 = vld [vmem:[%s4336 + $0x30] sm:$0xf]
  %v4350 = vld [vmem:[%s4336 + $0x34] sm:$0xf]
  %v4351 = vld [vmem:[%s4336 + $0x38] sm:$0xf]
  %v4352 = vld [vmem:[%s4336 + $0x3c] sm:$0xf]
  %v4353 = vld [vmem:[%s4336 + $0x40] sm:$0xf]
  %v4354 = vld [vmem:[%s4336 + $0x44] sm:$0xf]
  %v4355 = vld [vmem:[%s4336 + $0x48] sm:$0xf]
  %v4356 = vld [vmem:[%s4336 + $0x4c] sm:$0xf]
  %v4377 = vunpack.c.l.b16 %v4337
  %v4378 = vunpack.c.l.b16 %v4338
  %v4379 = vunpack.c.l.b16 %v4339
  %v4380 = vunpack.c.l.b16 %v4340
  %v4381 = vunpack.c.l.b16 %v4341
  %v4382 = vunpack.c.l.b16 %v4342
  %v4383 = vunpack.c.l.b16 %v4343
  %v4384 = vunpack.c.l.b16 %v4344
  %v4385 = vunpack.c.l.b16 %v4345
  %v4386 = vunpack.c.l.b16 %v4346
  %v4387 = vunpack.c.l.b16 %v4347
  %v4388 = vunpack.c.l.b16 %v4348
  %v4389 = vunpack.c.l.b16 %v4349
  %v4390 = vunpack.c.l.b16 %v4350
  %v4391 = vunpack.c.l.b16 %v4351
  %v4392 = vunpack.c.l.b16 %v4352
  %v4393 = vunpack.c.l.b16 %v4353
  %v4394 = vunpack.c.l.b16 %v4354
  %v4395 = vunpack.c.l.b16 %v4355
  %v4396 = vunpack.c.l.b16 %v4356
  %v4397 = vpack.c.b16 %v4378, %v4377
  %v4398 = vpack.c.b16 %v4380, %v4379
  %v4399 = vpack.c.b16 %v4382, %v4381
  %v4400 = vpack.c.b16 %v4384, %v4383
  %v4401 = vpack.c.b16 %v4386, %v4385
  %v4402 = vpack.c.b16 %v4388, %v4387
  %v4403 = vpack.c.b16 %v4390, %v4389
  %v4404 = vpack.c.b16 %v4392, %v4391
  %v4405 = vpack.c.b16 %v4394, %v4393
  %v4406 = vpack.c.b16 %v4396, %v4395
  %4417 = vmatprep.subr.bf16.mxu0 0
  %4418 = vmatpush1.bf16.msra.mxu0 %v4404
  %4419 = vmatprep.subr.bf16.mxu0 0
  %4420 = vmatpush1.bf16.msra.mxu0 %v4403
  %4421 = vmatprep.subr.bf16.mxu0 0
  %4422 = vmatpush1.bf16.msra.mxu0 %v4402
  %4423 = vmatprep.subr.bf16.mxu0 0
  %4424 = vmatpush1.bf16.msra.mxu0 %v4401
  %4425 = vmatprep.subr.bf16.mxu0 0
  %4426 = vmatpush1.bf16.msra.mxu0 %v4400
  %4427 = vmatprep.subr.bf16.mxu0 0
  %4428 = vmatpush1.bf16.msra.mxu0 %v4399
  %4429 = vmatprep.subr.bf16.mxu0 0
  %4430 = vmatpush1.bf16.msra.mxu0 %v4398
  %4431 = vmatprep.subr.bf16.mxu0 0
  %4432 = vmatpush1.bf16.msra.mxu0 %v4397
  %4433 = vmatprep.subr.bf16.mxu0 0
  %4434 = vmatpush2.bf16.msra.mxu0 0
  %4435 = vmatprep.subr.bf16.mxu0 0
  %4436 = vmatpush2.bf16.msra.mxu0 0
  %4437 = vmatprep.subr.bf16.mxu0 0
  %4438 = vmatpush2.bf16.msra.mxu0 0
  %4439 = vmatprep.subr.bf16.mxu0 0
  %4440 = vmatpush2.bf16.msra.mxu0 0
  %4441 = vmatprep.subr.bf16.mxu0 0
  %4442 = vmatpush2.bf16.msra.mxu0 0
  %4443 = vmatprep.subr.bf16.mxu0 0
  %4444 = vmatpush2.bf16.msra.mxu0 0
  %4445 = vmatprep.subr.bf16.mxu0 0
  %4446 = vmatpush2.bf16.msra.mxu0 %v4406
  %4447 = vmatprep.subr.bf16.mxu0 0
  %4448 = vmatpush2.bf16.msra.mxu0 %v4405
  %4449 = vmatprep.mubr.bf16.mxu0 %v4194
  %4450 = vmatmul.mubr.bf16.gmra.mxu0 %v4092
  %v4451 = vpop.f32.mrf.mxu0
  %v4452 = vadd.f32 0.0, %v4451
  %v4453 = vpop.f32.mrf.mxu0
  %v4454 = vpop.f32.mrf.mxu0
  %v4455 = vadd.f32 0.0, %v4454
  %v4456 = vpop.f32.mrf.mxu0
  %4457 = vmatprep.mubr.bf16.mxu0 %v4197
  %4458 = vmatmul.mubr.bf16.gmra.mxu0 %v4094
  %v4459 = vpop.f32.mrf.mxu0
  %v4460 = vadd.f32 0.0, %v4459
  %v4461 = vpop.f32.mrf.mxu0
  %v4462 = vpop.f32.mrf.mxu0
  %v4463 = vadd.f32 0.0, %v4462
  %v4464 = vpop.f32.mrf.mxu0
  %4465 = vmatprep.mubr.bf16.mxu0 %v4200
  %4466 = vmatmul.mubr.bf16.gmra.mxu0 %v4096
  %v4467 = vpop.f32.mrf.mxu0
  %v4468 = vadd.f32 0.0, %v4467
  %v4469 = vpop.f32.mrf.mxu0
  %v4470 = vpop.f32.mrf.mxu0
  %v4471 = vadd.f32 0.0, %v4470
  %v4472 = vpop.f32.mrf.mxu0
  %4473 = vmatprep.mubr.bf16.mxu0 %v4203
  %4474 = vmatmul.mubr.bf16.gmra.mxu0 %v4098
  %v4475 = vpop.f32.mrf.mxu0
  %v4476 = vadd.f32 0.0, %v4475
  %v4477 = vpop.f32.mrf.mxu0
  %v4478 = vpop.f32.mrf.mxu0
  %v4479 = vadd.f32 0.0, %v4478
  %v4480 = vpop.f32.mrf.mxu0
  %4481 = vmatprep.mubr.bf16.mxu0 %v4206
  %4482 = vmatmul.mubr.bf16.gmra.mxu0 %v4100
  %v4483 = vpop.f32.mrf.mxu0
  %v4484 = vadd.f32 0.0, %v4483
  %v4485 = vpop.f32.mrf.mxu0
  %v4486 = vpop.f32.mrf.mxu0
  %v4487 = vadd.f32 0.0, %v4486
  %v4488 = vpop.f32.mrf.mxu0
  %4489 = vmatprep.mubr.bf16.mxu0 %v4209
  %4490 = vmatmul.mubr.bf16.gmra.mxu0 %v4102
  %v4491 = vpop.f32.mrf.mxu0
  %v4492 = vadd.f32 0.0, %v4491
  %v4493 = vpop.f32.mrf.mxu0
  %v4494 = vpop.f32.mrf.mxu0
  %v4495 = vadd.f32 0.0, %v4494
  %v4496 = vpop.f32.mrf.mxu0
  %4497 = vmatprep.mubr.bf16.mxu0 %v4212
  %4498 = vmatmul.mubr.bf16.gmra.mxu0 %v4104
  %v4499 = vpop.f32.mrf.mxu0
  %v4500 = vadd.f32 0.0, %v4499
  %v4501 = vpop.f32.mrf.mxu0
  %v4502 = vpop.f32.mrf.mxu0
  %v4503 = vadd.f32 0.0, %v4502
  %v4504 = vpop.f32.mrf.mxu0
  %4505 = vmatprep.mubr.bf16.mxu0 %v4215
  %4506 = vmatmul.mubr.bf16.gmra.mxu0 %v4106
  %v4507 = vpop.f32.mrf.mxu0
  %v4508 = vadd.f32 0.0, %v4507
  %v4509 = vpop.f32.mrf.mxu0
  %v4510 = vpop.f32.mrf.mxu0
  %v4511 = vadd.f32 0.0, %v4510
  %v4512 = vpop.f32.mrf.mxu0
  %4513 = vmatprep.mubr.bf16.mxu0 %v4218
  %4514 = vmatmul.mubr.bf16.gmra.mxu0 %v4108
  %v4515 = vpop.f32.mrf.mxu0
  %v4516 = vadd.f32 0.0, %v4515
  %v4517 = vpop.f32.mrf.mxu0
  %v4518 = vpop.f32.mrf.mxu0
  %v4519 = vadd.f32 0.0, %v4518
  %v4520 = vpop.f32.mrf.mxu0
  %4521 = vmatprep.mubr.bf16.mxu0 %v4221
  %4522 = vmatmul.mubr.bf16.gmra.mxu0 %v4110
  %v4523 = vpop.f32.mrf.mxu0
  %v4524 = vadd.f32 0.0, %v4523
  %v4525 = vpop.f32.mrf.mxu0
  %v4526 = vpop.f32.mrf.mxu0
  %v4527 = vadd.f32 0.0, %v4526
  %v4528 = vpop.f32.mrf.mxu0
  %4529 = vdwg.mxu0
  %v4530 = vmax.f32 %v4258, %v4452
  %v4531 = vmax.f32 %v4261, %v4455
  %v4532 = vmax.f32 %v4266, %v4460
  %v4533 = vmax.f32 %v4269, %v4463
  %v4534 = vmax.f32 %v4274, %v4468
  %v4535 = vmax.f32 %v4277, %v4471
  %v4536 = vmax.f32 %v4282, %v4476
  %v4537 = vmax.f32 %v4285, %v4479
  %v4538 = vmax.f32 %v4290, %v4484
  %v4539 = vmax.f32 %v4293, %v4487
  %v4540 = vmax.f32 %v4298, %v4492
  %v4541 = vmax.f32 %v4301, %v4495
  %v4542 = vmax.f32 %v4306, %v4500
  %v4543 = vmax.f32 %v4309, %v4503
  %v4544 = vmax.f32 %v4314, %v4508
  %v4545 = vmax.f32 %v4317, %v4511
  %v4546 = vmax.f32 %v4322, %v4516
  %v4547 = vmax.f32 %v4325, %v4519
  %v4548 = vmax.f32 %v4330, %v4524
  %v4549 = vmax.f32 %v4333, %v4527
  %v4550 = vmax.f32 %v4530, %v4532
  %v4551 = vmax.f32 %v4531, %v4533
  %v4552 = vpack.c.bf16 %v4551, %v4550
  %v4553 = vld [vmem:[%s5] sm:$0xf]
  %v4554 = vld [vmem:[%s5 + $0x4] sm:$0xf]
  %v4555 = vld [vmem:[%s5 + $0x8] sm:$0xf]
  %v4556 = vld [vmem:[%s5 + $0xc] sm:$0xf]
  %v4557 = vld [vmem:[%s5 + $0x10] sm:$0xf]
  %v4558 = vld [vmem:[%s5 + $0x14] sm:$0xf]
  %v4559 = vld [vmem:[%s5 + $0x18] sm:$0xf]
  %v4560 = vld [vmem:[%s5 + $0x1c] sm:$0xf]
  %v4561 = vld [vmem:[%s5 + $0x20] sm:$0xf]
  %v4562 = vld [vmem:[%s5 + $0x24] sm:$0xf]
  %v4563 = vmax.f32 %v4534, %v4536
  %v4564 = vmax.f32 %v4535, %v4537
  %v4565 = vpack.c.bf16 %v4564, %v4563
  %s4566 = scalar_lea.vmem %s5, 40
  %v4567 = vld [vmem:[%s4566] sm:$0xf]
  %v4568 = vld [vmem:[%s4566 + $0x4] sm:$0xf]
  %v4569 = vld [vmem:[%s4566 + $0x8] sm:$0xf]
  %v4570 = vld [vmem:[%s4566 + $0xc] sm:$0xf]
  %v4571 = vld [vmem:[%s4566 + $0x10] sm:$0xf]
  %v4572 = vld [vmem:[%s4566 + $0x14] sm:$0xf]
  %v4573 = vld [vmem:[%s4566 + $0x18] sm:$0xf]
  %v4574 = vld [vmem:[%s4566 + $0x1c] sm:$0xf]
  %v4575 = vld [vmem:[%s4566 + $0x20] sm:$0xf]
  %v4576 = vld [vmem:[%s4566 + $0x24] sm:$0xf]
  %v4587 = vunpack.c.l.b16 %v4567
  %v4588 = vunpack.c.l.b16 %v4568
  %v4589 = vunpack.c.l.b16 %v4569
  %v4590 = vunpack.c.l.b16 %v4570
  %v4591 = vunpack.c.l.b16 %v4571
  %v4592 = vunpack.c.l.b16 %v4572
  %v4593 = vunpack.c.l.b16 %v4573
  %v4594 = vunpack.c.l.b16 %v4574
  %v4595 = vunpack.c.l.b16 %v4575
  %v4596 = vunpack.c.l.b16 %v4576
  %v4597 = vpack.c.b16 %v4588, %v4587
  %v4598 = vpack.c.b16 %v4590, %v4589
  %v4599 = vpack.c.b16 %v4592, %v4591
  %v4600 = vpack.c.b16 %v4594, %v4593
  %v4601 = vpack.c.b16 %v4596, %v4595
  %vm4607 = vcmask 654336
  %v4609 = vsel %vm4607, %v4565, 0
  %4611 = vmatprep.subr.bf16.mxu0 0
  %4612 = vmatpush1.bf16.msra.mxu0 0
  %4613 = vmatprep.subr.bf16.mxu0 0
  %4614 = vmatpush1.bf16.msra.mxu0 0
  %4615 = vmatprep.subr.bf16.mxu0 0
  %4616 = vmatpush1.bf16.msra.mxu0 0
  %4617 = vmatprep.subr.bf16.mxu0 0
  %4618 = vmatpush1.bf16.msra.mxu0 %v4601
  %4619 = vmatprep.subr.bf16.mxu0 0
  %4620 = vmatpush1.bf16.msra.mxu0 %v4600
  %4621 = vmatprep.subr.bf16.mxu0 0
  %4622 = vmatpush1.bf16.msra.mxu0 %v4599
  %4623 = vmatprep.subr.bf16.mxu0 0
  %4624 = vmatpush1.bf16.msra.mxu0 %v4598
  %4625 = vmatprep.subr.bf16.mxu0 0
  %4626 = vmatpush1.bf16.msra.mxu0 %v4597
  %4627 = vmatprep.subr.bf16.mxu0 0
  %4628 = vmatpush2.bf16.msra.mxu0 0
  %4629 = vmatprep.subr.bf16.mxu0 0
  %4630 = vmatpush2.bf16.msra.mxu0 0
  %4631 = vmatprep.subr.bf16.mxu0 0
  %4632 = vmatpush2.bf16.msra.mxu0 0
  %4633 = vmatprep.subr.bf16.mxu0 0
  %4634 = vmatpush2.bf16.msra.mxu0 0
  %4635 = vmatprep.subr.bf16.mxu0 0
  %4636 = vmatpush2.bf16.msra.mxu0 0
  %4637 = vmatprep.subr.bf16.mxu0 0
  %4638 = vmatpush2.bf16.msra.mxu0 0
  %4639 = vmatprep.subr.bf16.mxu0 0
  %4640 = vmatpush2.bf16.msra.mxu0 0
  %4641 = vmatprep.subr.bf16.mxu0 0
  %4642 = vmatpush2.bf16.msra.mxu0 0
  %4643 = vmatprep.mubr.bf16.mxu0 0
  %4644 = vmatmul.mubr.bf16.gmra.mxu0 %v4609
  %v4645 = vpop.f32.mrf.mxu0
  %v4646 = vadd.f32 0.0, %v4645
  %v4647 = vpop.f32.mrf.mxu0
  %v4648 = vpop.f32.mrf.mxu0
  %v4649 = vadd.f32 0.0, %v4648
  %v4650 = vpop.f32.mrf.mxu0
  %4651 = vdwg.mxu0
  %v4662 = vunpack.c.l.b16 %v4553
  %v4663 = vunpack.c.l.b16 %v4554
  %v4664 = vunpack.c.l.b16 %v4555
  %v4665 = vunpack.c.l.b16 %v4556
  %v4666 = vunpack.c.l.b16 %v4557
  %v4667 = vunpack.c.l.b16 %v4558
  %v4668 = vunpack.c.l.b16 %v4559
  %v4669 = vunpack.c.l.b16 %v4560
  %v4670 = vunpack.c.l.b16 %v4561
  %v4671 = vunpack.c.l.b16 %v4562
  %v4672 = vpack.c.b16 %v4663, %v4662
  %v4673 = vpack.c.b16 %v4665, %v4664
  %v4674 = vpack.c.b16 %v4667, %v4666
  %v4675 = vpack.c.b16 %v4669, %v4668
  %v4676 = vpack.c.b16 %v4671, %v4670
  %v4683 = vsel %vm4607, %v4552, 0
  %4685 = vmatprep.subr.bf16.mxu0 0
  %4686 = vmatpush1.bf16.msra.mxu0 0
  %4687 = vmatprep.subr.bf16.mxu0 0
  %4688 = vmatpush1.bf16.msra.mxu0 0
  %4689 = vmatprep.subr.bf16.mxu0 0
  %4690 = vmatpush1.bf16.msra.mxu0 0
  %4691 = vmatprep.subr.bf16.mxu0 0
  %4692 = vmatpush1.bf16.msra.mxu0 %v4676
  %4693 = vmatprep.subr.bf16.mxu0 0
  %4694 = vmatpush1.bf16.msra.mxu0 %v4675
  %4695 = vmatprep.subr.bf16.mxu0 0
  %4696 = vmatpush1.bf16.msra.mxu0 %v4674
  %4697 = vmatprep.subr.bf16.mxu0 0
  %4698 = vmatpush1.bf16.msra.mxu0 %v4673
  %4699 = vmatprep.subr.bf16.mxu0 0
  %4700 = vmatpush1.bf16.msra.mxu0 %v4672
  %4701 = vmatprep.subr.bf16.mxu0 0
  %4702 = vmatpush2.bf16.msra.mxu0 0
  %4703 = vmatprep.subr.bf16.mxu0 0
  %4704 = vmatpush2.bf16.msra.mxu0 0
  %4705 = vmatprep.subr.bf16.mxu0 0
  %4706 = vmatpush2.bf16.msra.mxu0 0
  %4707 = vmatprep.subr.bf16.mxu0 0
  %4708 = vmatpush2.bf16.msra.mxu0 0
  %4709 = vmatprep.subr.bf16.mxu0 0
  %4710 = vmatpush2.bf16.msra.mxu0 0
  %4711 = vmatprep.subr.bf16.mxu0 0
  %4712 = vmatpush2.bf16.msra.mxu0 0
  %4713 = vmatprep.subr.bf16.mxu0 0
  %4714 = vmatpush2.bf16.msra.mxu0 0
  %4715 = vmatprep.subr.bf16.mxu0 0
  %4716 = vmatpush2.bf16.msra.mxu0 0
  %4717 = vmatprep.mubr.bf16.mxu0 0
  %4718 = vmatmul.mubr.bf16.gmra.mxu0 %v4683
  %v4719 = vpop.f32.mrf.mxu0
  %v4720 = vadd.f32 %v4646, %v4719
  %v4721 = vpop.f32.mrf.mxu0
  %v4722 = vpop.f32.mrf.mxu0
  %v4723 = vadd.f32 %v4649, %v4722
  %v4724 = vpop.f32.mrf.mxu0
  %4725 = vdwg.mxu0
  %v4726 = vmax.f32 %v4538, %v4540
  %v4727 = vmax.f32 %v4539, %v4541
  %v4728 = vpack.c.bf16 %v4727, %v4726
  %s4729 = scalar_lea.vmem %s5, 80
  %v4730 = vld [vmem:[%s4729] sm:$0xf]
  %v4731 = vld [vmem:[%s4729 + $0x4] sm:$0xf]
  %v4732 = vld [vmem:[%s4729 + $0x8] sm:$0xf]
  %v4733 = vld [vmem:[%s4729 + $0xc] sm:$0xf]
  %v4734 = vld [vmem:[%s4729 + $0x10] sm:$0xf]
  %v4735 = vld [vmem:[%s4729 + $0x14] sm:$0xf]
  %v4736 = vld [vmem:[%s4729 + $0x18] sm:$0xf]
  %v4737 = vld [vmem:[%s4729 + $0x1c] sm:$0xf]
  %v4738 = vld [vmem:[%s4729 + $0x20] sm:$0xf]
  %v4739 = vld [vmem:[%s4729 + $0x24] sm:$0xf]
  %v4750 = vunpack.c.l.b16 %v4730
  %v4751 = vunpack.c.l.b16 %v4731
  %v4752 = vunpack.c.l.b16 %v4732
  %v4753 = vunpack.c.l.b16 %v4733
  %v4754 = vunpack.c.l.b16 %v4734
  %v4755 = vunpack.c.l.b16 %v4735
  %v4756 = vunpack.c.l.b16 %v4736
  %v4757 = vunpack.c.l.b16 %v4737
  %v4758 = vunpack.c.l.b16 %v4738
  %v4759 = vunpack.c.l.b16 %v4739
  %v4760 = vpack.c.b16 %v4751, %v4750
  %v4761 = vpack.c.b16 %v4753, %v4752
  %v4762 = vpack.c.b16 %v4755, %v4754
  %v4763 = vpack.c.b16 %v4757, %v4756
  %v4764 = vpack.c.b16 %v4759, %v4758
  %v4771 = vsel %vm4607, %v4728, 0
  %4773 = vmatprep.subr.bf16.mxu0 0
  %4774 = vmatpush1.bf16.msra.mxu0 0
  %4775 = vmatprep.subr.bf16.mxu0 0
  %4776 = vmatpush1.bf16.msra.mxu0 0
  %4777 = vmatprep.subr.bf16.mxu0 0
  %4778 = vmatpush1.bf16.msra.mxu0 0
  %4779 = vmatprep.subr.bf16.mxu0 0
  %4780 = vmatpush1.bf16.msra.mxu0 %v4764
  %4781 = vmatprep.subr.bf16.mxu0 0
  %4782 = vmatpush1.bf16.msra.mxu0 %v4763
  %4783 = vmatprep.subr.bf16.mxu0 0
  %4784 = vmatpush1.bf16.msra.mxu0 %v4762
  %4785 = vmatprep.subr.bf16.mxu0 0
  %4786 = vmatpush1.bf16.msra.mxu0 %v4761
  %4787 = vmatprep.subr.bf16.mxu0 0
  %4788 = vmatpush1.bf16.msra.mxu0 %v4760
  %4789 = vmatprep.subr.bf16.mxu0 0
  %4790 = vmatpush2.bf16.msra.mxu0 0
  %4791 = vmatprep.subr.bf16.mxu0 0
  %4792 = vmatpush2.bf16.msra.mxu0 0
  %4793 = vmatprep.subr.bf16.mxu0 0
  %4794 = vmatpush2.bf16.msra.mxu0 0
  %4795 = vmatprep.subr.bf16.mxu0 0
  %4796 = vmatpush2.bf16.msra.mxu0 0
  %4797 = vmatprep.subr.bf16.mxu0 0
  %4798 = vmatpush2.bf16.msra.mxu0 0
  %4799 = vmatprep.subr.bf16.mxu0 0
  %4800 = vmatpush2.bf16.msra.mxu0 0
  %4801 = vmatprep.subr.bf16.mxu0 0
  %4802 = vmatpush2.bf16.msra.mxu0 0
  %4803 = vmatprep.subr.bf16.mxu0 0
  %4804 = vmatpush2.bf16.msra.mxu0 0
  %4805 = vmatprep.mubr.bf16.mxu0 0
  %4806 = vmatmul.mubr.bf16.gmra.mxu0 %v4771
  %v4807 = vpop.f32.mrf.mxu0
  %v4808 = vadd.f32 0.0, %v4807
  %v4809 = vpop.f32.mrf.mxu0
  %v4810 = vpop.f32.mrf.mxu0
  %v4811 = vadd.f32 0.0, %v4810
  %v4812 = vpop.f32.mrf.mxu0
  %4813 = vdwg.mxu0
  %v4814 = vadd.f32 %v4720, %v4808
  %v4815 = vadd.f32 %v4723, %v4811
  %v4816 = vmax.f32 %v4542, %v4544
  %v4817 = vmax.f32 %v4543, %v4545
  %v4818 = vpack.c.bf16 %v4817, %v4816
  %s4819 = scalar_lea.vmem %s5, 120
  %v4820 = vld [vmem:[%s4819] sm:$0xf]
  %v4821 = vld [vmem:[%s4819 + $0x4] sm:$0xf]
  %v4822 = vld [vmem:[%s4819 + $0x8] sm:$0xf]
  %v4823 = vld [vmem:[%s4819 + $0xc] sm:$0xf]
  %v4824 = vld [vmem:[%s4819 + $0x10] sm:$0xf]
  %v4825 = vld [vmem:[%s4819 + $0x14] sm:$0xf]
  %v4826 = vld [vmem:[%s4819 + $0x18] sm:$0xf]
  %v4827 = vld [vmem:[%s4819 + $0x1c] sm:$0xf]
  %v4828 = vld [vmem:[%s4819 + $0x20] sm:$0xf]
  %v4829 = vld [vmem:[%s4819 + $0x24] sm:$0xf]
  %v4840 = vunpack.c.l.b16 %v4820
  %v4841 = vunpack.c.l.b16 %v4821
  %v4842 = vunpack.c.l.b16 %v4822
  %v4843 = vunpack.c.l.b16 %v4823
  %v4844 = vunpack.c.l.b16 %v4824
  %v4845 = vunpack.c.l.b16 %v4825
  %v4846 = vunpack.c.l.b16 %v4826
  %v4847 = vunpack.c.l.b16 %v4827
  %v4848 = vunpack.c.l.b16 %v4828
  %v4849 = vunpack.c.l.b16 %v4829
  %v4850 = vpack.c.b16 %v4841, %v4840
  %v4851 = vpack.c.b16 %v4843, %v4842
  %v4852 = vpack.c.b16 %v4845, %v4844
  %v4853 = vpack.c.b16 %v4847, %v4846
  %v4854 = vpack.c.b16 %v4849, %v4848
  %v4861 = vsel %vm4607, %v4818, 0
  %4863 = vmatprep.subr.bf16.mxu0 0
  %4864 = vmatpush1.bf16.msra.mxu0 0
  %4865 = vmatprep.subr.bf16.mxu0 0
  %4866 = vmatpush1.bf16.msra.mxu0 0
  %4867 = vmatprep.subr.bf16.mxu0 0
  %4868 = vmatpush1.bf16.msra.mxu0 0
  %4869 = vmatprep.subr.bf16.mxu0 0
  %4870 = vmatpush1.bf16.msra.mxu0 %v4854
  %4871 = vmatprep.subr.bf16.mxu0 0
  %4872 = vmatpush1.bf16.msra.mxu0 %v4853
  %4873 = vmatprep.subr.bf16.mxu0 0
  %4874 = vmatpush1.bf16.msra.mxu0 %v4852
  %4875 = vmatprep.subr.bf16.mxu0 0
  %4876 = vmatpush1.bf16.msra.mxu0 %v4851
  %4877 = vmatprep.subr.bf16.mxu0 0
  %4878 = vmatpush1.bf16.msra.mxu0 %v4850
  %4879 = vmatprep.subr.bf16.mxu0 0
  %4880 = vmatpush2.bf16.msra.mxu0 0
  %4881 = vmatprep.subr.bf16.mxu0 0
  %4882 = vmatpush2.bf16.msra.mxu0 0
  %4883 = vmatprep.subr.bf16.mxu0 0
  %4884 = vmatpush2.bf16.msra.mxu0 0
  %4885 = vmatprep.subr.bf16.mxu0 0
  %4886 = vmatpush2.bf16.msra.mxu0 0
  %4887 = vmatprep.subr.bf16.mxu0 0
  %4888 = vmatpush2.bf16.msra.mxu0 0
  %4889 = vmatprep.subr.bf16.mxu0 0
  %4890 = vmatpush2.bf16.msra.mxu0 0
  %4891 = vmatprep.subr.bf16.mxu0 0
  %4892 = vmatpush2.bf16.msra.mxu0 0
  %4893 = vmatprep.subr.bf16.mxu0 0
  %4894 = vmatpush2.bf16.msra.mxu0 0
  %4895 = vmatprep.mubr.bf16.mxu0 0
  %4896 = vmatmul.mubr.bf16.gmra.mxu0 %v4861
  %v4897 = vpop.f32.mrf.mxu0
  %v4898 = vadd.f32 0.0, %v4897
  %v4899 = vpop.f32.mrf.mxu0
  %v4900 = vpop.f32.mrf.mxu0
  %v4901 = vadd.f32 0.0, %v4900
  %v4902 = vpop.f32.mrf.mxu0
  %4903 = vdwg.mxu0
  %v4904 = vadd.f32 %v4814, %v4898
  %v4905 = vadd.f32 %v4815, %v4901
  %v4906 = vmax.f32 %v4546, %v4548
  %v4907 = vmax.f32 %v4547, %v4549
  %v4908 = vpack.c.bf16 %v4907, %v4906
  %s4909 = scalar_lea.vmem %s5, 160
  %v4910 = vld [vmem:[%s4909] sm:$0xf]
  %v4911 = vld [vmem:[%s4909 + $0x4] sm:$0xf]
  %v4912 = vld [vmem:[%s4909 + $0x8] sm:$0xf]
  %v4913 = vld [vmem:[%s4909 + $0xc] sm:$0xf]
  %v4914 = vld [vmem:[%s4909 + $0x10] sm:$0xf]
  %v4915 = vld [vmem:[%s4909 + $0x14] sm:$0xf]
  %v4916 = vld [vmem:[%s4909 + $0x18] sm:$0xf]
  %v4917 = vld [vmem:[%s4909 + $0x1c] sm:$0xf]
  %v4918 = vld [vmem:[%s4909 + $0x20] sm:$0xf]
  %v4919 = vld [vmem:[%s4909 + $0x24] sm:$0xf]
  %v4930 = vunpack.c.l.b16 %v4910
  %v4931 = vunpack.c.l.b16 %v4911
  %v4932 = vunpack.c.l.b16 %v4912
  %v4933 = vunpack.c.l.b16 %v4913
  %v4934 = vunpack.c.l.b16 %v4914
  %v4935 = vunpack.c.l.b16 %v4915
  %v4936 = vunpack.c.l.b16 %v4916
  %v4937 = vunpack.c.l.b16 %v4917
  %v4938 = vunpack.c.l.b16 %v4918
  %v4939 = vunpack.c.l.b16 %v4919
  %v4940 = vpack.c.b16 %v4931, %v4930
  %v4941 = vpack.c.b16 %v4933, %v4932
  %v4942 = vpack.c.b16 %v4935, %v4934
  %v4943 = vpack.c.b16 %v4937, %v4936
  %v4944 = vpack.c.b16 %v4939, %v4938
  %v4951 = vsel %vm4607, %v4908, 0
  %4953 = vmatprep.subr.bf16.mxu0 0
  %4954 = vmatpush1.bf16.msra.mxu0 0
  %4955 = vmatprep.subr.bf16.mxu0 0
  %4956 = vmatpush1.bf16.msra.mxu0 0
  %4957 = vmatprep.subr.bf16.mxu0 0
  %4958 = vmatpush1.bf16.msra.mxu0 0
  %4959 = vmatprep.subr.bf16.mxu0 0
  %4960 = vmatpush1.bf16.msra.mxu0 %v4944
  %4961 = vmatprep.subr.bf16.mxu0 0
  %4962 = vmatpush1.bf16.msra.mxu0 %v4943
  %4963 = vmatprep.subr.bf16.mxu0 0
  %4964 = vmatpush1.bf16.msra.mxu0 %v4942
  %4965 = vmatprep.subr.bf16.mxu0 0
  %4966 = vmatpush1.bf16.msra.mxu0 %v4941
  %4967 = vmatprep.subr.bf16.mxu0 0
  %4968 = vmatpush1.bf16.msra.mxu0 %v4940
  %4969 = vmatprep.subr.bf16.mxu0 0
  %4970 = vmatpush2.bf16.msra.mxu0 0
  %4971 = vmatprep.subr.bf16.mxu0 0
  %4972 = vmatpush2.bf16.msra.mxu0 0
  %4973 = vmatprep.subr.bf16.mxu0 0
  %4974 = vmatpush2.bf16.msra.mxu0 0
  %4975 = vmatprep.subr.bf16.mxu0 0
  %4976 = vmatpush2.bf16.msra.mxu0 0
  %4977 = vmatprep.subr.bf16.mxu0 0
  %4978 = vmatpush2.bf16.msra.mxu0 0
  %4979 = vmatprep.subr.bf16.mxu0 0
  %4980 = vmatpush2.bf16.msra.mxu0 0
  %4981 = vmatprep.subr.bf16.mxu0 0
  %4982 = vmatpush2.bf16.msra.mxu0 0
  %4983 = vmatprep.subr.bf16.mxu0 0
  %4984 = vmatpush2.bf16.msra.mxu0 0
  %4985 = vmatprep.mubr.bf16.mxu0 0
  %4986 = vmatmul.mubr.bf16.gmra.mxu0 %v4951
  %v4987 = vpop.f32.mrf.mxu0
  %v4988 = vadd.f32 0.0, %v4987
  %v4989 = vpop.f32.mrf.mxu0
  %v4990 = vpop.f32.mrf.mxu0
  %v4991 = vadd.f32 0.0, %v4990
  %v4992 = vpop.f32.mrf.mxu0
  %4993 = vdwg.mxu0
  %v4994 = vadd.f32 %v4904, %v4988
  %v4995 = vadd.f32 %v4905, %v4991
  %v4996 = vld [vmem:[%s6] sm:$0x1]
  %v4998 = vlaneseq
  %v4999 = vshrl.u32 %v4998, 7
  %v5000 = vsub.s32 0, %v4999
  %v5001 = vrot.slane %v4996, %v5000
  %v5003 = vadd.f32 %v4994, %v5001
  %v5004 = vadd.f32 %v4995, %v5001
  %v5005 = vmax.f32 %v5003, 0.0
  %v5006 = vmax.f32 %v5004, 0.0
  %v5007 = vpack.c.bf16 %v5006, %v5005
  %v5008 = vld [vmem:[%s7] sm:$0xf]
  %v5009 = vld [vmem:[%s7 + $0x4] sm:$0xf]
  %v5010 = vld [vmem:[%s7 + $0x8] sm:$0xf]
  %v5011 = vld [vmem:[%s7 + $0xc] sm:$0xf]
  %v5012 = vld [vmem:[%s7 + $0x10] sm:$0xf]
  %v5013 = vld [vmem:[%s7 + $0x14] sm:$0xf]
  %v5014 = vld [vmem:[%s7 + $0x18] sm:$0xf]
  %v5015 = vld [vmem:[%s7 + $0x1c] sm:$0xf]
  %v5016 = vld [vmem:[%s7 + $0x20] sm:$0xf]
  %v5017 = vld [vmem:[%s7 + $0x24] sm:$0xf]
  %v5018 = vld [vmem:[%s7 + $0x28] sm:$0xf]
  %v5019 = vld [vmem:[%s7 + $0x2c] sm:$0xf]
  %v5020 = vld [vmem:[%s7 + $0x30] sm:$0xf]
  %v5021 = vld [vmem:[%s7 + $0x34] sm:$0xf]
  %v5022 = vld [vmem:[%s7 + $0x38] sm:$0xf]
  %v5023 = vld [vmem:[%s8] sm:$0x1]
  %v5025 = vlaneseq
  %v5026 = vshrl.u32 %v5025, 7
  %v5027 = vsub.s32 0, %v5026
  %v5028 = vrot.slane %v5023, %v5027
  %v5045 = vunpack.c.l.b16 %v5008
  %v5046 = vunpack.c.l.b16 %v5009
  %v5047 = vunpack.c.l.b16 %v5010
  %v5048 = vunpack.c.l.b16 %v5011
  %v5049 = vunpack.c.l.b16 %v5012
  %v5050 = vunpack.c.l.b16 %v5013
  %v5051 = vunpack.c.l.b16 %v5014
  %v5052 = vunpack.c.l.b16 %v5015
  %v5053 = vunpack.c.l.b16 %v5016
  %v5054 = vunpack.c.l.b16 %v5017
  %v5055 = vunpack.c.l.b16 %v5018
  %v5056 = vunpack.c.l.b16 %v5019
  %v5057 = vunpack.c.l.b16 %v5020
  %v5058 = vunpack.c.l.b16 %v5021
  %v5059 = vunpack.c.l.b16 %v5022
  %v5060 = vpack.c.b16 %v5046, %v5045
  %v5061 = vpack.c.b16 %v5048, %v5047
  %v5062 = vpack.c.b16 %v5050, %v5049
  %v5063 = vpack.c.b16 %v5052, %v5051
  %v5064 = vpack.c.b16 %v5054, %v5053
  %v5065 = vpack.c.b16 %v5056, %v5055
  %v5066 = vpack.c.b16 %v5058, %v5057
  %v5067 = vpack.c.b16 %v5059, %v5059
  %vm5075 = vcmask 982016
  %v5077 = vsel %vm5075, %v5007, 0
  %v5080 = vsel %vm2103, %v5067, 0
  %5082 = vmatprep.subr.bf16.mxu0 0
  %5083 = vmatpush1.bf16.msra.mxu0 %v5080
  %5084 = vmatprep.subr.bf16.mxu0 0
  %5085 = vmatpush1.bf16.msra.mxu0 %v5066
  %5086 = vmatprep.subr.bf16.mxu0 0
  %5087 = vmatpush1.bf16.msra.mxu0 %v5065
  %5088 = vmatprep.subr.bf16.mxu0 0
  %5089 = vmatpush1.bf16.msra.mxu0 %v5064
  %5090 = vmatprep.subr.bf16.mxu0 0
  %5091 = vmatpush1.bf16.msra.mxu0 %v5063
  %5092 = vmatprep.subr.bf16.mxu0 0
  %5093 = vmatpush1.bf16.msra.mxu0 %v5062
  %5094 = vmatprep.subr.bf16.mxu0 0
  %5095 = vmatpush1.bf16.msra.mxu0 %v5061
  %5096 = vmatprep.subr.bf16.mxu0 0
  %5097 = vmatpush1.bf16.msra.mxu0 %v5060
  %5098 = vmatprep.subr.bf16.mxu0 0
  %5099 = vmatpush2.bf16.msra.mxu0 0
  %5100 = vmatprep.subr.bf16.mxu0 0
  %5101 = vmatpush2.bf16.msra.mxu0 0
  %5102 = vmatprep.subr.bf16.mxu0 0
  %5103 = vmatpush2.bf16.msra.mxu0 0
  %5104 = vmatprep.subr.bf16.mxu0 0
  %5105 = vmatpush2.bf16.msra.mxu0 0
  %5106 = vmatprep.subr.bf16.mxu0 0
  %5107 = vmatpush2.bf16.msra.mxu0 0
  %5108 = vmatprep.subr.bf16.mxu0 0
  %5109 = vmatpush2.bf16.msra.mxu0 0
  %5110 = vmatprep.subr.bf16.mxu0 0
  %5111 = vmatpush2.bf16.msra.mxu0 0
  %5112 = vmatprep.subr.bf16.mxu0 0
  %5113 = vmatpush2.bf16.msra.mxu0 0
  %5114 = vmatprep.mubr.bf16.mxu0 0
  %5115 = vmatmul.mubr.bf16.gmra.mxu0 %v5077
  %v5116 = vpop.f32.mrf.mxu0
  %v5117 = vadd.f32 %v5028, %v5116
  %v5118 = vpop.f32.mrf.mxu0
  %v5119 = vpop.f32.mrf.mxu0
  %v5120 = vadd.f32 %v5028, %v5119
  %v5121 = vpop.f32.mrf.mxu0
  %5122 = vdwg.mxu0
  %5123 = vst [vmem:[%s11] sm:$0xff] %v5117
  %5124 = vst [vmem:[%s11 + $0x8] sm:$0xff] %v5120
  // Predicated region
  $region46: #{lenet_forward_pallas.1} parent=0 // pred_check
    _
  $region47: #{lenet_forward_pallas.1} parent=0 // pred_check_branch
    %5126 = sbr.rel (0) target = $region49
  $region48: #{lenet_forward_pallas.1} parent=0 // pred_region
    _
  $region49: #{lenet_forward_pallas.1} parent=0 // pred_fallthru
    _
  // Predicated region
  $region50: #{lenet_forward_pallas.1} parent=0 // pred_check
    _
  $region51: #{lenet_forward_pallas.1} parent=0 // pred_check_branch
    %5128 = sbr.rel (0) target = $region53
  $region52: #{lenet_forward_pallas.1} parent=0 // pred_region
    _
  $region53: #{lenet_forward_pallas.1} parent=0 // pred_fallthru
    _

</llo_original>
